<compile_context>
chip_gen: v5e
topology: v5e:2x2
jax: 0.10.0
libtpu: 0.0.40
codegen_flags: <defaults>
</compile_context>

<pallas_src>
import functools

import numpy as np
import jax
import jax.numpy as jnp
from jax.experimental import pallas as pl
from jax.experimental.pallas import tpu as pltpu


# --- model hyper-parameters (from CNN_RNN_EF2_PS.__init__) -------------------
C_ACC, C_ALP = 3, 6          # accel / alphanum input channels
C1, C2 = 10, 20              # conv1 / conv2 output channels (per branch)
K1, ST1 = 3, 2               # conv1 kernel / stride
K2, ST2 = 5, 2               # conv2 kernel / stride
H = 20                       # GRU hidden size per direction (= feat_dim)
NUM_USER = 20

HP = 128                     # combined (padded) hidden width; real lanes 0..79
GGP = 3 * HP                 # combined (padded) gate width [r:128 | z:128 | n:128]


def _conv_len(L, k, s):
    return (L - k) // s + 1


# -----------------------------------------------------------------------------
# The single fused kernel: conv1+BN+ReLU, conv2+BN+ReLU, both biGRUs, MLP head.
# Everything (weights + intermediates, ~1 MB) lives in VMEM; no grid.
# -----------------------------------------------------------------------------
def _fused_kernel(T, cnt1, cnt2,
                  x_ref, a1_ref, cb1_ref, g1_ref, be1_ref, cs1_ref, cs1t_ref,
                  a2_ref, cb2_ref, g2_ref, be2_ref, cs2_ref, cs2t_ref,
                  wx_ref, bx_ref, wh_ref, bhn_ref,
                  wl1_ref, bl1_ref, wl2_ref, bl2_ref, fac_ref, o_ref):
    f32, bf16 = jnp.float32, jnp.bfloat16

    def mm(a, b):          # bf16 MXU matmul, f32 accumulation
        return jnp.dot(a.astype(bf16), b, preferred_element_type=f32)

    def mm32(a, b):        # full-precision path for the tiny BN statistic matmuls
        return jnp.dot(a, b, preferred_element_type=f32)

    def conv_bn_relu(x, A, cb, g, be, cs, cst, count):
        # Conv1d(+bias) of BOTH branches as one dense matmul on the flat layout.
        y = mm(x, A) + cb                                        # (B, L_out * 2C), f32
        # Train-mode BatchNorm1d (biased var, eps=1e-5), single pass.  The two
        # channel reductions (sum, sum-of-squares) share ONE matmul, and the
        # two per-channel broadcasts (scale, shift) share ONE matmul.
        stats = jnp.concatenate([jnp.sum(y, axis=0, keepdims=True),
                                 jnp.sum(y * y, axis=0, keepdims=True)], axis=0)
        red = mm32(stats, cs)                                    # (2, 2C)
        inv = 1.0 / count
        mean = red[0:1] * inv
        var = jnp.maximum(red[1:2] * inv - mean * mean, 0.0)     # biased variance
        scale = g * jax.lax.rsqrt(var + 1e-5)
        shift = be - mean * scale
        aff = mm32(jnp.concatenate([scale, shift], axis=0), cst) # (2, L_out * 2C)
        return jnp.maximum(y * aff[0:1] + aff[1:2], 0.0)         # affine + ReLU

    h1 = conv_bn_relu(x_ref[...], a1_ref[...], cb1_ref[...], g1_ref[...],
                      be1_ref[...], cs1_ref[...], cs1t_ref[...], cnt1)
    h2 = conv_bn_relu(h1, a2_ref[...], cb2_ref[...], g2_ref[...],
                      be2_ref[...], cs2_ref[...], cs2t_ref[...], cnt2)

    # ---- both bidirectional GRUs fused into a single padded recurrence -------
    B = h2.shape[0]
    CC2 = 2 * C2                                   # per-timestep conv feature width (40)
    wx = wx_ref[...]                               # compact (80, 384) input weights, bf16
    wh = wh_ref[...]                               # block-diag (128, 384) hidden weights, bf16
    bx = bx_ref[...]                               # (1, 384) input-side gate bias (b_hr/b_hz folded)
    bhn = bhn_ref[...]                             # (1, 128) hidden-side n-gate bias
    h = jnp.zeros((B, HP), f32)                    # [acc_fwd|acc_bwd|alp_fwd|alp_bwd|pad=0]

    # Static unroll (T=8): slice offsets below are compile-time constants; the
    # only serial-path matmul per step is mm(h, wh) -- the input projection is
    # independent of h and overlaps with it.
    for s in range(T):
        rev = T - 1 - s                            # backward directions read the reversed sequence
        xin = jnp.concatenate([h2[:, s * CC2:(s + 1) * CC2],
                               h2[:, rev * CC2:(rev + 1) * CC2]], axis=1)   # (B, 80)
        xp = mm(xin, wx) + bx                      # (B, 384), off the h-dependence chain
        hp = mm(h, wh)                             # (B, 384), the recurrence matmul
        r = jax.nn.sigmoid(xp[:, 0:HP] + hp[:, 0:HP])               # 128-aligned views
        z = jax.nn.sigmoid(xp[:, HP:2 * HP] + hp[:, HP:2 * HP])
        n = jnp.tanh(xp[:, 2 * HP:3 * HP] + r * (hp[:, 2 * HP:3 * HP] + bhn))
        h = (1.0 - z) * n + z * h
    # real lanes of h match torch.cat((accel h_n[0], h_n[1], alphanum h_n[0], h_n[1]), 1)

    # ---- MLP head (Linear 80->40, ReLU, Linear 40->1) + user modulation -------
    hid = jnp.maximum(mm(h, wl1_ref[...]) + bl1_ref[...], 0.0)
    out = mm(hid, wl2_ref[...]) + bl2_ref[...]
    o_ref[...] = out * fac_ref[...]


# -----------------------------------------------------------------------------
# One-time host-side weight preprocessing (numpy): build the dense matmul
# operands consumed by the fused kernel from PyTorch-layout parameters.
# -----------------------------------------------------------------------------
def build_kernel_operands(params, L_acc, L_alp):
    p = jax.tree_util.tree_map(lambda a: np.asarray(a, np.float32), params)
    L1 = _conv_len(L_acc, K1, ST1)
    if _conv_len(L_alp, K1, ST1) != L1:
        raise ValueError("fused kernel assumes both branches share conv output lengths")
    T = _conv_len(L1, K2, ST2)
    CC1, CC2 = 2 * C1, 2 * C2

    conv = (p["conv_accel"], p["conv_alphanum"])
    c_in = (C_ACC, C_ALP)
    l_in = (L_acc, L_alp)
    off = (0, C_ACC * L_acc)

    # Conv1: x_all (B, 3L+6L) @ A1 -> (B, L1*2C1); columns ordered (t, branch, out_ch)
    A1 = np.zeros((C_ACC * L_acc + C_ALP * L_alp, L1 * CC1), np.float32)
    for b in range(2):
        w = conv[b]["w1"]                                     # (C1, c_in, K1)
        for t in range(L1):
            for k in range(K1):
                rows = off[b] + np.arange(c_in[b]) * l_in[b] + (ST1 * t + k)
                cols = t * CC1 + b * C1 + np.arange(C1)
                A1[np.ix_(rows, cols)] = w[:, :, k].T
    cb1 = np.tile(np.concatenate([conv[0]["b1"], conv[1]["b1"]]), L1)[None, :]
    g1 = np.concatenate([conv[0]["bn1_g"], conv[1]["bn1_g"]])[None, :]
    be1 = np.concatenate([conv[0]["bn1_b"], conv[1]["bn1_b"]])[None, :]
    cs1 = np.tile(np.eye(CC1, dtype=np.float32), (L1, 1))

    # Conv2: (B, L1*2C1) @ A2 -> (B, T*2C2); columns ordered (t, branch, out_ch)
    A2 = np.zeros((L1 * CC1, T * CC2), np.float32)
    for b in range(2):
        w = conv[b]["w2"]                                     # (C2, C1, K2)
        for t in range(T):
            for k in range(K2):
                rows = (ST2 * t + k) * CC1 + b * C1 + np.arange(C1)
                cols = t * CC2 + b * C2 + np.arange(C2)
                A2[np.ix_(rows, cols)] = w[:, :, k].T
    cb2 = np.tile(np.concatenate([conv[0]["b2"], conv[1]["b2"]]), T)[None, :]
    g2 = np.concatenate([conv[0]["bn2_g"], conv[1]["bn2_g"]])[None, :]
    be2 = np.concatenate([conv[0]["bn2_b"], conv[1]["bn2_b"]])[None, :]
    cs2 = np.tile(np.eye(CC2, dtype=np.float32), (T, 1))

    # GRUs: unit order matches the head's cat(): [acc_fwd, acc_bwd, alp_fwd, alp_bwd].
    # Padded gate layout [r:128 | z:128 | n:128]; within each 128-block unit u owns
    # lanes u*20 .. u*20+20, lanes 80..127 are zero padding.
    units = [p["rnn_accel"]["fwd"], p["rnn_accel"]["bwd"],
             p["rnn_alphanum"]["fwd"], p["rnn_alphanum"]["bwd"]]
    # xin per step = [accel@s | alpha@s | accel@(T-1-s) | alpha@(T-1-s)] (4 x 20 rows)
    xin_off = (0, 2 * C2, C2, 3 * C2)              # per-unit row offset into xin
    Wx = np.zeros((4 * C2, GGP), np.float32)       # compact input->gate weights
    Wh = np.zeros((HP, GGP), np.float32)           # block-diagonal hidden->gate weights
    bx = np.zeros((GGP,), np.float32)
    bhn = np.zeros((HP,), np.float32)
    for u, gp in enumerate(units):
        for g in range(3):                         # PyTorch gate order: 0=r, 1=z, 2=n
            cols = g * HP + u * H + np.arange(H)
            Wx[np.ix_(xin_off[u] + np.arange(C2), cols)] = gp["w_ih"][g * H:(g + 1) * H, :].T
            Wh[np.ix_(u * H + np.arange(H), cols)] = gp["w_hh"][g * H:(g + 1) * H, :].T
            bx[cols] = gp["b_ih"][g * H:(g + 1) * H]
            if g < 2:                              # b_hr / b_hz fold into the x-side bias
                bx[cols] += gp["b_hh"][g * H:(g + 1) * H]
        bhn[u * H + np.arange(H)] = gp["b_hh"][2 * H:3 * H]   # b_hn stays with the h path

    wl1 = np.zeros((HP, 40), np.float32)           # pad rows 80..127 are zero
    wl1[:4 * H, :] = p["lin1_w"].T

    bf = lambda a: jnp.asarray(a, jnp.bfloat16)    # MXU weight operands -> bf16
    fp = lambda a: jnp.asarray(a, jnp.float32)     # biases / BN params / one-hots -> f32
    return dict(
        A1=bf(A1), cb1=fp(cb1), g1=fp(g1), be1=fp(be1), cs1=fp(cs1), cs1t=fp(cs1.T),
        A2=bf(A2), cb2=fp(cb2), g2=fp(g2), be2=fp(be2), cs2=fp(cs2), cs2t=fp(cs2.T),
        Wx=bf(Wx), bx=fp(bx[None, :]), Wh=bf(Wh), bhn=fp(bhn[None, :]),
        wl1=bf(wl1), bl1=fp(p["lin1_b"][None, :]),
        wl2=bf(p["lin2_w"].T), bl2=fp(p["lin2_b"][None, :]),
    )


_OP_ORDER = ("A1", "cb1", "g1", "be1", "cs1", "cs1t",
             "A2", "cb2", "g2", "be2", "cs2", "cs2t",
             "Wx", "bx", "Wh", "bhn", "wl1", "bl1", "wl2", "bl2")


# -----------------------------------------------------------------------------
# Forward (use_accel=True path of CNN_RNN_EF2_PS)
# -----------------------------------------------------------------------------
def cnn_rnn_ef2_ps_forward(alphanum, accel, timestamp, users, params, ops):
    """alphanum: (B, 6, L), accel: (B, 3, L), timestamp: (B,), users: (B,) int."""
    B = accel.shape[0]
    L1 = _conv_len(accel.shape[2], K1, ST1)
    T = _conv_len(L1, K2, ST2)

    # TODO(synk): the nn.Embedding gathers and torch.sin have no clean Pallas TPU
    # equivalent; the (B,)-sized modulation factor is computed in host XLA and the
    # final multiply is fused into the kernel.
    take = lambda name: jnp.take(params[name], users, axis=0).reshape(-1)
    u_a, u_b, u_g, u_d = take("emb_alpha"), take("emb_beta"), take("emb_gamma"), take("emb_delta")
    factor = (u_g * jnp.sin(u_a * timestamp + u_b) + u_d).astype(jnp.float32).reshape(B, 1)

    # NCL -> flat (B, C*L); both branches side by side (free reshapes, no gather/im2col).
    x_all = jnp.concatenate(
        [accel.reshape(B, -1), alphanum.reshape(B, -1)], axis=1).astype(jnp.float32)

    inputs = (x_all,) + tuple(ops[k] for k in _OP_ORDER) + (factor,)

    # Advisory cost estimate so XLA can schedule the tiny host-XLA ops around us.
    weight_bytes = sum(int(np.prod(ops[k].shape)) * ops[k].dtype.itemsize for k in _OP_ORDER)
    act_bytes = int(x_all.shape[0]) * int(x_all.shape[1]) * 4 + 3 * B * 4
    flops = 2 * B * (x_all.shape[1] * L1 * 2 * C1 + L1 * 2 * C1 * T * 2 * C2
                     + T * (4 * C2 * GGP + HP * GGP) + HP * 40 + 40)
    transc = B * (3 * HP * T + 2 * (2 * C1 + 2 * C2))
    cost = pl.CostEstimate(flops=int(flops), transcendentals=int(transc),
                           bytes_accessed=int(weight_bytes + act_bytes + B * 4))

    kernel = functools.partial(_fused_kernel, T, float(B * L1), float(B * T))
    out = pl.pallas_call(
        kernel,
        out_shape=jax.ShapeDtypeStruct((B, 1), jnp.float32),
        in_specs=[pl.BlockSpec(memory_space=pltpu.MemorySpace.VMEM) for _ in inputs],
        out_specs=pl.BlockSpec(memory_space=pltpu.MemorySpace.VMEM),
        cost_estimate=cost,
    )(*inputs)
    return out.reshape(-1)                         # .view([-1])


# -----------------------------------------------------------------------------
# Deterministic parameter init (PyTorch layouts; fresh-module BN gamma=1, beta=0)
# -----------------------------------------------------------------------------
def init_params(key):
    keys = iter(jax.random.split(key, 64))
    u = lambda shape, s=0.1: jax.random.uniform(next(keys), shape, jnp.float32, -s, s)

    def conv_branch(c_in):
        return dict(
            w1=u((C1, c_in, K1)), b1=u((C1,)),
            bn1_g=jnp.ones((C1,), jnp.float32), bn1_b=jnp.zeros((C1,), jnp.float32),
            w2=u((C2, C1, K2)), b2=u((C2,)),
            bn2_g=jnp.ones((C2,), jnp.float32), bn2_b=jnp.zeros((C2,), jnp.float32),
        )

    def gru_dir():
        return dict(w_ih=u((3 * H, C2)), w_hh=u((3 * H, H)),
                    b_ih=u((3 * H,)), b_hh=u((3 * H,)))

    return dict(
        conv_accel=conv_branch(C_ACC),
        conv_alphanum=conv_branch(C_ALP),
        rnn_accel=dict(fwd=gru_dir(), bwd=gru_dir()),
        rnn_alphanum=dict(fwd=gru_dir(), bwd=gru_dir()),
        lin1_w=u((40, 80)), lin1_b=u((40,)),       # nn.Linear(80, 40)
        lin2_w=u((1, 40)), lin2_b=u((1,)),         # nn.Linear(40, 1)
        # self.linear2 is only used when use_accel=False; this implements the default path.
        emb_alpha=u((NUM_USER, 1)), emb_beta=u((NUM_USER, 1)),
        emb_gamma=u((NUM_USER, 1)), emb_delta=u((NUM_USER, 1)),
    )


if __name__ == "__main__":
    key = jax.random.PRNGKey(0)
    kp, k1, k2, k3, k4 = jax.random.split(key, 5)
    params = init_params(kp)

    B, L = 2, 40                                   # conv1 -> 19, conv2 -> 8 (GRU seq len 8)
    alphanum = jax.random.normal(k1, (B, C_ALP, L), jnp.float32)
    accel = jax.random.normal(k2, (B, C_ACC, L), jnp.float32)
    timestamp = jax.random.uniform(k3, (B,), jnp.float32, 0.0, 10.0)
    users = jax.random.randint(k4, (B,), 0, NUM_USER)

    ops = build_kernel_operands(params, L, L)      # one-time host-side weight prep

    fwd = jax.jit(cnn_rnn_ef2_ps_forward)
    out = fwd(alphanum, accel, timestamp, users, params, ops)
    jax.block_until_ready(out)
    assert out.shape == (B,) and out.dtype == jnp.float32
    assert bool(jnp.all(jnp.isfinite(out)))
    print("KERNEL_OK")
</pallas_src>

<mosaic_0001>
module attributes {stable_mosaic.version = 11 : i64} {
  func.func @_fused_kernel(%arg0: memref<2x360xf32, #tpu.memory_space<vmem>>, %arg1: memref<360x380xbf16, #tpu.memory_space<vmem>>, %arg2: memref<1x380xf32, #tpu.memory_space<vmem>>, %arg3: memref<1x20xf32, #tpu.memory_space<vmem>>, %arg4: memref<1x20xf32, #tpu.memory_space<vmem>>, %arg5: memref<380x20xf32, #tpu.memory_space<vmem>>, %arg6: memref<20x380xf32, #tpu.memory_space<vmem>>, %arg7: memref<380x320xbf16, #tpu.memory_space<vmem>>, %arg8: memref<1x320xf32, #tpu.memory_space<vmem>>, %arg9: memref<1x40xf32, #tpu.memory_space<vmem>>, %arg10: memref<1x40xf32, #tpu.memory_space<vmem>>, %arg11: memref<320x40xf32, #tpu.memory_space<vmem>>, %arg12: memref<40x320xf32, #tpu.memory_space<vmem>>, %arg13: memref<80x384xbf16, #tpu.memory_space<vmem>>, %arg14: memref<1x384xf32, #tpu.memory_space<vmem>>, %arg15: memref<128x384xbf16, #tpu.memory_space<vmem>>, %arg16: memref<1x128xf32, #tpu.memory_space<vmem>>, %arg17: memref<128x40xbf16, #tpu.memory_space<vmem>>, %arg18: memref<1x40xf32, #tpu.memory_space<vmem>>, %arg19: memref<40x1xbf16, #tpu.memory_space<vmem>>, %arg20: memref<1x1xf32, #tpu.memory_space<vmem>>, %arg21: memref<2x1xf32, #tpu.memory_space<vmem>>, %arg22: memref<2x1xf32, #tpu.memory_space<vmem>>) attributes {dimension_semantics = [], scalar_prefetch = 0 : i64, scratch_operands = 0 : i64, tpu.core_type = #tpu.core_type<tc>} {
    %c0 = arith.constant 0 : index
    %c0_0 = arith.constant 0 : index
    %0 = vector.load %arg0[%c0, %c0_0] : memref<2x360xf32, #tpu.memory_space<vmem>>, vector<2x360xf32>
    %c0_1 = arith.constant 0 : index
    %c0_2 = arith.constant 0 : index
    %1 = vector.load %arg1[%c0_1, %c0_2] : memref<360x380xbf16, #tpu.memory_space<vmem>>, vector<360x380xbf16>
    %c0_3 = arith.constant 0 : index
    %c0_4 = arith.constant 0 : index
    %2 = vector.load %arg2[%c0_3, %c0_4] : memref<1x380xf32, #tpu.memory_space<vmem>>, vector<1x380xf32>
    %c0_5 = arith.constant 0 : index
    %c0_6 = arith.constant 0 : index
    %3 = vector.load %arg3[%c0_5, %c0_6] : memref<1x20xf32, #tpu.memory_space<vmem>>, vector<1x20xf32>
    %c0_7 = arith.constant 0 : index
    %c0_8 = arith.constant 0 : index
    %4 = vector.load %arg4[%c0_7, %c0_8] : memref<1x20xf32, #tpu.memory_space<vmem>>, vector<1x20xf32>
    %c0_9 = arith.constant 0 : index
    %c0_10 = arith.constant 0 : index
    %5 = vector.load %arg5[%c0_9, %c0_10] : memref<380x20xf32, #tpu.memory_space<vmem>>, vector<380x20xf32>
    %c0_11 = arith.constant 0 : index
    %c0_12 = arith.constant 0 : index
    %6 = vector.load %arg6[%c0_11, %c0_12] : memref<20x380xf32, #tpu.memory_space<vmem>>, vector<20x380xf32>
    %7 = arith.truncf %0 : vector<2x360xf32> to vector<2x360xbf16>
    %cst = arith.constant dense<0.000000e+00> : vector<2x380xf32>
    %8 = tpu.matmul %7, %1, %cst {dimension_numbers = #tpu.dot_dimension_numbers<[1], [0], [0], [1], [0, 0, 1, 1], [], []>} : vector<2x360xbf16>, vector<360x380xbf16>, vector<2x380xf32> -> vector<2x380xf32>
    %9 = vector.broadcast %2 : vector<1x380xf32> to vector<2x380xf32>
    %10 = arith.addf %8, %9 : vector<2x380xf32>
    %cst_13 = arith.constant dense<0.000000e+00> : vector<380xf32>
    %11 = vector.multi_reduction <add>, %10, %cst_13 [0] : vector<2x380xf32> to vector<380xf32>
    %12 = vector.shape_cast %11 : vector<380xf32> to vector<1x380xf32>
    %13 = arith.mulf %10, %10 : vector<2x380xf32>
    %cst_14 = arith.constant dense<0.000000e+00> : vector<380xf32>
    %14 = vector.multi_reduction <add>, %13, %cst_14 [0] : vector<2x380xf32> to vector<380xf32>
    %15 = vector.shape_cast %14 : vector<380xf32> to vector<1x380xf32>
    %16 = tpu.concatenate %12, %15 in 0 : vector<1x380xf32>, vector<1x380xf32> -> vector<2x380xf32>
    %cst_15 = arith.constant dense<0.000000e+00> : vector<2x20xf32>
    %17 = tpu.matmul %16, %5, %cst_15 {dimension_numbers = #tpu.dot_dimension_numbers<[1], [0], [0], [1], [0, 0, 1, 1], [], []>} : vector<2x380xf32>, vector<380x20xf32>, vector<2x20xf32> -> vector<2x20xf32>
    %18 = vector.extract_strided_slice %17 {offsets = [0, 0], sizes = [1, 20], strides = [1, 1]} : vector<2x20xf32> to vector<1x20xf32>
    %cst_16 = arith.constant 0.0263157897 : f32
    %19 = vector.broadcast %cst_16 : f32 to vector<1x20xf32>
    %20 = arith.mulf %18, %19 : vector<1x20xf32>
    %21 = vector.extract_strided_slice %17 {offsets = [1, 0], sizes = [1, 20], strides = [1, 1]} : vector<2x20xf32> to vector<1x20xf32>
    %cst_17 = arith.constant 0.0263157897 : f32
    %22 = vector.broadcast %cst_17 : f32 to vector<1x20xf32>
    %23 = arith.mulf %21, %22 : vector<1x20xf32>
    %24 = arith.mulf %20, %20 : vector<1x20xf32>
    %25 = arith.subf %23, %24 : vector<1x20xf32>
    %cst_18 = arith.constant 0.000000e+00 : f32
    %26 = vector.broadcast %cst_18 : f32 to vector<1x20xf32>
    %27 = arith.maximumf %25, %26 : vector<1x20xf32>
    %cst_19 = arith.constant 9.99999974E-6 : f32
    %28 = vector.broadcast %cst_19 : f32 to vector<1x20xf32>
    %29 = arith.addf %27, %28 : vector<1x20xf32>
    %30 = math.rsqrt %29 : vector<1x20xf32>
    %31 = arith.mulf %3, %30 : vector<1x20xf32>
    %32 = arith.mulf %20, %31 : vector<1x20xf32>
    %33 = arith.subf %4, %32 : vector<1x20xf32>
    %34 = tpu.concatenate %31, %33 in 0 : vector<1x20xf32>, vector<1x20xf32> -> vector<2x20xf32>
    %cst_20 = arith.constant dense<0.000000e+00> : vector<2x380xf32>
    %35 = tpu.matmul %34, %6, %cst_20 {dimension_numbers = #tpu.dot_dimension_numbers<[1], [0], [0], [1], [0, 0, 1, 1], [], []>} : vector<2x20xf32>, vector<20x380xf32>, vector<2x380xf32> -> vector<2x380xf32>
    %36 = vector.extract_strided_slice %35 {offsets = [0, 0], sizes = [1, 380], strides = [1, 1]} : vector<2x380xf32> to vector<1x380xf32>
    %37 = vector.broadcast %36 : vector<1x380xf32> to vector<2x380xf32>
    %38 = arith.mulf %10, %37 : vector<2x380xf32>
    %39 = vector.extract_strided_slice %35 {offsets = [1, 0], sizes = [1, 380], strides = [1, 1]} : vector<2x380xf32> to vector<1x380xf32>
    %40 = vector.broadcast %39 : vector<1x380xf32> to vector<2x380xf32>
    %41 = arith.addf %38, %40 : vector<2x380xf32>
    %cst_21 = arith.constant 0.000000e+00 : f32
    %42 = vector.broadcast %cst_21 : f32 to vector<2x380xf32>
    %43 = arith.maximumf %41, %42 : vector<2x380xf32>
    %c0_22 = arith.constant 0 : index
    %c0_23 = arith.constant 0 : index
    %44 = vector.load %arg7[%c0_22, %c0_23] : memref<380x320xbf16, #tpu.memory_space<vmem>>, vector<380x320xbf16>
    %c0_24 = arith.constant 0 : index
    %c0_25 = arith.constant 0 : index
    %45 = vector.load %arg8[%c0_24, %c0_25] : memref<1x320xf32, #tpu.memory_space<vmem>>, vector<1x320xf32>
    %c0_26 = arith.constant 0 : index
    %c0_27 = arith.constant 0 : index
    %46 = vector.load %arg9[%c0_26, %c0_27] : memref<1x40xf32, #tpu.memory_space<vmem>>, vector<1x40xf32>
    %c0_28 = arith.constant 0 : index
    %c0_29 = arith.constant 0 : index
    %47 = vector.load %arg10[%c0_28, %c0_29] : memref<1x40xf32, #tpu.memory_space<vmem>>, vector<1x40xf32>
    %c0_30 = arith.constant 0 : index
    %c0_31 = arith.constant 0 : index
    %48 = vector.load %arg11[%c0_30, %c0_31] : memref<320x40xf32, #tpu.memory_space<vmem>>, vector<320x40xf32>
    %c0_32 = arith.constant 0 : index
    %c0_33 = arith.constant 0 : index
    %49 = vector.load %arg12[%c0_32, %c0_33] : memref<40x320xf32, #tpu.memory_space<vmem>>, vector<40x320xf32>
    %50 = arith.truncf %43 : vector<2x380xf32> to vector<2x380xbf16>
    %cst_34 = arith.constant dense<0.000000e+00> : vector<2x320xf32>
    %51 = tpu.matmul %50, %44, %cst_34 {dimension_numbers = #tpu.dot_dimension_numbers<[1], [0], [0], [1], [0, 0, 1, 1], [], []>} : vector<2x380xbf16>, vector<380x320xbf16>, vector<2x320xf32> -> vector<2x320xf32>
    %52 = vector.broadcast %45 : vector<1x320xf32> to vector<2x320xf32>
    %53 = arith.addf %51, %52 : vector<2x320xf32>
    %cst_35 = arith.constant dense<0.000000e+00> : vector<320xf32>
    %54 = vector.multi_reduction <add>, %53, %cst_35 [0] : vector<2x320xf32> to vector<320xf32>
    %55 = vector.shape_cast %54 : vector<320xf32> to vector<1x320xf32>
    %56 = arith.mulf %53, %53 : vector<2x320xf32>
    %cst_36 = arith.constant dense<0.000000e+00> : vector<320xf32>
    %57 = vector.multi_reduction <add>, %56, %cst_36 [0] : vector<2x320xf32> to vector<320xf32>
    %58 = vector.shape_cast %57 : vector<320xf32> to vector<1x320xf32>
    %59 = tpu.concatenate %55, %58 in 0 : vector<1x320xf32>, vector<1x320xf32> -> vector<2x320xf32>
    %cst_37 = arith.constant dense<0.000000e+00> : vector<2x40xf32>
    %60 = tpu.matmul %59, %48, %cst_37 {dimension_numbers = #tpu.dot_dimension_numbers<[1], [0], [0], [1], [0, 0, 1, 1], [], []>} : vector<2x320xf32>, vector<320x40xf32>, vector<2x40xf32> -> vector<2x40xf32>
    %61 = vector.extract_strided_slice %60 {offsets = [0, 0], sizes = [1, 40], strides = [1, 1]} : vector<2x40xf32> to vector<1x40xf32>
    %cst_38 = arith.constant 6.250000e-02 : f32
    %62 = vector.broadcast %cst_38 : f32 to vector<1x40xf32>
    %63 = arith.mulf %61, %62 : vector<1x40xf32>
    %64 = vector.extract_strided_slice %60 {offsets = [1, 0], sizes = [1, 40], strides = [1, 1]} : vector<2x40xf32> to vector<1x40xf32>
    %cst_39 = arith.constant 6.250000e-02 : f32
    %65 = vector.broadcast %cst_39 : f32 to vector<1x40xf32>
    %66 = arith.mulf %64, %65 : vector<1x40xf32>
    %67 = arith.mulf %63, %63 : vector<1x40xf32>
    %68 = arith.subf %66, %67 : vector<1x40xf32>
    %cst_40 = arith.constant 0.000000e+00 : f32
    %69 = vector.broadcast %cst_40 : f32 to vector<1x40xf32>
    %70 = arith.maximumf %68, %69 : vector<1x40xf32>
    %cst_41 = arith.constant 9.99999974E-6 : f32
    %71 = vector.broadcast %cst_41 : f32 to vector<1x40xf32>
    %72 = arith.addf %70, %71 : vector<1x40xf32>
    %73 = math.rsqrt %72 : vector<1x40xf32>
    %74 = arith.mulf %46, %73 : vector<1x40xf32>
    %75 = arith.mulf %63, %74 : vector<1x40xf32>
    %76 = arith.subf %47, %75 : vector<1x40xf32>
    %77 = tpu.concatenate %74, %76 in 0 : vector<1x40xf32>, vector<1x40xf32> -> vector<2x40xf32>
    %cst_42 = arith.constant dense<0.000000e+00> : vector<2x320xf32>
    %78 = tpu.matmul %77, %49, %cst_42 {dimension_numbers = #tpu.dot_dimension_numbers<[1], [0], [0], [1], [0, 0, 1, 1], [], []>} : vector<2x40xf32>, vector<40x320xf32>, vector<2x320xf32> -> vector<2x320xf32>
    %79 = vector.extract_strided_slice %78 {offsets = [0, 0], sizes = [1, 320], strides = [1, 1]} : vector<2x320xf32> to vector<1x320xf32>
    %80 = vector.broadcast %79 : vector<1x320xf32> to vector<2x320xf32>
    %81 = arith.mulf %53, %80 : vector<2x320xf32>
    %82 = vector.extract_strided_slice %78 {offsets = [1, 0], sizes = [1, 320], strides = [1, 1]} : vector<2x320xf32> to vector<1x320xf32>
    %83 = vector.broadcast %82 : vector<1x320xf32> to vector<2x320xf32>
    %84 = arith.addf %81, %83 : vector<2x320xf32>
    %cst_43 = arith.constant 0.000000e+00 : f32
    %85 = vector.broadcast %cst_43 : f32 to vector<2x320xf32>
    %86 = arith.maximumf %84, %85 : vector<2x320xf32>
    %c0_44 = arith.constant 0 : index
    %c0_45 = arith.constant 0 : index
    %87 = vector.load %arg13[%c0_44, %c0_45] : memref<80x384xbf16, #tpu.memory_space<vmem>>, vector<80x384xbf16>
    %c0_46 = arith.constant 0 : index
    %c0_47 = arith.constant 0 : index
    %88 = vector.load %arg15[%c0_46, %c0_47] : memref<128x384xbf16, #tpu.memory_space<vmem>>, vector<128x384xbf16>
    %c0_48 = arith.constant 0 : index
    %c0_49 = arith.constant 0 : index
    %89 = vector.load %arg14[%c0_48, %c0_49] : memref<1x384xf32, #tpu.memory_space<vmem>>, vector<1x384xf32>
    %c0_50 = arith.constant 0 : index
    %c0_51 = arith.constant 0 : index
    %90 = vector.load %arg16[%c0_50, %c0_51] : memref<1x128xf32, #tpu.memory_space<vmem>>, vector<1x128xf32>
    %cst_52 = arith.constant 0.000000e+00 : f32
    %91 = vector.broadcast %cst_52 : f32 to vector<2x128xf32>
    %92 = vector.extract_strided_slice %86 {offsets = [0, 0], sizes = [2, 40], strides = [1, 1]} : vector<2x320xf32> to vector<2x40xf32>
    %93 = vector.extract_strided_slice %86 {offsets = [0, 280], sizes = [2, 40], strides = [1, 1]} : vector<2x320xf32> to vector<2x40xf32>
    %94 = tpu.concatenate %92, %93 in 1 : vector<2x40xf32>, vector<2x40xf32> -> vector<2x80xf32>
    %95 = arith.truncf %94 : vector<2x80xf32> to vector<2x80xbf16>
    %cst_53 = arith.constant dense<0.000000e+00> : vector<2x384xf32>
    %96 = tpu.matmul %95, %87, %cst_53 {dimension_numbers = #tpu.dot_dimension_numbers<[1], [0], [0], [1], [0, 0, 1, 1], [], []>} : vector<2x80xbf16>, vector<80x384xbf16>, vector<2x384xf32> -> vector<2x384xf32>
    %97 = vector.broadcast %89 : vector<1x384xf32> to vector<2x384xf32>
    %98 = arith.addf %96, %97 : vector<2x384xf32>
    %99 = arith.truncf %91 : vector<2x128xf32> to vector<2x128xbf16>
    %cst_54 = arith.constant dense<0.000000e+00> : vector<2x384xf32>
    %100 = tpu.matmul %99, %88, %cst_54 {dimension_numbers = #tpu.dot_dimension_numbers<[1], [0], [0], [1], [0, 0, 1, 1], [], []>} : vector<2x128xbf16>, vector<128x384xbf16>, vector<2x384xf32> -> vector<2x384xf32>
    %101 = vector.extract_strided_slice %98 {offsets = [0, 0], sizes = [2, 128], strides = [1, 1]} : vector<2x384xf32> to vector<2x128xf32>
    %102 = vector.extract_strided_slice %100 {offsets = [0, 0], sizes = [2, 128], strides = [1, 1]} : vector<2x384xf32> to vector<2x128xf32>
    %103 = arith.addf %101, %102 : vector<2x128xf32>
    %104 = arith.negf %103 : vector<2x128xf32>
    %105 = math.exp %104 : vector<2x128xf32>
    %cst_55 = arith.constant 1.000000e+00 : f32
    %106 = vector.broadcast %cst_55 : f32 to vector<2x128xf32>
    %107 = arith.addf %106, %105 : vector<2x128xf32>
    %108 = arith.divf %106, %107 : vector<2x128xf32>
    %109 = vector.extract_strided_slice %98 {offsets = [0, 128], sizes = [2, 128], strides = [1, 1]} : vector<2x384xf32> to vector<2x128xf32>
    %110 = vector.extract_strided_slice %100 {offsets = [0, 128], sizes = [2, 128], strides = [1, 1]} : vector<2x384xf32> to vector<2x128xf32>
    %111 = arith.addf %109, %110 : vector<2x128xf32>
    %112 = arith.negf %111 : vector<2x128xf32>
    %113 = math.exp %112 : vector<2x128xf32>
    %cst_56 = arith.constant 1.000000e+00 : f32
    %114 = vector.broadcast %cst_56 : f32 to vector<2x128xf32>
    %115 = arith.addf %114, %113 : vector<2x128xf32>
    %116 = arith.divf %114, %115 : vector<2x128xf32>
    %117 = vector.extract_strided_slice %98 {offsets = [0, 256], sizes = [2, 128], strides = [1, 1]} : vector<2x384xf32> to vector<2x128xf32>
    %118 = vector.extract_strided_slice %100 {offsets = [0, 256], sizes = [2, 128], strides = [1, 1]} : vector<2x384xf32> to vector<2x128xf32>
    %119 = vector.broadcast %90 : vector<1x128xf32> to vector<2x128xf32>
    %120 = arith.addf %118, %119 : vector<2x128xf32>
    %121 = arith.mulf %108, %120 : vector<2x128xf32>
    %122 = arith.addf %117, %121 : vector<2x128xf32>
    %123 = math.tanh %122 : vector<2x128xf32>
    %cst_57 = arith.constant 1.000000e+00 : f32
    %124 = vector.broadcast %cst_57 : f32 to vector<2x128xf32>
    %125 = arith.subf %124, %116 : vector<2x128xf32>
    %126 = arith.mulf %125, %123 : vector<2x128xf32>
    %127 = arith.mulf %116, %91 : vector<2x128xf32>
    %128 = arith.addf %126, %127 : vector<2x128xf32>
    %129 = vector.extract_strided_slice %86 {offsets = [0, 40], sizes = [2, 40], strides = [1, 1]} : vector<2x320xf32> to vector<2x40xf32>
    %130 = vector.extract_strided_slice %86 {offsets = [0, 240], sizes = [2, 40], strides = [1, 1]} : vector<2x320xf32> to vector<2x40xf32>
    %131 = tpu.concatenate %129, %130 in 1 : vector<2x40xf32>, vector<2x40xf32> -> vector<2x80xf32>
    %132 = arith.truncf %131 : vector<2x80xf32> to vector<2x80xbf16>
    %cst_58 = arith.constant dense<0.000000e+00> : vector<2x384xf32>
    %133 = tpu.matmul %132, %87, %cst_58 {dimension_numbers = #tpu.dot_dimension_numbers<[1], [0], [0], [1], [0, 0, 1, 1], [], []>} : vector<2x80xbf16>, vector<80x384xbf16>, vector<2x384xf32> -> vector<2x384xf32>
    %134 = vector.broadcast %89 : vector<1x384xf32> to vector<2x384xf32>
    %135 = arith.addf %133, %134 : vector<2x384xf32>
    %136 = arith.truncf %128 : vector<2x128xf32> to vector<2x128xbf16>
    %cst_59 = arith.constant dense<0.000000e+00> : vector<2x384xf32>
    %137 = tpu.matmul %136, %88, %cst_59 {dimension_numbers = #tpu.dot_dimension_numbers<[1], [0], [0], [1], [0, 0, 1, 1], [], []>} : vector<2x128xbf16>, vector<128x384xbf16>, vector<2x384xf32> -> vector<2x384xf32>
    %138 = vector.extract_strided_slice %135 {offsets = [0, 0], sizes = [2, 128], strides = [1, 1]} : vector<2x384xf32> to vector<2x128xf32>
    %139 = vector.extract_strided_slice %137 {offsets = [0, 0], sizes = [2, 128], strides = [1, 1]} : vector<2x384xf32> to vector<2x128xf32>
    %140 = arith.addf %138, %139 : vector<2x128xf32>
    %141 = arith.negf %140 : vector<2x128xf32>
    %142 = math.exp %141 : vector<2x128xf32>
    %cst_60 = arith.constant 1.000000e+00 : f32
    %143 = vector.broadcast %cst_60 : f32 to vector<2x128xf32>
    %144 = arith.addf %143, %142 : vector<2x128xf32>
    %145 = arith.divf %143, %144 : vector<2x128xf32>
    %146 = vector.extract_strided_slice %135 {offsets = [0, 128], sizes = [2, 128], strides = [1, 1]} : vector<2x384xf32> to vector<2x128xf32>
    %147 = vector.extract_strided_slice %137 {offsets = [0, 128], sizes = [2, 128], strides = [1, 1]} : vector<2x384xf32> to vector<2x128xf32>
    %148 = arith.addf %146, %147 : vector<2x128xf32>
    %149 = arith.negf %148 : vector<2x128xf32>
    %150 = math.exp %149 : vector<2x128xf32>
    %cst_61 = arith.constant 1.000000e+00 : f32
    %151 = vector.broadcast %cst_61 : f32 to vector<2x128xf32>
    %152 = arith.addf %151, %150 : vector<2x128xf32>
    %153 = arith.divf %151, %152 : vector<2x128xf32>
    %154 = vector.extract_strided_slice %135 {offsets = [0, 256], sizes = [2, 128], strides = [1, 1]} : vector<2x384xf32> to vector<2x128xf32>
    %155 = vector.extract_strided_slice %137 {offsets = [0, 256], sizes = [2, 128], strides = [1, 1]} : vector<2x384xf32> to vector<2x128xf32>
    %156 = vector.broadcast %90 : vector<1x128xf32> to vector<2x128xf32>
    %157 = arith.addf %155, %156 : vector<2x128xf32>
    %158 = arith.mulf %145, %157 : vector<2x128xf32>
    %159 = arith.addf %154, %158 : vector<2x128xf32>
    %160 = math.tanh %159 : vector<2x128xf32>
    %cst_62 = arith.constant 1.000000e+00 : f32
    %161 = vector.broadcast %cst_62 : f32 to vector<2x128xf32>
    %162 = arith.subf %161, %153 : vector<2x128xf32>
    %163 = arith.mulf %162, %160 : vector<2x128xf32>
    %164 = arith.mulf %153, %128 : vector<2x128xf32>
    %165 = arith.addf %163, %164 : vector<2x128xf32>
    %166 = vector.extract_strided_slice %86 {offsets = [0, 80], sizes = [2, 40], strides = [1, 1]} : vector<2x320xf32> to vector<2x40xf32>
    %167 = vector.extract_strided_slice %86 {offsets = [0, 200], sizes = [2, 40], strides = [1, 1]} : vector<2x320xf32> to vector<2x40xf32>
    %168 = tpu.concatenate %166, %167 in 1 : vector<2x40xf32>, vector<2x40xf32> -> vector<2x80xf32>
    %169 = arith.truncf %168 : vector<2x80xf32> to vector<2x80xbf16>
    %cst_63 = arith.constant dense<0.000000e+00> : vector<2x384xf32>
    %170 = tpu.matmul %169, %87, %cst_63 {dimension_numbers = #tpu.dot_dimension_numbers<[1], [0], [0], [1], [0, 0, 1, 1], [], []>} : vector<2x80xbf16>, vector<80x384xbf16>, vector<2x384xf32> -> vector<2x384xf32>
    %171 = vector.broadcast %89 : vector<1x384xf32> to vector<2x384xf32>
    %172 = arith.addf %170, %171 : vector<2x384xf32>
    %173 = arith.truncf %165 : vector<2x128xf32> to vector<2x128xbf16>
    %cst_64 = arith.constant dense<0.000000e+00> : vector<2x384xf32>
    %174 = tpu.matmul %173, %88, %cst_64 {dimension_numbers = #tpu.dot_dimension_numbers<[1], [0], [0], [1], [0, 0, 1, 1], [], []>} : vector<2x128xbf16>, vector<128x384xbf16>, vector<2x384xf32> -> vector<2x384xf32>
    %175 = vector.extract_strided_slice %172 {offsets = [0, 0], sizes = [2, 128], strides = [1, 1]} : vector<2x384xf32> to vector<2x128xf32>
    %176 = vector.extract_strided_slice %174 {offsets = [0, 0], sizes = [2, 128], strides = [1, 1]} : vector<2x384xf32> to vector<2x128xf32>
    %177 = arith.addf %175, %176 : vector<2x128xf32>
    %178 = arith.negf %177 : vector<2x128xf32>
    %179 = math.exp %178 : vector<2x128xf32>
    %cst_65 = arith.constant 1.000000e+00 : f32
    %180 = vector.broadcast %cst_65 : f32 to vector<2x128xf32>
    %181 = arith.addf %180, %179 : vector<2x128xf32>
    %182 = arith.divf %180, %181 : vector<2x128xf32>
    %183 = vector.extract_strided_slice %172 {offsets = [0, 128], sizes = [2, 128], strides = [1, 1]} : vector<2x384xf32> to vector<2x128xf32>
    %184 = vector.extract_strided_slice %174 {offsets = [0, 128], sizes = [2, 128], strides = [1, 1]} : vector<2x384xf32> to vector<2x128xf32>
    %185 = arith.addf %183, %184 : vector<2x128xf32>
    %186 = arith.negf %185 : vector<2x128xf32>
    %187 = math.exp %186 : vector<2x128xf32>
    %cst_66 = arith.constant 1.000000e+00 : f32
    %188 = vector.broadcast %cst_66 : f32 to vector<2x128xf32>
    %189 = arith.addf %188, %187 : vector<2x128xf32>
    %190 = arith.divf %188, %189 : vector<2x128xf32>
    %191 = vector.extract_strided_slice %172 {offsets = [0, 256], sizes = [2, 128], strides = [1, 1]} : vector<2x384xf32> to vector<2x128xf32>
    %192 = vector.extract_strided_slice %174 {offsets = [0, 256], sizes = [2, 128], strides = [1, 1]} : vector<2x384xf32> to vector<2x128xf32>
    %193 = vector.broadcast %90 : vector<1x128xf32> to vector<2x128xf32>
    %194 = arith.addf %192, %193 : vector<2x128xf32>
    %195 = arith.mulf %182, %194 : vector<2x128xf32>
    %196 = arith.addf %191, %195 : vector<2x128xf32>
    %197 = math.tanh %196 : vector<2x128xf32>
    %cst_67 = arith.constant 1.000000e+00 : f32
    %198 = vector.broadcast %cst_67 : f32 to vector<2x128xf32>
    %199 = arith.subf %198, %190 : vector<2x128xf32>
    %200 = arith.mulf %199, %197 : vector<2x128xf32>
    %201 = arith.mulf %190, %165 : vector<2x128xf32>
    %202 = arith.addf %200, %201 : vector<2x128xf32>
    %203 = vector.extract_strided_slice %86 {offsets = [0, 120], sizes = [2, 40], strides = [1, 1]} : vector<2x320xf32> to vector<2x40xf32>
    %204 = vector.extract_strided_slice %86 {offsets = [0, 160], sizes = [2, 40], strides = [1, 1]} : vector<2x320xf32> to vector<2x40xf32>
    %205 = tpu.concatenate %203, %204 in 1 : vector<2x40xf32>, vector<2x40xf32> -> vector<2x80xf32>
    %206 = arith.truncf %205 : vector<2x80xf32> to vector<2x80xbf16>
    %cst_68 = arith.constant dense<0.000000e+00> : vector<2x384xf32>
    %207 = tpu.matmul %206, %87, %cst_68 {dimension_numbers = #tpu.dot_dimension_numbers<[1], [0], [0], [1], [0, 0, 1, 1], [], []>} : vector<2x80xbf16>, vector<80x384xbf16>, vector<2x384xf32> -> vector<2x384xf32>
    %208 = vector.broadcast %89 : vector<1x384xf32> to vector<2x384xf32>
    %209 = arith.addf %207, %208 : vector<2x384xf32>
    %210 = arith.truncf %202 : vector<2x128xf32> to vector<2x128xbf16>
    %cst_69 = arith.constant dense<0.000000e+00> : vector<2x384xf32>
    %211 = tpu.matmul %210, %88, %cst_69 {dimension_numbers = #tpu.dot_dimension_numbers<[1], [0], [0], [1], [0, 0, 1, 1], [], []>} : vector<2x128xbf16>, vector<128x384xbf16>, vector<2x384xf32> -> vector<2x384xf32>
    %212 = vector.extract_strided_slice %209 {offsets = [0, 0], sizes = [2, 128], strides = [1, 1]} : vector<2x384xf32> to vector<2x128xf32>
    %213 = vector.extract_strided_slice %211 {offsets = [0, 0], sizes = [2, 128], strides = [1, 1]} : vector<2x384xf32> to vector<2x128xf32>
    %214 = arith.addf %212, %213 : vector<2x128xf32>
    %215 = arith.negf %214 : vector<2x128xf32>
    %216 = math.exp %215 : vector<2x128xf32>
    %cst_70 = arith.constant 1.000000e+00 : f32
    %217 = vector.broadcast %cst_70 : f32 to vector<2x128xf32>
    %218 = arith.addf %217, %216 : vector<2x128xf32>
    %219 = arith.divf %217, %218 : vector<2x128xf32>
    %220 = vector.extract_strided_slice %209 {offsets = [0, 128], sizes = [2, 128], strides = [1, 1]} : vector<2x384xf32> to vector<2x128xf32>
    %221 = vector.extract_strided_slice %211 {offsets = [0, 128], sizes = [2, 128], strides = [1, 1]} : vector<2x384xf32> to vector<2x128xf32>
    %222 = arith.addf %220, %221 : vector<2x128xf32>
    %223 = arith.negf %222 : vector<2x128xf32>
    %224 = math.exp %223 : vector<2x128xf32>
    %cst_71 = arith.constant 1.000000e+00 : f32
    %225 = vector.broadcast %cst_71 : f32 to vector<2x128xf32>
    %226 = arith.addf %225, %224 : vector<2x128xf32>
    %227 = arith.divf %225, %226 : vector<2x128xf32>
    %228 = vector.extract_strided_slice %209 {offsets = [0, 256], sizes = [2, 128], strides = [1, 1]} : vector<2x384xf32> to vector<2x128xf32>
    %229 = vector.extract_strided_slice %211 {offsets = [0, 256], sizes = [2, 128], strides = [1, 1]} : vector<2x384xf32> to vector<2x128xf32>
    %230 = vector.broadcast %90 : vector<1x128xf32> to vector<2x128xf32>
    %231 = arith.addf %229, %230 : vector<2x128xf32>
    %232 = arith.mulf %219, %231 : vector<2x128xf32>
    %233 = arith.addf %228, %232 : vector<2x128xf32>
    %234 = math.tanh %233 : vector<2x128xf32>
    %cst_72 = arith.constant 1.000000e+00 : f32
    %235 = vector.broadcast %cst_72 : f32 to vector<2x128xf32>
    %236 = arith.subf %235, %227 : vector<2x128xf32>
    %237 = arith.mulf %236, %234 : vector<2x128xf32>
    %238 = arith.mulf %227, %202 : vector<2x128xf32>
    %239 = arith.addf %237, %238 : vector<2x128xf32>
    %240 = vector.extract_strided_slice %86 {offsets = [0, 160], sizes = [2, 40], strides = [1, 1]} : vector<2x320xf32> to vector<2x40xf32>
    %241 = vector.extract_strided_slice %86 {offsets = [0, 120], sizes = [2, 40], strides = [1, 1]} : vector<2x320xf32> to vector<2x40xf32>
    %242 = tpu.concatenate %240, %241 in 1 : vector<2x40xf32>, vector<2x40xf32> -> vector<2x80xf32>
    %243 = arith.truncf %242 : vector<2x80xf32> to vector<2x80xbf16>
    %cst_73 = arith.constant dense<0.000000e+00> : vector<2x384xf32>
    %244 = tpu.matmul %243, %87, %cst_73 {dimension_numbers = #tpu.dot_dimension_numbers<[1], [0], [0], [1], [0, 0, 1, 1], [], []>} : vector<2x80xbf16>, vector<80x384xbf16>, vector<2x384xf32> -> vector<2x384xf32>
    %245 = vector.broadcast %89 : vector<1x384xf32> to vector<2x384xf32>
    %246 = arith.addf %244, %245 : vector<2x384xf32>
    %247 = arith.truncf %239 : vector<2x128xf32> to vector<2x128xbf16>
    %cst_74 = arith.constant dense<0.000000e+00> : vector<2x384xf32>
    %248 = tpu.matmul %247, %88, %cst_74 {dimension_numbers = #tpu.dot_dimension_numbers<[1], [0], [0], [1], [0, 0, 1, 1], [], []>} : vector<2x128xbf16>, vector<128x384xbf16>, vector<2x384xf32> -> vector<2x384xf32>
    %249 = vector.extract_strided_slice %246 {offsets = [0, 0], sizes = [2, 128], strides = [1, 1]} : vector<2x384xf32> to vector<2x128xf32>
    %250 = vector.extract_strided_slice %248 {offsets = [0, 0], sizes = [2, 128], strides = [1, 1]} : vector<2x384xf32> to vector<2x128xf32>
    %251 = arith.addf %249, %250 : vector<2x128xf32>
    %252 = arith.negf %251 : vector<2x128xf32>
    %253 = math.exp %252 : vector<2x128xf32>
    %cst_75 = arith.constant 1.000000e+00 : f32
    %254 = vector.broadcast %cst_75 : f32 to vector<2x128xf32>
    %255 = arith.addf %254, %253 : vector<2x128xf32>
    %256 = arith.divf %254, %255 : vector<2x128xf32>
    %257 = vector.extract_strided_slice %246 {offsets = [0, 128], sizes = [2, 128], strides = [1, 1]} : vector<2x384xf32> to vector<2x128xf32>
    %258 = vector.extract_strided_slice %248 {offsets = [0, 128], sizes = [2, 128], strides = [1, 1]} : vector<2x384xf32> to vector<2x128xf32>
    %259 = arith.addf %257, %258 : vector<2x128xf32>
    %260 = arith.negf %259 : vector<2x128xf32>
    %261 = math.exp %260 : vector<2x128xf32>
    %cst_76 = arith.constant 1.000000e+00 : f32
    %262 = vector.broadcast %cst_76 : f32 to vector<2x128xf32>
    %263 = arith.addf %262, %261 : vector<2x128xf32>
    %264 = arith.divf %262, %263 : vector<2x128xf32>
    %265 = vector.extract_strided_slice %246 {offsets = [0, 256], sizes = [2, 128], strides = [1, 1]} : vector<2x384xf32> to vector<2x128xf32>
    %266 = vector.extract_strided_slice %248 {offsets = [0, 256], sizes = [2, 128], strides = [1, 1]} : vector<2x384xf32> to vector<2x128xf32>
    %267 = vector.broadcast %90 : vector<1x128xf32> to vector<2x128xf32>
    %268 = arith.addf %266, %267 : vector<2x128xf32>
    %269 = arith.mulf %256, %268 : vector<2x128xf32>
    %270 = arith.addf %265, %269 : vector<2x128xf32>
    %271 = math.tanh %270 : vector<2x128xf32>
    %cst_77 = arith.constant 1.000000e+00 : f32
    %272 = vector.broadcast %cst_77 : f32 to vector<2x128xf32>
    %273 = arith.subf %272, %264 : vector<2x128xf32>
    %274 = arith.mulf %273, %271 : vector<2x128xf32>
    %275 = arith.mulf %264, %239 : vector<2x128xf32>
    %276 = arith.addf %274, %275 : vector<2x128xf32>
    %277 = vector.extract_strided_slice %86 {offsets = [0, 200], sizes = [2, 40], strides = [1, 1]} : vector<2x320xf32> to vector<2x40xf32>
    %278 = vector.extract_strided_slice %86 {offsets = [0, 80], sizes = [2, 40], strides = [1, 1]} : vector<2x320xf32> to vector<2x40xf32>
    %279 = tpu.concatenate %277, %278 in 1 : vector<2x40xf32>, vector<2x40xf32> -> vector<2x80xf32>
    %280 = arith.truncf %279 : vector<2x80xf32> to vector<2x80xbf16>
    %cst_78 = arith.constant dense<0.000000e+00> : vector<2x384xf32>
    %281 = tpu.matmul %280, %87, %cst_78 {dimension_numbers = #tpu.dot_dimension_numbers<[1], [0], [0], [1], [0, 0, 1, 1], [], []>} : vector<2x80xbf16>, vector<80x384xbf16>, vector<2x384xf32> -> vector<2x384xf32>
    %282 = vector.broadcast %89 : vector<1x384xf32> to vector<2x384xf32>
    %283 = arith.addf %281, %282 : vector<2x384xf32>
    %284 = arith.truncf %276 : vector<2x128xf32> to vector<2x128xbf16>
    %cst_79 = arith.constant dense<0.000000e+00> : vector<2x384xf32>
    %285 = tpu.matmul %284, %88, %cst_79 {dimension_numbers = #tpu.dot_dimension_numbers<[1], [0], [0], [1], [0, 0, 1, 1], [], []>} : vector<2x128xbf16>, vector<128x384xbf16>, vector<2x384xf32> -> vector<2x384xf32>
    %286 = vector.extract_strided_slice %283 {offsets = [0, 0], sizes = [2, 128], strides = [1, 1]} : vector<2x384xf32> to vector<2x128xf32>
    %287 = vector.extract_strided_slice %285 {offsets = [0, 0], sizes = [2, 128], strides = [1, 1]} : vector<2x384xf32> to vector<2x128xf32>
    %288 = arith.addf %286, %287 : vector<2x128xf32>
    %289 = arith.negf %288 : vector<2x128xf32>
    %290 = math.exp %289 : vector<2x128xf32>
    %cst_80 = arith.constant 1.000000e+00 : f32
    %291 = vector.broadcast %cst_80 : f32 to vector<2x128xf32>
    %292 = arith.addf %291, %290 : vector<2x128xf32>
    %293 = arith.divf %291, %292 : vector<2x128xf32>
    %294 = vector.extract_strided_slice %283 {offsets = [0, 128], sizes = [2, 128], strides = [1, 1]} : vector<2x384xf32> to vector<2x128xf32>
    %295 = vector.extract_strided_slice %285 {offsets = [0, 128], sizes = [2, 128], strides = [1, 1]} : vector<2x384xf32> to vector<2x128xf32>
    %296 = arith.addf %294, %295 : vector<2x128xf32>
    %297 = arith.negf %296 : vector<2x128xf32>
    %298 = math.exp %297 : vector<2x128xf32>
    %cst_81 = arith.constant 1.000000e+00 : f32
    %299 = vector.broadcast %cst_81 : f32 to vector<2x128xf32>
    %300 = arith.addf %299, %298 : vector<2x128xf32>
    %301 = arith.divf %299, %300 : vector<2x128xf32>
    %302 = vector.extract_strided_slice %283 {offsets = [0, 256], sizes = [2, 128], strides = [1, 1]} : vector<2x384xf32> to vector<2x128xf32>
    %303 = vector.extract_strided_slice %285 {offsets = [0, 256], sizes = [2, 128], strides = [1, 1]} : vector<2x384xf32> to vector<2x128xf32>
    %304 = vector.broadcast %90 : vector<1x128xf32> to vector<2x128xf32>
    %305 = arith.addf %303, %304 : vector<2x128xf32>
    %306 = arith.mulf %293, %305 : vector<2x128xf32>
    %307 = arith.addf %302, %306 : vector<2x128xf32>
    %308 = math.tanh %307 : vector<2x128xf32>
    %cst_82 = arith.constant 1.000000e+00 : f32
    %309 = vector.broadcast %cst_82 : f32 to vector<2x128xf32>
    %310 = arith.subf %309, %301 : vector<2x128xf32>
    %311 = arith.mulf %310, %308 : vector<2x128xf32>
    %312 = arith.mulf %301, %276 : vector<2x128xf32>
    %313 = arith.addf %311, %312 : vector<2x128xf32>
    %314 = vector.extract_strided_slice %86 {offsets = [0, 240], sizes = [2, 40], strides = [1, 1]} : vector<2x320xf32> to vector<2x40xf32>
    %315 = vector.extract_strided_slice %86 {offsets = [0, 40], sizes = [2, 40], strides = [1, 1]} : vector<2x320xf32> to vector<2x40xf32>
    %316 = tpu.concatenate %314, %315 in 1 : vector<2x40xf32>, vector<2x40xf32> -> vector<2x80xf32>
    %317 = arith.truncf %316 : vector<2x80xf32> to vector<2x80xbf16>
    %cst_83 = arith.constant dense<0.000000e+00> : vector<2x384xf32>
    %318 = tpu.matmul %317, %87, %cst_83 {dimension_numbers = #tpu.dot_dimension_numbers<[1], [0], [0], [1], [0, 0, 1, 1], [], []>} : vector<2x80xbf16>, vector<80x384xbf16>, vector<2x384xf32> -> vector<2x384xf32>
    %319 = vector.broadcast %89 : vector<1x384xf32> to vector<2x384xf32>
    %320 = arith.addf %318, %319 : vector<2x384xf32>
    %321 = arith.truncf %313 : vector<2x128xf32> to vector<2x128xbf16>
    %cst_84 = arith.constant dense<0.000000e+00> : vector<2x384xf32>
    %322 = tpu.matmul %321, %88, %cst_84 {dimension_numbers = #tpu.dot_dimension_numbers<[1], [0], [0], [1], [0, 0, 1, 1], [], []>} : vector<2x128xbf16>, vector<128x384xbf16>, vector<2x384xf32> -> vector<2x384xf32>
    %323 = vector.extract_strided_slice %320 {offsets = [0, 0], sizes = [2, 128], strides = [1, 1]} : vector<2x384xf32> to vector<2x128xf32>
    %324 = vector.extract_strided_slice %322 {offsets = [0, 0], sizes = [2, 128], strides = [1, 1]} : vector<2x384xf32> to vector<2x128xf32>
    %325 = arith.addf %323, %324 : vector<2x128xf32>
    %326 = arith.negf %325 : vector<2x128xf32>
    %327 = math.exp %326 : vector<2x128xf32>
    %cst_85 = arith.constant 1.000000e+00 : f32
    %328 = vector.broadcast %cst_85 : f32 to vector<2x128xf32>
    %329 = arith.addf %328, %327 : vector<2x128xf32>
    %330 = arith.divf %328, %329 : vector<2x128xf32>
    %331 = vector.extract_strided_slice %320 {offsets = [0, 128], sizes = [2, 128], strides = [1, 1]} : vector<2x384xf32> to vector<2x128xf32>
    %332 = vector.extract_strided_slice %322 {offsets = [0, 128], sizes = [2, 128], strides = [1, 1]} : vector<2x384xf32> to vector<2x128xf32>
    %333 = arith.addf %331, %332 : vector<2x128xf32>
    %334 = arith.negf %333 : vector<2x128xf32>
    %335 = math.exp %334 : vector<2x128xf32>
    %cst_86 = arith.constant 1.000000e+00 : f32
    %336 = vector.broadcast %cst_86 : f32 to vector<2x128xf32>
    %337 = arith.addf %336, %335 : vector<2x128xf32>
    %338 = arith.divf %336, %337 : vector<2x128xf32>
    %339 = vector.extract_strided_slice %320 {offsets = [0, 256], sizes = [2, 128], strides = [1, 1]} : vector<2x384xf32> to vector<2x128xf32>
    %340 = vector.extract_strided_slice %322 {offsets = [0, 256], sizes = [2, 128], strides = [1, 1]} : vector<2x384xf32> to vector<2x128xf32>
    %341 = vector.broadcast %90 : vector<1x128xf32> to vector<2x128xf32>
    %342 = arith.addf %340, %341 : vector<2x128xf32>
    %343 = arith.mulf %330, %342 : vector<2x128xf32>
    %344 = arith.addf %339, %343 : vector<2x128xf32>
    %345 = math.tanh %344 : vector<2x128xf32>
    %cst_87 = arith.constant 1.000000e+00 : f32
    %346 = vector.broadcast %cst_87 : f32 to vector<2x128xf32>
    %347 = arith.subf %346, %338 : vector<2x128xf32>
    %348 = arith.mulf %347, %345 : vector<2x128xf32>
    %349 = arith.mulf %338, %313 : vector<2x128xf32>
    %350 = arith.addf %348, %349 : vector<2x128xf32>
    %351 = vector.extract_strided_slice %86 {offsets = [0, 280], sizes = [2, 40], strides = [1, 1]} : vector<2x320xf32> to vector<2x40xf32>
    %352 = vector.extract_strided_slice %86 {offsets = [0, 0], sizes = [2, 40], strides = [1, 1]} : vector<2x320xf32> to vector<2x40xf32>
    %353 = tpu.concatenate %351, %352 in 1 : vector<2x40xf32>, vector<2x40xf32> -> vector<2x80xf32>
    %354 = arith.truncf %353 : vector<2x80xf32> to vector<2x80xbf16>
    %cst_88 = arith.constant dense<0.000000e+00> : vector<2x384xf32>
    %355 = tpu.matmul %354, %87, %cst_88 {dimension_numbers = #tpu.dot_dimension_numbers<[1], [0], [0], [1], [0, 0, 1, 1], [], []>} : vector<2x80xbf16>, vector<80x384xbf16>, vector<2x384xf32> -> vector<2x384xf32>
    %356 = vector.broadcast %89 : vector<1x384xf32> to vector<2x384xf32>
    %357 = arith.addf %355, %356 : vector<2x384xf32>
    %358 = arith.truncf %350 : vector<2x128xf32> to vector<2x128xbf16>
    %cst_89 = arith.constant dense<0.000000e+00> : vector<2x384xf32>
    %359 = tpu.matmul %358, %88, %cst_89 {dimension_numbers = #tpu.dot_dimension_numbers<[1], [0], [0], [1], [0, 0, 1, 1], [], []>} : vector<2x128xbf16>, vector<128x384xbf16>, vector<2x384xf32> -> vector<2x384xf32>
    %360 = vector.extract_strided_slice %357 {offsets = [0, 0], sizes = [2, 128], strides = [1, 1]} : vector<2x384xf32> to vector<2x128xf32>
    %361 = vector.extract_strided_slice %359 {offsets = [0, 0], sizes = [2, 128], strides = [1, 1]} : vector<2x384xf32> to vector<2x128xf32>
    %362 = arith.addf %360, %361 : vector<2x128xf32>
    %363 = arith.negf %362 : vector<2x128xf32>
    %364 = math.exp %363 : vector<2x128xf32>
    %cst_90 = arith.constant 1.000000e+00 : f32
    %365 = vector.broadcast %cst_90 : f32 to vector<2x128xf32>
    %366 = arith.addf %365, %364 : vector<2x128xf32>
    %367 = arith.divf %365, %366 : vector<2x128xf32>
    %368 = vector.extract_strided_slice %357 {offsets = [0, 128], sizes = [2, 128], strides = [1, 1]} : vector<2x384xf32> to vector<2x128xf32>
    %369 = vector.extract_strided_slice %359 {offsets = [0, 128], sizes = [2, 128], strides = [1, 1]} : vector<2x384xf32> to vector<2x128xf32>
    %370 = arith.addf %368, %369 : vector<2x128xf32>
    %371 = arith.negf %370 : vector<2x128xf32>
    %372 = math.exp %371 : vector<2x128xf32>
    %cst_91 = arith.constant 1.000000e+00 : f32
    %373 = vector.broadcast %cst_91 : f32 to vector<2x128xf32>
    %374 = arith.addf %373, %372 : vector<2x128xf32>
    %375 = arith.divf %373, %374 : vector<2x128xf32>
    %376 = vector.extract_strided_slice %357 {offsets = [0, 256], sizes = [2, 128], strides = [1, 1]} : vector<2x384xf32> to vector<2x128xf32>
    %377 = vector.extract_strided_slice %359 {offsets = [0, 256], sizes = [2, 128], strides = [1, 1]} : vector<2x384xf32> to vector<2x128xf32>
    %378 = vector.broadcast %90 : vector<1x128xf32> to vector<2x128xf32>
    %379 = arith.addf %377, %378 : vector<2x128xf32>
    %380 = arith.mulf %367, %379 : vector<2x128xf32>
    %381 = arith.addf %376, %380 : vector<2x128xf32>
    %382 = math.tanh %381 : vector<2x128xf32>
    %cst_92 = arith.constant 1.000000e+00 : f32
    %383 = vector.broadcast %cst_92 : f32 to vector<2x128xf32>
    %384 = arith.subf %383, %375 : vector<2x128xf32>
    %385 = arith.mulf %384, %382 : vector<2x128xf32>
    %386 = arith.mulf %375, %350 : vector<2x128xf32>
    %387 = arith.addf %385, %386 : vector<2x128xf32>
    %c0_93 = arith.constant 0 : index
    %c0_94 = arith.constant 0 : index
    %388 = vector.load %arg17[%c0_93, %c0_94] : memref<128x40xbf16, #tpu.memory_space<vmem>>, vector<128x40xbf16>
    %389 = arith.truncf %387 : vector<2x128xf32> to vector<2x128xbf16>
    %cst_95 = arith.constant dense<0.000000e+00> : vector<2x40xf32>
    %390 = tpu.matmul %389, %388, %cst_95 {dimension_numbers = #tpu.dot_dimension_numbers<[1], [0], [0], [1], [0, 0, 1, 1], [], []>} : vector<2x128xbf16>, vector<128x40xbf16>, vector<2x40xf32> -> vector<2x40xf32>
    %c0_96 = arith.constant 0 : index
    %c0_97 = arith.constant 0 : index
    %391 = vector.load %arg18[%c0_96, %c0_97] : memref<1x40xf32, #tpu.memory_space<vmem>>, vector<1x40xf32>
    %392 = vector.broadcast %391 : vector<1x40xf32> to vector<2x40xf32>
    %393 = arith.addf %390, %392 : vector<2x40xf32>
    %cst_98 = arith.constant 0.000000e+00 : f32
    %394 = vector.broadcast %cst_98 : f32 to vector<2x40xf32>
    %395 = arith.maximumf %393, %394 : vector<2x40xf32>
    %c0_99 = arith.constant 0 : index
    %c0_100 = arith.constant 0 : index
    %396 = vector.load %arg19[%c0_99, %c0_100] : memref<40x1xbf16, #tpu.memory_space<vmem>>, vector<40x1xbf16>
    %397 = arith.truncf %395 : vector<2x40xf32> to vector<2x40xbf16>
    %cst_101 = arith.constant dense<0.000000e+00> : vector<2x1xf32>
    %398 = tpu.matmul %397, %396, %cst_101 {dimension_numbers = #tpu.dot_dimension_numbers<[1], [0], [0], [1], [0, 0, 1, 1], [], []>} : vector<2x40xbf16>, vector<40x1xbf16>, vector<2x1xf32> -> vector<2x1xf32>
    %c0_102 = arith.constant 0 : index
    %c0_103 = arith.constant 0 : index
    %399 = vector.load %arg20[%c0_102, %c0_103] : memref<1x1xf32, #tpu.memory_space<vmem>>, vector<1x1xf32>
    %400 = vector.broadcast %399 : vector<1x1xf32> to vector<2x1xf32>
    %401 = arith.addf %398, %400 : vector<2x1xf32>
    %c0_104 = arith.constant 0 : index
    %c0_105 = arith.constant 0 : index
    %402 = vector.load %arg21[%c0_104, %c0_105] : memref<2x1xf32, #tpu.memory_space<vmem>>, vector<2x1xf32>
    %403 = arith.mulf %401, %402 : vector<2x1xf32>
    %c0_106 = arith.constant 0 : index
    %c0_107 = arith.constant 0 : index
    %404 = vector.load %arg22[%c0_106, %c0_107] : memref<2x1xf32, #tpu.memory_space<vmem>>, vector<2x1xf32>
    tpu.vector_store %arg22[%c0_106, %c0_107], %403 {strides = array<i32>} : memref<2x1xf32, #tpu.memory_space<vmem>>, vector<2x1xf32>,
    return
  }
}

</mosaic_0001>

<llo_original>
// kernel: cnn_rnn_ef2_ps_forward.1
$region0: #{cnn_rnn_ef2_ps_forward.1}
  #allocation0 [shape = 'u32[]', space=smem, size = 0x4, offset = 0x4, fixed_abs, tag = 'smem constant byte address 0x4 - core index']
  #allocation1 [shape = 'u32[72,128]{1,0:T(1,128)}', space=vmem, size = 0x9000, scoped, tag = 'internal scratch']
  #allocation2 [shape = 'f32[1,1]{1,0:T(1,128)S(1)}', space=vmem, size = 0x200, scoped, tag = 'scoped memory for cnn_rnn_ef2_ps_forward.1']
  %s0 = inlined_call_operand.vmem [shape: f32[2,360], index: 0, kind: input, shape index: {}]
  %s1 = inlined_call_operand.vmem [shape: bf16[360,380], index: 1, kind: input, shape index: {}]
  %s2 = inlined_call_operand.vmem [shape: f32[1,380], index: 2, kind: input, shape index: {}]
  %s3 = inlined_call_operand.vmem [shape: f32[1,20], index: 3, kind: input, shape index: {}]
  %s4 = inlined_call_operand.vmem [shape: f32[1,20], index: 4, kind: input, shape index: {}]
  %s5 = inlined_call_operand.vmem [shape: f32[380,20], index: 5, kind: input, shape index: {}]
  %s6 = inlined_call_operand.vmem [shape: f32[20,380], index: 6, kind: input, shape index: {}]
  %s7 = inlined_call_operand.vmem [shape: bf16[380,320], index: 7, kind: input, shape index: {}]
  %s8 = inlined_call_operand.vmem [shape: f32[1,320], index: 8, kind: input, shape index: {}]
  %s9 = inlined_call_operand.vmem [shape: f32[1,40], index: 9, kind: input, shape index: {}]
  %s10 = inlined_call_operand.vmem [shape: f32[1,40], index: 10, kind: input, shape index: {}]
  %s11 = inlined_call_operand.vmem [shape: f32[320,40], index: 11, kind: input, shape index: {}]
  %s12 = inlined_call_operand.vmem [shape: f32[40,320], index: 12, kind: input, shape index: {}]
  %s13 = inlined_call_operand.vmem [shape: bf16[80,384], index: 13, kind: input, shape index: {}]
  %s14 = inlined_call_operand.vmem [shape: f32[1,384], index: 14, kind: input, shape index: {}]
  %s15 = inlined_call_operand.vmem [shape: bf16[128,384], index: 15, kind: input, shape index: {}]
  %s16 = inlined_call_operand.vmem [shape: f32[1,128], index: 16, kind: input, shape index: {}]
  %s17 = inlined_call_operand.vmem [shape: bf16[128,40], index: 17, kind: input, shape index: {}]
  %s18 = inlined_call_operand.vmem [shape: f32[1,40], index: 18, kind: input, shape index: {}]
  %s19 = inlined_call_operand.vmem [shape: bf16[40,1], index: 19, kind: input, shape index: {}]
  %s20 = inlined_call_operand.<no memory space> [shape: f32[1,1], index: 20, kind: input, shape index: {}]
  %s21 = inlined_call_operand.vmem [shape: f32[2,1], index: 21, kind: input, shape index: {}]
  %s22 = inlined_call_operand.vmem [shape: f32[2,1], index: 22, kind: output, shape index: {}]
  %s23 = sld [smem:[#allocation0]]
  $region98: #{cnn_rnn_ef2_ps_forward.1} parent=0
    _
  %s25 = ssub.s32 1, %s23
  %s26 = scalar_select 0, %s25, %s23
  %v27 = vstv %s20
  %28 = vst [vmem:[#allocation2] sm:$0x1] %v27
  // Predicated region
  $region2: #{cnn_rnn_ef2_ps_forward.1} parent=0 // pred_check
    _
  $region3: #{cnn_rnn_ef2_ps_forward.1} parent=0 // pred_check_branch
    %30 = sbr.rel (0) target = $region5
  $region4: #{cnn_rnn_ef2_ps_forward.1} parent=0 // pred_region
    _
  $region5: #{cnn_rnn_ef2_ps_forward.1} parent=0 // pred_fallthru
    _
  // Predicated region
  $region6: #{cnn_rnn_ef2_ps_forward.1} parent=0 // pred_check
    _
  $region7: #{cnn_rnn_ef2_ps_forward.1} parent=0 // pred_check_branch
    %32 = sbr.rel (0) target = $region9
  $region8: #{cnn_rnn_ef2_ps_forward.1} parent=0 // pred_region
    _
  $region9: #{cnn_rnn_ef2_ps_forward.1} parent=0 // pred_fallthru
    _
  // Predicated region
  $region10: #{cnn_rnn_ef2_ps_forward.1} parent=0 // pred_check
    _
  $region11: #{cnn_rnn_ef2_ps_forward.1} parent=0 // pred_check_branch
    %34 = sbr.rel (0) target = $region13
  $region12: #{cnn_rnn_ef2_ps_forward.1} parent=0 // pred_region
    _
  $region13: #{cnn_rnn_ef2_ps_forward.1} parent=0 // pred_fallthru
    _
  // Predicated region
  $region14: #{cnn_rnn_ef2_ps_forward.1} parent=0 // pred_check
    _
  $region15: #{cnn_rnn_ef2_ps_forward.1} parent=0 // pred_check_branch
    %36 = sbr.rel (0) target = $region17
  $region16: #{cnn_rnn_ef2_ps_forward.1} parent=0 // pred_region
    _
  $region17: #{cnn_rnn_ef2_ps_forward.1} parent=0 // pred_fallthru
    _
  // Predicated region
  $region18: #{cnn_rnn_ef2_ps_forward.1} parent=0 // pred_check
    _
  $region19: #{cnn_rnn_ef2_ps_forward.1} parent=0 // pred_check_branch
    %38 = sbr.rel (0) target = $region21
  $region20: #{cnn_rnn_ef2_ps_forward.1} parent=0 // pred_region
    _
  $region21: #{cnn_rnn_ef2_ps_forward.1} parent=0 // pred_fallthru
    _
  // Predicated region
  $region22: #{cnn_rnn_ef2_ps_forward.1} parent=0 // pred_check
    _
  $region23: #{cnn_rnn_ef2_ps_forward.1} parent=0 // pred_check_branch
    %40 = sbr.rel (0) target = $region25
  $region24: #{cnn_rnn_ef2_ps_forward.1} parent=0 // pred_region
    _
  $region25: #{cnn_rnn_ef2_ps_forward.1} parent=0 // pred_fallthru
    _
  // Predicated region
  $region26: #{cnn_rnn_ef2_ps_forward.1} parent=0 // pred_check
    _
  $region27: #{cnn_rnn_ef2_ps_forward.1} parent=0 // pred_check_branch
    %42 = sbr.rel (0) target = $region29
  $region28: #{cnn_rnn_ef2_ps_forward.1} parent=0 // pred_region
    _
  $region29: #{cnn_rnn_ef2_ps_forward.1} parent=0 // pred_fallthru
    _
  // Predicated region
  $region30: #{cnn_rnn_ef2_ps_forward.1} parent=0 // pred_check
    _
  $region31: #{cnn_rnn_ef2_ps_forward.1} parent=0 // pred_check_branch
    %44 = sbr.rel (0) target = $region33
  $region32: #{cnn_rnn_ef2_ps_forward.1} parent=0 // pred_region
    _
  $region33: #{cnn_rnn_ef2_ps_forward.1} parent=0 // pred_fallthru
    _
  // Predicated region
  $region34: #{cnn_rnn_ef2_ps_forward.1} parent=0 // pred_check
    _
  $region35: #{cnn_rnn_ef2_ps_forward.1} parent=0 // pred_check_branch
    %46 = sbr.rel (0) target = $region37
  $region36: #{cnn_rnn_ef2_ps_forward.1} parent=0 // pred_region
    _
  $region37: #{cnn_rnn_ef2_ps_forward.1} parent=0 // pred_fallthru
    _
  // Predicated region
  $region38: #{cnn_rnn_ef2_ps_forward.1} parent=0 // pred_check
    _
  $region39: #{cnn_rnn_ef2_ps_forward.1} parent=0 // pred_check_branch
    %48 = sbr.rel (0) target = $region41
  $region40: #{cnn_rnn_ef2_ps_forward.1} parent=0 // pred_region
    _
  $region41: #{cnn_rnn_ef2_ps_forward.1} parent=0 // pred_fallthru
    _
  // Predicated region
  $region42: #{cnn_rnn_ef2_ps_forward.1} parent=0 // pred_check
    _
  $region43: #{cnn_rnn_ef2_ps_forward.1} parent=0 // pred_check_branch
    %50 = sbr.rel (0) target = $region45
  $region44: #{cnn_rnn_ef2_ps_forward.1} parent=0 // pred_region
    _
  $region45: #{cnn_rnn_ef2_ps_forward.1} parent=0 // pred_fallthru
    _
  // Predicated region
  $region46: #{cnn_rnn_ef2_ps_forward.1} parent=0 // pred_check
    _
  $region47: #{cnn_rnn_ef2_ps_forward.1} parent=0 // pred_check_branch
    %52 = sbr.rel (0) target = $region49
  $region48: #{cnn_rnn_ef2_ps_forward.1} parent=0 // pred_region
    _
  $region49: #{cnn_rnn_ef2_ps_forward.1} parent=0 // pred_fallthru
    _
  // Predicated region
  $region50: #{cnn_rnn_ef2_ps_forward.1} parent=0 // pred_check
    _
  $region51: #{cnn_rnn_ef2_ps_forward.1} parent=0 // pred_check_branch
    %54 = sbr.rel (0) target = $region53
  $region52: #{cnn_rnn_ef2_ps_forward.1} parent=0 // pred_region
    _
  $region53: #{cnn_rnn_ef2_ps_forward.1} parent=0 // pred_fallthru
    _
  // Predicated region
  $region54: #{cnn_rnn_ef2_ps_forward.1} parent=0 // pred_check
    _
  $region55: #{cnn_rnn_ef2_ps_forward.1} parent=0 // pred_check_branch
    %56 = sbr.rel (0) target = $region57
  $region56: #{cnn_rnn_ef2_ps_forward.1} parent=0 // pred_region
    _
  $region57: #{cnn_rnn_ef2_ps_forward.1} parent=0 // pred_fallthru
    _
  // Predicated region
  $region58: #{cnn_rnn_ef2_ps_forward.1} parent=0 // pred_check
    _
  $region59: #{cnn_rnn_ef2_ps_forward.1} parent=0 // pred_check_branch
    %58 = sbr.rel (0) target = $region61
  $region60: #{cnn_rnn_ef2_ps_forward.1} parent=0 // pred_region
    _
  $region61: #{cnn_rnn_ef2_ps_forward.1} parent=0 // pred_fallthru
    _
  // Predicated region
  $region62: #{cnn_rnn_ef2_ps_forward.1} parent=0 // pred_check
    _
  $region63: #{cnn_rnn_ef2_ps_forward.1} parent=0 // pred_check_branch
    %60 = sbr.rel (0) target = $region65
  $region64: #{cnn_rnn_ef2_ps_forward.1} parent=0 // pred_region
    _
  $region65: #{cnn_rnn_ef2_ps_forward.1} parent=0 // pred_fallthru
    _
  // Predicated region
  $region66: #{cnn_rnn_ef2_ps_forward.1} parent=0 // pred_check
    _
  $region67: #{cnn_rnn_ef2_ps_forward.1} parent=0 // pred_check_branch
    %62 = sbr.rel (0) target = $region69
  $region68: #{cnn_rnn_ef2_ps_forward.1} parent=0 // pred_region
    _
  $region69: #{cnn_rnn_ef2_ps_forward.1} parent=0 // pred_fallthru
    _
  // Predicated region
  $region70: #{cnn_rnn_ef2_ps_forward.1} parent=0 // pred_check
    _
  $region71: #{cnn_rnn_ef2_ps_forward.1} parent=0 // pred_check_branch
    %64 = sbr.rel (0) target = $region73
  $region72: #{cnn_rnn_ef2_ps_forward.1} parent=0 // pred_region
    _
  $region73: #{cnn_rnn_ef2_ps_forward.1} parent=0 // pred_fallthru
    _
  // Predicated region
  $region74: #{cnn_rnn_ef2_ps_forward.1} parent=0 // pred_check
    _
  $region75: #{cnn_rnn_ef2_ps_forward.1} parent=0 // pred_check_branch
    %66 = sbr.rel (0) target = $region77
  $region76: #{cnn_rnn_ef2_ps_forward.1} parent=0 // pred_region
    _
  $region77: #{cnn_rnn_ef2_ps_forward.1} parent=0 // pred_fallthru
    _
  // Predicated region
  $region78: #{cnn_rnn_ef2_ps_forward.1} parent=0 // pred_check
    _
  $region79: #{cnn_rnn_ef2_ps_forward.1} parent=0 // pred_check_branch
    %68 = sbr.rel (0) target = $region81
  $region80: #{cnn_rnn_ef2_ps_forward.1} parent=0 // pred_region
    _
  $region81: #{cnn_rnn_ef2_ps_forward.1} parent=0 // pred_fallthru
    _
  // Predicated region
  $region82: #{cnn_rnn_ef2_ps_forward.1} parent=0 // pred_check
    _
  $region83: #{cnn_rnn_ef2_ps_forward.1} parent=0 // pred_check_branch
    %70 = sbr.rel (0) target = $region85
  $region84: #{cnn_rnn_ef2_ps_forward.1} parent=0 // pred_region
    _
  $region85: #{cnn_rnn_ef2_ps_forward.1} parent=0 // pred_fallthru
    _
  // Predicated region
  $region86: #{cnn_rnn_ef2_ps_forward.1} parent=0 // pred_check
    _
  $region87: #{cnn_rnn_ef2_ps_forward.1} parent=0 // pred_check_branch
    %72 = sbr.rel (0) target = $region89
  $region88: #{cnn_rnn_ef2_ps_forward.1} parent=0 // pred_region
    _
  $region89: #{cnn_rnn_ef2_ps_forward.1} parent=0 // pred_fallthru
    _
  %v74 = vld [vmem:[%s0] sm:$0x3f]
  %v75 = vld [vmem:[%s1] sm:$0xff]
  %v76 = vld [vmem:[%s1 + $0x8] sm:$0xf]
  %v77 = vld [vmem:[%s1 + $0xc] sm:$0xff]
  %v78 = vld [vmem:[%s1 + $0x14] sm:$0xf]
  %v79 = vld [vmem:[%s1 + $0x18] sm:$0xff]
  %v80 = vld [vmem:[%s1 + $0x20] sm:$0xf]
  %v81 = vld [vmem:[%s1 + $0x24] sm:$0xff]
  %v82 = vld [vmem:[%s1 + $0x2c] sm:$0xf]
  %v83 = vld [vmem:[%s1 + $0x30] sm:$0xff]
  %v84 = vld [vmem:[%s1 + $0x38] sm:$0xf]
  %v85 = vld [vmem:[%s1 + $0x3c] sm:$0xff]
  %v86 = vld [vmem:[%s1 + $0x44] sm:$0xf]
  %v87 = vld [vmem:[%s1 + $0x48] sm:$0xff]
  %v88 = vld [vmem:[%s1 + $0x50] sm:$0xf]
  %v89 = vld [vmem:[%s1 + $0x54] sm:$0xff]
  %v90 = vld [vmem:[%s1 + $0x5c] sm:$0xf]
  %v91 = vld [vmem:[%s1 + $0x60] sm:$0xff]
  %v92 = vld [vmem:[%s1 + $0x68] sm:$0xf]
  %v93 = vld [vmem:[%s1 + $0x6c] sm:$0xff]
  %v94 = vld [vmem:[%s1 + $0x74] sm:$0xf]
  %v95 = vld [vmem:[%s1 + $0x78] sm:$0xff]
  %v96 = vld [vmem:[%s1 + $0x80] sm:$0xf]
  %v97 = vld [vmem:[%s1 + $0x84] sm:$0xff]
  %v98 = vld [vmem:[%s1 + $0x8c] sm:$0xf]
  %v99 = vld [vmem:[%s1 + $0x90] sm:$0xff]
  %v100 = vld [vmem:[%s1 + $0x98] sm:$0xf]
  %v101 = vld [vmem:[%s1 + $0x9c] sm:$0xff]
  %v102 = vld [vmem:[%s1 + $0xa4] sm:$0xf]
  %v103 = vld [vmem:[%s1 + $0xa8] sm:$0xff]
  %v104 = vld [vmem:[%s1 + $0xb0] sm:$0xf]
  %v105 = vld [vmem:[%s1 + $0xb4] sm:$0xff]
  %v106 = vld [vmem:[%s1 + $0xbc] sm:$0xf]
  %v107 = vld [vmem:[%s1 + $0xc0] sm:$0xff]
  %v108 = vld [vmem:[%s1 + $0xc8] sm:$0xf]
  %v109 = vld [vmem:[%s1 + $0xcc] sm:$0xff]
  %v110 = vld [vmem:[%s1 + $0xd4] sm:$0xf]
  %v111 = vld [vmem:[%s1 + $0xd8] sm:$0xff]
  %v112 = vld [vmem:[%s1 + $0xe0] sm:$0xf]
  %v113 = vld [vmem:[%s1 + $0xe4] sm:$0xff]
  %v114 = vld [vmem:[%s1 + $0xec] sm:$0xf]
  %v115 = vld [vmem:[%s1 + $0xf0] sm:$0xff]
  %v116 = vld [vmem:[%s1 + $0xf8] sm:$0xf]
  %v117 = vld [vmem:[%s1 + $0xfc] sm:$0xff]
  %v118 = vld [vmem:[%s1 + $0x104] sm:$0xf]
  %v119 = vld [vmem:[%s1 + $0x108] sm:$0xff]
  %v120 = vld [vmem:[%s1 + $0x110] sm:$0xf]
  %v121 = vld [vmem:[%s1 + $0x114] sm:$0xff]
  %v122 = vld [vmem:[%s1 + $0x11c] sm:$0xf]
  %v123 = vld [vmem:[%s1 + $0x120] sm:$0xff]
  %v124 = vld [vmem:[%s1 + $0x128] sm:$0xf]
  %v125 = vld [vmem:[%s1 + $0x12c] sm:$0xff]
  %v126 = vld [vmem:[%s1 + $0x134] sm:$0xf]
  %v127 = vld [vmem:[%s1 + $0x138] sm:$0xff]
  %v128 = vld [vmem:[%s1 + $0x140] sm:$0xf]
  %v129 = vld [vmem:[%s1 + $0x144] sm:$0xff]
  %v130 = vld [vmem:[%s1 + $0x14c] sm:$0xf]
  %v131 = vld [vmem:[%s1 + $0x150] sm:$0xff]
  %v132 = vld [vmem:[%s1 + $0x158] sm:$0xf]
  %v133 = vld [vmem:[%s1 + $0x15c] sm:$0xff]
  %v134 = vld [vmem:[%s1 + $0x164] sm:$0xf]
  %v135 = vld [vmem:[%s1 + $0x168] sm:$0xff]
  %v136 = vld [vmem:[%s1 + $0x170] sm:$0xf]
  %v137 = vld [vmem:[%s1 + $0x174] sm:$0xff]
  %v138 = vld [vmem:[%s1 + $0x17c] sm:$0xf]
  %v139 = vld [vmem:[%s1 + $0x180] sm:$0xff]
  %v140 = vld [vmem:[%s1 + $0x188] sm:$0xf]
  %v141 = vld [vmem:[%s1 + $0x18c] sm:$0xff]
  %v142 = vld [vmem:[%s1 + $0x194] sm:$0xf]
  %v143 = vld [vmem:[%s1 + $0x198] sm:$0xff]
  %v144 = vld [vmem:[%s1 + $0x1a0] sm:$0xf]
  %v145 = vld [vmem:[%s1 + $0x1a4] sm:$0xff]
  %v146 = vld [vmem:[%s1 + $0x1ac] sm:$0xf]
  %v147 = vld [vmem:[%s1 + $0x1b0] sm:$0xff]
  %v148 = vld [vmem:[%s1 + $0x1b8] sm:$0xf]
  %v149 = vld [vmem:[%s1 + $0x1bc] sm:$0xff]
  %v150 = vld [vmem:[%s1 + $0x1c4] sm:$0xf]
  %v151 = vld [vmem:[%s1 + $0x1c8] sm:$0xff]
  %v152 = vld [vmem:[%s1 + $0x1d0] sm:$0xf]
  %v153 = vld [vmem:[%s1 + $0x1d4] sm:$0xff]
  %v154 = vld [vmem:[%s1 + $0x1dc] sm:$0xf]
  %v155 = vld [vmem:[%s1 + $0x1e0] sm:$0xff]
  %v156 = vld [vmem:[%s1 + $0x1e8] sm:$0xf]
  %v157 = vld [vmem:[%s1 + $0x1ec] sm:$0xff]
  %v158 = vld [vmem:[%s1 + $0x1f4] sm:$0xf]
  %v159 = vld [vmem:[%s1 + $0x1f8] sm:$0xff]
  %v160 = vld [vmem:[%s1 + $0x200] sm:$0xf]
  %v161 = vld [vmem:[%s1 + $0x204] sm:$0xff]
  %v162 = vld [vmem:[%s1 + $0x20c] sm:$0xf]
  %v163 = vld [vmem:[%s1 + $0x210] sm:$0xff]
  %v164 = vld [vmem:[%s1 + $0x218] sm:$0xf]
  %v165 = vld [vmem:[%s2] sm:$0x7]
  %v166 = vld [vmem:[%s3] sm:$0x1]
  %v167 = vld [vmem:[%s4] sm:$0x1]
  %v168 = vld [vmem:[%s5] sm:$0xff]
  %v169 = vld [vmem:[%s5 + $0x8] sm:$0xff]
  %v170 = vld [vmem:[%s5 + $0x10] sm:$0xff]
  %v171 = vld [vmem:[%s5 + $0x18] sm:$0xff]
  %v172 = vld [vmem:[%s5 + $0x20] sm:$0xff]
  %v173 = vld [vmem:[%s5 + $0x28] sm:$0xff]
  %v174 = vld [vmem:[%s5 + $0x30] sm:$0xff]
  %v175 = vld [vmem:[%s5 + $0x38] sm:$0xff]
  %v176 = vld [vmem:[%s5 + $0x40] sm:$0xff]
  %v177 = vld [vmem:[%s5 + $0x48] sm:$0xff]
  %v178 = vld [vmem:[%s5 + $0x50] sm:$0xff]
  %v179 = vld [vmem:[%s5 + $0x58] sm:$0xff]
  %v180 = vld [vmem:[%s5 + $0x60] sm:$0xff]
  %v181 = vld [vmem:[%s5 + $0x68] sm:$0xff]
  %v182 = vld [vmem:[%s5 + $0x70] sm:$0xff]
  %v183 = vld [vmem:[%s5 + $0x78] sm:$0xff]
  %v184 = vld [vmem:[%s5 + $0x80] sm:$0xff]
  %v185 = vld [vmem:[%s5 + $0x88] sm:$0xff]
  %v186 = vld [vmem:[%s5 + $0x90] sm:$0xff]
  %v187 = vld [vmem:[%s5 + $0x98] sm:$0xff]
  %v188 = vld [vmem:[%s5 + $0xa0] sm:$0xff]
  %v189 = vld [vmem:[%s5 + $0xa8] sm:$0xff]
  %v190 = vld [vmem:[%s5 + $0xb0] sm:$0xff]
  %v191 = vld [vmem:[%s5 + $0xb8] sm:$0xff]
  %v192 = vld [vmem:[%s5 + $0xc0] sm:$0xff]
  %v193 = vld [vmem:[%s5 + $0xc8] sm:$0xff]
  %v194 = vld [vmem:[%s5 + $0xd0] sm:$0xff]
  %v195 = vld [vmem:[%s5 + $0xd8] sm:$0xff]
  %v196 = vld [vmem:[%s5 + $0xe0] sm:$0xff]
  %v197 = vld [vmem:[%s5 + $0xe8] sm:$0xff]
  %v198 = vld [vmem:[%s5 + $0xf0] sm:$0xff]
  %v199 = vld [vmem:[%s5 + $0xf8] sm:$0xff]
  %v200 = vld [vmem:[%s5 + $0x100] sm:$0xff]
  %v201 = vld [vmem:[%s5 + $0x108] sm:$0xff]
  %v202 = vld [vmem:[%s5 + $0x110] sm:$0xff]
  %v203 = vld [vmem:[%s5 + $0x118] sm:$0xff]
  %v204 = vld [vmem:[%s5 + $0x120] sm:$0xff]
  %v205 = vld [vmem:[%s5 + $0x128] sm:$0xff]
  %v206 = vld [vmem:[%s5 + $0x130] sm:$0xff]
  %v207 = vld [vmem:[%s5 + $0x138] sm:$0xff]
  %v208 = vld [vmem:[%s5 + $0x140] sm:$0xff]
  %v209 = vld [vmem:[%s5 + $0x148] sm:$0xff]
  %v210 = vld [vmem:[%s5 + $0x150] sm:$0xff]
  %v211 = vld [vmem:[%s5 + $0x158] sm:$0xff]
  %v212 = vld [vmem:[%s5 + $0x160] sm:$0xff]
  %v213 = vld [vmem:[%s5 + $0x168] sm:$0xff]
  %v214 = vld [vmem:[%s5 + $0x170] sm:$0xff]
  %v215 = vld [vmem:[%s5 + $0x178] sm:$0xf]
  %v216 = vld [vmem:[%s6] sm:$0xff]
  %v217 = vld [vmem:[%s6 + $0x8] sm:$0xff]
  %v218 = vld [vmem:[%s6 + $0x10] sm:$0xff]
  %v219 = vld [vmem:[%s6 + $0x18] sm:$0xff]
  %v220 = vld [vmem:[%s6 + $0x20] sm:$0xff]
  %v221 = vld [vmem:[%s6 + $0x28] sm:$0xff]
  %v222 = vld [vmem:[%s6 + $0x30] sm:$0xf]
  %v223 = vld [vmem:[%s6 + $0x38] sm:$0xf]
  %v224 = vld [vmem:[%s6 + $0x40] sm:$0xf]
  %226 = vst [vmem:[#allocation1] ss:$4 sm:$0xff] %v74
  %v227 = vld.sshfl [vmem:[#allocation1] sm:$0xff pattern:$0x73625140]
  %v228 = vld.sshfl [vmem:[#allocation1 + $0x8] sm:$0xff pattern:$0x73625140]
  %v229 = vld.sshfl [vmem:[#allocation1 + $0x10] sm:$0xff pattern:$0x73625140]
  %v233 = vpack.c.bf16 %v227, %v227
  %v234 = vpack.c.bf16 %v228, %v228
  %v235 = vpack.c.bf16 %v229, %v229
  %v237 = vperm.slane %v165, 0
  %v238 = vperm.slane %v165, 1
  %v239 = vperm.slane %v165, 2
  %v333 = vunpack.c.l.b16 %v75
  %v334 = vunpack.c.h.b16 %v75
  %v335 = vunpack.c.l.b16 %v76
  %v336 = vunpack.c.l.b16 %v77
  %v337 = vunpack.c.h.b16 %v77
  %v338 = vunpack.c.l.b16 %v78
  %v339 = vunpack.c.l.b16 %v79
  %v340 = vunpack.c.h.b16 %v79
  %v341 = vunpack.c.l.b16 %v80
  %v342 = vunpack.c.l.b16 %v81
  %v343 = vunpack.c.h.b16 %v81
  %v344 = vunpack.c.l.b16 %v82
  %v345 = vunpack.c.l.b16 %v83
  %v346 = vunpack.c.h.b16 %v83
  %v347 = vunpack.c.l.b16 %v84
  %v348 = vunpack.c.l.b16 %v85
  %v349 = vunpack.c.h.b16 %v85
  %v350 = vunpack.c.l.b16 %v86
  %v351 = vunpack.c.l.b16 %v87
  %v352 = vunpack.c.h.b16 %v87
  %v353 = vunpack.c.l.b16 %v88
  %v354 = vunpack.c.l.b16 %v89
  %v355 = vunpack.c.h.b16 %v89
  %v356 = vunpack.c.l.b16 %v90
  %v357 = vunpack.c.l.b16 %v91
  %v358 = vunpack.c.h.b16 %v91
  %v359 = vunpack.c.l.b16 %v92
  %v360 = vunpack.c.l.b16 %v93
  %v361 = vunpack.c.h.b16 %v93
  %v362 = vunpack.c.l.b16 %v94
  %v363 = vunpack.c.l.b16 %v95
  %v364 = vunpack.c.h.b16 %v95
  %v365 = vunpack.c.l.b16 %v96
  %v366 = vunpack.c.l.b16 %v97
  %v367 = vunpack.c.h.b16 %v97
  %v368 = vunpack.c.l.b16 %v98
  %v369 = vunpack.c.l.b16 %v99
  %v370 = vunpack.c.h.b16 %v99
  %v371 = vunpack.c.l.b16 %v100
  %v372 = vunpack.c.l.b16 %v101
  %v373 = vunpack.c.h.b16 %v101
  %v374 = vunpack.c.l.b16 %v102
  %v375 = vunpack.c.l.b16 %v103
  %v376 = vunpack.c.h.b16 %v103
  %v377 = vunpack.c.l.b16 %v104
  %v378 = vunpack.c.l.b16 %v105
  %v379 = vunpack.c.h.b16 %v105
  %v380 = vunpack.c.l.b16 %v106
  %v381 = vunpack.c.l.b16 %v107
  %v382 = vunpack.c.h.b16 %v107
  %v383 = vunpack.c.l.b16 %v108
  %v384 = vunpack.c.l.b16 %v109
  %v385 = vunpack.c.h.b16 %v109
  %v386 = vunpack.c.l.b16 %v110
  %v387 = vunpack.c.l.b16 %v111
  %v388 = vunpack.c.h.b16 %v111
  %v389 = vunpack.c.l.b16 %v112
  %v390 = vunpack.c.l.b16 %v113
  %v391 = vunpack.c.h.b16 %v113
  %v392 = vunpack.c.l.b16 %v114
  %v393 = vunpack.c.l.b16 %v115
  %v394 = vunpack.c.h.b16 %v115
  %v395 = vunpack.c.l.b16 %v116
  %v396 = vunpack.c.l.b16 %v117
  %v397 = vunpack.c.h.b16 %v117
  %v398 = vunpack.c.l.b16 %v118
  %v399 = vunpack.c.l.b16 %v119
  %v400 = vunpack.c.h.b16 %v119
  %v401 = vunpack.c.l.b16 %v120
  %v402 = vunpack.c.l.b16 %v121
  %v403 = vunpack.c.h.b16 %v121
  %v404 = vunpack.c.l.b16 %v122
  %v405 = vunpack.c.l.b16 %v123
  %v406 = vunpack.c.h.b16 %v123
  %v407 = vunpack.c.l.b16 %v124
  %v408 = vunpack.c.l.b16 %v125
  %v409 = vunpack.c.h.b16 %v125
  %v410 = vunpack.c.l.b16 %v126
  %v411 = vunpack.c.l.b16 %v127
  %v412 = vunpack.c.h.b16 %v127
  %v413 = vunpack.c.l.b16 %v128
  %v414 = vunpack.c.l.b16 %v129
  %v415 = vunpack.c.h.b16 %v129
  %v416 = vunpack.c.l.b16 %v130
  %v417 = vunpack.c.l.b16 %v131
  %v418 = vunpack.c.h.b16 %v131
  %v419 = vunpack.c.l.b16 %v132
  %v420 = vunpack.c.l.b16 %v133
  %v421 = vunpack.c.h.b16 %v133
  %v422 = vunpack.c.l.b16 %v134
  %v423 = vunpack.c.l.b16 %v135
  %v424 = vunpack.c.h.b16 %v135
  %v425 = vunpack.c.l.b16 %v136
  %v426 = vunpack.c.l.b16 %v137
  %v427 = vunpack.c.h.b16 %v137
  %v428 = vunpack.c.l.b16 %v138
  %v429 = vunpack.c.l.b16 %v139
  %v430 = vunpack.c.h.b16 %v139
  %v431 = vunpack.c.l.b16 %v140
  %v432 = vunpack.c.l.b16 %v141
  %v433 = vunpack.c.h.b16 %v141
  %v434 = vunpack.c.l.b16 %v142
  %v435 = vunpack.c.l.b16 %v143
  %v436 = vunpack.c.h.b16 %v143
  %v437 = vunpack.c.l.b16 %v144
  %v438 = vunpack.c.l.b16 %v145
  %v439 = vunpack.c.h.b16 %v145
  %v440 = vunpack.c.l.b16 %v146
  %v441 = vunpack.c.l.b16 %v147
  %v442 = vunpack.c.h.b16 %v147
  %v443 = vunpack.c.l.b16 %v148
  %v444 = vunpack.c.l.b16 %v149
  %v445 = vunpack.c.h.b16 %v149
  %v446 = vunpack.c.l.b16 %v150
  %v447 = vunpack.c.l.b16 %v151
  %v448 = vunpack.c.h.b16 %v151
  %v449 = vunpack.c.l.b16 %v152
  %v450 = vunpack.c.l.b16 %v153
  %v451 = vunpack.c.h.b16 %v153
  %v452 = vunpack.c.l.b16 %v154
  %v453 = vunpack.c.l.b16 %v155
  %v454 = vunpack.c.h.b16 %v155
  %v455 = vunpack.c.l.b16 %v156
  %v456 = vunpack.c.l.b16 %v157
  %v457 = vunpack.c.h.b16 %v157
  %v458 = vunpack.c.l.b16 %v158
  %v459 = vunpack.c.l.b16 %v159
  %v460 = vunpack.c.h.b16 %v159
  %v461 = vunpack.c.l.b16 %v160
  %v462 = vunpack.c.l.b16 %v161
  %v463 = vunpack.c.h.b16 %v161
  %v464 = vunpack.c.l.b16 %v162
  %v465 = vunpack.c.l.b16 %v163
  %v466 = vunpack.c.h.b16 %v163
  %v467 = vunpack.c.l.b16 %v164
  %v468 = vpack.c.b16 %v336, %v333
  %v469 = vpack.c.b16 %v337, %v334
  %v470 = vpack.c.b16 %v338, %v335
  %v471 = vpack.c.b16 %v342, %v339
  %v472 = vpack.c.b16 %v343, %v340
  %v473 = vpack.c.b16 %v344, %v341
  %v474 = vpack.c.b16 %v348, %v345
  %v475 = vpack.c.b16 %v349, %v346
  %v476 = vpack.c.b16 %v350, %v347
  %v477 = vpack.c.b16 %v354, %v351
  %v478 = vpack.c.b16 %v355, %v352
  %v479 = vpack.c.b16 %v356, %v353
  %v480 = vpack.c.b16 %v360, %v357
  %v481 = vpack.c.b16 %v361, %v358
  %v482 = vpack.c.b16 %v362, %v359
  %v483 = vpack.c.b16 %v366, %v363
  %v484 = vpack.c.b16 %v367, %v364
  %v485 = vpack.c.b16 %v368, %v365
  %v486 = vpack.c.b16 %v372, %v369
  %v487 = vpack.c.b16 %v373, %v370
  %v488 = vpack.c.b16 %v374, %v371
  %v489 = vpack.c.b16 %v378, %v375
  %v490 = vpack.c.b16 %v379, %v376
  %v491 = vpack.c.b16 %v380, %v377
  %v492 = vpack.c.b16 %v384, %v381
  %v493 = vpack.c.b16 %v385, %v382
  %v494 = vpack.c.b16 %v386, %v383
  %v495 = vpack.c.b16 %v390, %v387
  %v496 = vpack.c.b16 %v391, %v388
  %v497 = vpack.c.b16 %v392, %v389
  %v498 = vpack.c.b16 %v396, %v393
  %v499 = vpack.c.b16 %v397, %v394
  %v500 = vpack.c.b16 %v398, %v395
  %v501 = vpack.c.b16 %v402, %v399
  %v502 = vpack.c.b16 %v403, %v400
  %v503 = vpack.c.b16 %v404, %v401
  %v504 = vpack.c.b16 %v408, %v405
  %v505 = vpack.c.b16 %v409, %v406
  %v506 = vpack.c.b16 %v410, %v407
  %v507 = vpack.c.b16 %v414, %v411
  %v508 = vpack.c.b16 %v415, %v412
  %v509 = vpack.c.b16 %v416, %v413
  %v510 = vpack.c.b16 %v420, %v417
  %v511 = vpack.c.b16 %v421, %v418
  %v512 = vpack.c.b16 %v422, %v419
  %v513 = vpack.c.b16 %v426, %v423
  %v514 = vpack.c.b16 %v427, %v424
  %v515 = vpack.c.b16 %v428, %v425
  %v516 = vpack.c.b16 %v432, %v429
  %v517 = vpack.c.b16 %v433, %v430
  %v518 = vpack.c.b16 %v434, %v431
  %v519 = vpack.c.b16 %v438, %v435
  %v520 = vpack.c.b16 %v439, %v436
  %v521 = vpack.c.b16 %v440, %v437
  %v522 = vpack.c.b16 %v444, %v441
  %v523 = vpack.c.b16 %v445, %v442
  %v524 = vpack.c.b16 %v446, %v443
  %v525 = vpack.c.b16 %v450, %v447
  %v526 = vpack.c.b16 %v451, %v448
  %v527 = vpack.c.b16 %v452, %v449
  %v528 = vpack.c.b16 %v456, %v453
  %v529 = vpack.c.b16 %v457, %v454
  %v530 = vpack.c.b16 %v458, %v455
  %v531 = vpack.c.b16 %v462, %v459
  %v532 = vpack.c.b16 %v463, %v460
  %v533 = vpack.c.b16 %v464, %v461
  %v534 = vpack.c.b16 %v465, %v465
  %v535 = vpack.c.b16 %v466, %v466
  %v536 = vpack.c.b16 %v467, %v467
  %vm603 = vcmask 850944
  %v605 = vsel %vm603, %v235, 0
  %vm607 = vcmask 1043456
  %v609 = vsel %vm607, %v534, 0
  %v612 = vsel %vm607, %v535, 0
  %v615 = vsel %vm607, %v536, 0
  %617 = vmatpush.bf16.msra.mxu0 %v489
  %618 = vmatpush.bf16.msra.mxu0 %v486
  %619 = vmatpush.bf16.msra.mxu0 %v483
  %620 = vmatpush.bf16.msra.mxu0 %v480
  %621 = vmatpush.bf16.msra.mxu0 %v477
  %622 = vmatpush.bf16.msra.mxu0 %v474
  %623 = vmatpush.bf16.msra.mxu0 %v471
  %624 = vmatpush.bf16.msra.mxu0 %v468
  %625 = vmatmul.bf16.gmra.mxu0 %v233
  %v626 = vpop.f32.mrf.mxu0
  %v627 = vadd.f32 %v237, %v626
  %v628 = vpop.f32.mrf.mxu0
  %629 = vdwg.mxu0
  %630 = vmatpush.bf16.msra.mxu0 %v513
  %631 = vmatpush.bf16.msra.mxu0 %v510
  %632 = vmatpush.bf16.msra.mxu0 %v507
  %633 = vmatpush.bf16.msra.mxu0 %v504
  %634 = vmatpush.bf16.msra.mxu0 %v501
  %635 = vmatpush.bf16.msra.mxu0 %v498
  %636 = vmatpush.bf16.msra.mxu0 %v495
  %637 = vmatpush.bf16.msra.mxu0 %v492
  %638 = vmatmul.bf16.gmra.mxu0 %v234
  %v639 = vpop.f32.mrf.mxu0
  %v640 = vadd.f32 %v627, %v639
  %v641 = vpop.f32.mrf.mxu0
  %642 = vdwg.mxu0
  %643 = vmatpush.bf16.msra.mxu0 0
  %644 = vmatpush.bf16.msra.mxu0 %v609
  %645 = vmatpush.bf16.msra.mxu0 %v531
  %646 = vmatpush.bf16.msra.mxu0 %v528
  %647 = vmatpush.bf16.msra.mxu0 %v525
  %648 = vmatpush.bf16.msra.mxu0 %v522
  %649 = vmatpush.bf16.msra.mxu0 %v519
  %650 = vmatpush.bf16.msra.mxu0 %v516
  %651 = vmatmul.bf16.gmra.mxu0 %v605
  %v652 = vpop.f32.mrf.mxu0
  %v653 = vadd.f32 %v640, %v652
  %v654 = vpop.f32.mrf.mxu0
  %655 = vdwg.mxu0
  %656 = vmatpush.bf16.msra.mxu0 %v490
  %657 = vmatpush.bf16.msra.mxu0 %v487
  %658 = vmatpush.bf16.msra.mxu0 %v484
  %659 = vmatpush.bf16.msra.mxu0 %v481
  %660 = vmatpush.bf16.msra.mxu0 %v478
  %661 = vmatpush.bf16.msra.mxu0 %v475
  %662 = vmatpush.bf16.msra.mxu0 %v472
  %663 = vmatpush.bf16.msra.mxu0 %v469
  %664 = vmatmul.bf16.gmra.mxu0 %v233
  %v665 = vpop.f32.mrf.mxu0
  %v666 = vadd.f32 %v238, %v665
  %v667 = vpop.f32.mrf.mxu0
  %668 = vdwg.mxu0
  %669 = vmatpush.bf16.msra.mxu0 %v514
  %670 = vmatpush.bf16.msra.mxu0 %v511
  %671 = vmatpush.bf16.msra.mxu0 %v508
  %672 = vmatpush.bf16.msra.mxu0 %v505
  %673 = vmatpush.bf16.msra.mxu0 %v502
  %674 = vmatpush.bf16.msra.mxu0 %v499
  %675 = vmatpush.bf16.msra.mxu0 %v496
  %676 = vmatpush.bf16.msra.mxu0 %v493
  %677 = vmatmul.bf16.gmra.mxu0 %v234
  %v678 = vpop.f32.mrf.mxu0
  %v679 = vadd.f32 %v666, %v678
  %v680 = vpop.f32.mrf.mxu0
  %681 = vdwg.mxu0
  %682 = vmatpush.bf16.msra.mxu0 0
  %683 = vmatpush.bf16.msra.mxu0 %v612
  %684 = vmatpush.bf16.msra.mxu0 %v532
  %685 = vmatpush.bf16.msra.mxu0 %v529
  %686 = vmatpush.bf16.msra.mxu0 %v526
  %687 = vmatpush.bf16.msra.mxu0 %v523
  %688 = vmatpush.bf16.msra.mxu0 %v520
  %689 = vmatpush.bf16.msra.mxu0 %v517
  %690 = vmatmul.bf16.gmra.mxu0 %v605
  %v691 = vpop.f32.mrf.mxu0
  %v692 = vadd.f32 %v679, %v691
  %v693 = vpop.f32.mrf.mxu0
  %694 = vdwg.mxu0
  %695 = vmatpush.bf16.msra.mxu0 %v491
  %696 = vmatpush.bf16.msra.mxu0 %v488
  %697 = vmatpush.bf16.msra.mxu0 %v485
  %698 = vmatpush.bf16.msra.mxu0 %v482
  %699 = vmatpush.bf16.msra.mxu0 %v479
  %700 = vmatpush.bf16.msra.mxu0 %v476
  %701 = vmatpush.bf16.msra.mxu0 %v473
  %702 = vmatpush.bf16.msra.mxu0 %v470
  %703 = vmatmul.bf16.gmra.mxu0 %v233
  %v704 = vpop.f32.mrf.mxu0
  %v705 = vadd.f32 %v239, %v704
  %v706 = vpop.f32.mrf.mxu0
  %707 = vdwg.mxu0
  %708 = vmatpush.bf16.msra.mxu0 %v515
  %709 = vmatpush.bf16.msra.mxu0 %v512
  %710 = vmatpush.bf16.msra.mxu0 %v509
  %711 = vmatpush.bf16.msra.mxu0 %v506
  %712 = vmatpush.bf16.msra.mxu0 %v503
  %713 = vmatpush.bf16.msra.mxu0 %v500
  %714 = vmatpush.bf16.msra.mxu0 %v497
  %715 = vmatpush.bf16.msra.mxu0 %v494
  %716 = vmatmul.bf16.gmra.mxu0 %v234
  %v717 = vpop.f32.mrf.mxu0
  %v718 = vadd.f32 %v705, %v717
  %v719 = vpop.f32.mrf.mxu0
  %720 = vdwg.mxu0
  %721 = vmatpush.bf16.msra.mxu0 0
  %722 = vmatpush.bf16.msra.mxu0 %v615
  %723 = vmatpush.bf16.msra.mxu0 %v533
  %724 = vmatpush.bf16.msra.mxu0 %v530
  %725 = vmatpush.bf16.msra.mxu0 %v527
  %726 = vmatpush.bf16.msra.mxu0 %v524
  %727 = vmatpush.bf16.msra.mxu0 %v521
  %728 = vmatpush.bf16.msra.mxu0 %v518
  %729 = vmatmul.bf16.gmra.mxu0 %v605
  %v730 = vpop.f32.mrf.mxu0
  %v731 = vadd.f32 %v718, %v730
  %v732 = vpop.f32.mrf.mxu0
  %733 = vdwg.mxu0
  %vm734 = vcmask 1041408
  %v735 = vsel %vm734, %v653, 0.0
  %v736 = vrot.slane %v735, 4
  %v737 = vadd.f32 %v735, %v736
  %v738 = vrot.slane %v737, 2
  %v739 = vadd.f32 %v737, %v738
  %v740 = vrot.slane %v739, 1
  %v741 = vadd.f32 %v739, %v740
  %v742 = vsel %vm734, %v692, 0.0
  %v743 = vrot.slane %v742, 4
  %v744 = vadd.f32 %v742, %v743
  %v745 = vrot.slane %v744, 2
  %v746 = vadd.f32 %v744, %v745
  %v747 = vrot.slane %v746, 1
  %v748 = vadd.f32 %v746, %v747
  %vm749 = vcmask 1008640
  %v750 = vsel %vm749, %v731, 0.0
  %v751 = vrot.slane %v750, 4
  %v752 = vadd.f32 %v750, %v751
  %v753 = vrot.slane %v752, 2
  %v754 = vadd.f32 %v752, %v753
  %v755 = vrot.slane %v754, 1
  %v756 = vadd.f32 %v754, %v755
  %v757 = vmul.f32 %v653, %v653
  %v758 = vmul.f32 %v692, %v692
  %v759 = vmul.f32 %v731, %v731
  %v760 = vsel %vm734, %v757, 0.0
  %v761 = vrot.slane %v760, 4
  %v762 = vadd.f32 %v760, %v761
  %v763 = vrot.slane %v762, 2
  %v764 = vadd.f32 %v762, %v763
  %v765 = vrot.slane %v764, 1
  %v766 = vadd.f32 %v764, %v765
  %v767 = vsel %vm734, %v758, 0.0
  %v768 = vrot.slane %v767, 4
  %v769 = vadd.f32 %v767, %v768
  %v770 = vrot.slane %v769, 2
  %v771 = vadd.f32 %v769, %v770
  %v772 = vrot.slane %v771, 1
  %v773 = vadd.f32 %v771, %v772
  %v774 = vsel %vm749, %v759, 0.0
  %v775 = vrot.slane %v774, 4
  %v776 = vadd.f32 %v774, %v775
  %v777 = vrot.slane %v776, 2
  %v778 = vadd.f32 %v776, %v777
  %v779 = vrot.slane %v778, 1
  %v780 = vadd.f32 %v778, %v779
  %vm781 = vcmask 1040384
  %v782 = vsel %vm781, %v741, %v766
  %v783 = vsel %vm781, %v748, %v773
  %v784 = vsel %vm781, %v756, %v780
  %vm785 = vcmask 1014784
  %v787 = vsel %vm785, %v784, 0
  %v790 = vsel %vm607, %v215, 0
  %792 = vmatpush.msra.mxu0 %v183
  %793 = vmatpush.msra.mxu0 %v182
  %794 = vmatpush.msra.mxu0 %v181
  %795 = vmatpush.msra.mxu0 %v180
  %796 = vmatpush.msra.mxu0 %v179
  %797 = vmatpush.msra.mxu0 %v178
  %798 = vmatpush.msra.mxu0 %v177
  %799 = vmatpush.msra.mxu0 %v176
  %800 = vmatpush.msra.mxu0 %v175
  %801 = vmatpush.msra.mxu0 %v174
  %802 = vmatpush.msra.mxu0 %v173
  %803 = vmatpush.msra.mxu0 %v172
  %804 = vmatpush.msra.mxu0 %v171
  %805 = vmatpush.msra.mxu0 %v170
  %806 = vmatpush.msra.mxu0 %v169
  %807 = vmatpush.msra.mxu0 %v168
  %808 = vmatmul.f32.gmra.mxu0 %v782
  %v809 = vpop.f32.mrf.mxu0
  %v810 = vadd.f32 0.0, %v809
  %811 = vdwg.mxu0
  %812 = vmatpush.msra.mxu0 %v199
  %813 = vmatpush.msra.mxu0 %v198
  %814 = vmatpush.msra.mxu0 %v197
  %815 = vmatpush.msra.mxu0 %v196
  %816 = vmatpush.msra.mxu0 %v195
  %817 = vmatpush.msra.mxu0 %v194
  %818 = vmatpush.msra.mxu0 %v193
  %819 = vmatpush.msra.mxu0 %v192
  %820 = vmatpush.msra.mxu0 %v191
  %821 = vmatpush.msra.mxu0 %v190
  %822 = vmatpush.msra.mxu0 %v189
  %823 = vmatpush.msra.mxu0 %v188
  %824 = vmatpush.msra.mxu0 %v187
  %825 = vmatpush.msra.mxu0 %v186
  %826 = vmatpush.msra.mxu0 %v185
  %827 = vmatpush.msra.mxu0 %v184
  %828 = vmatmul.f32.gmra.mxu0 %v783
  %v829 = vpop.f32.mrf.mxu0
  %v830 = vadd.f32 %v810, %v829
  %831 = vdwg.mxu0
  %832 = vmatpush.msra.mxu0 %v790
  %833 = vmatpush.msra.mxu0 %v214
  %834 = vmatpush.msra.mxu0 %v213
  %835 = vmatpush.msra.mxu0 %v212
  %836 = vmatpush.msra.mxu0 %v211
  %837 = vmatpush.msra.mxu0 %v210
  %838 = vmatpush.msra.mxu0 %v209
  %839 = vmatpush.msra.mxu0 %v208
  %840 = vmatpush.msra.mxu0 %v207
  %841 = vmatpush.msra.mxu0 %v206
  %842 = vmatpush.msra.mxu0 %v205
  %843 = vmatpush.msra.mxu0 %v204
  %844 = vmatpush.msra.mxu0 %v203
  %845 = vmatpush.msra.mxu0 %v202
  %846 = vmatpush.msra.mxu0 %v201
  %847 = vmatpush.msra.mxu0 %v200
  %848 = vmatmul.f32.gmra.mxu0 %v787
  %v849 = vpop.f32.mrf.mxu0
  %v850 = vadd.f32 %v830, %v849
  %851 = vdwg.mxu0
  %v852 = vmul.f32 %v850, 0.02631579
  %v853 = vmul.f32 %v852, %v852
  %v855 = vrot.slane %v853, 7
  %v857 = vsub.f32 %v852, %v855
  %v858 = vmax.f32 %v857, 0.0
  %v859 = vadd.f32 %v858, 1e-05
  %v860 = vrsqrt.pop %v859
  %v861 = vmul.f32 %v860, %v859
  %v862 = vmul.f32 %v861, %v860
  %v863 = vmul.f32 0.5, %v862
  %v864 = vsub.f32 1.5, %v863
  %v865 = vmul.f32 %v860, %v864
  %vm866 = vweird.f32 %v859
  %vm867 = vweird.f32 %v860
  %vm868 = vmor %vm866, %vm867
  %v869 = vsel %vm868, %v860, %v865
  %871 = vst [vmem:[#allocation1] sm:$0xff] %v869
  %s872 = scalar_lea.vmem [#allocation1], 1
  %v873 = vld [vmem:[%s872] ss:$9 sm:$0xff]
  %v875 = vmul.f32 %v166, %v873
  %v876 = vmul.f32 %v852, %v875
  %v877 = vsub.f32 %v167, %v876
  %v879 = vperm.slane %v877, 0
  %v881 = vsel %vm781, %v875, %v879
  %vm882 = vcmask 162816
  %v884 = vsel %vm882, %v881, 0
  %v887 = vsel %vm607, %v222, 0
  %v890 = vsel %vm607, %v223, 0
  %v893 = vsel %vm607, %v224, 0
  %895 = vmatpush.msra.mxu0 0.0
  %896 = vmatpush.msra.mxu0 0.0
  %897 = vmatpush.msra.mxu0 0.0
  %898 = vmatpush.msra.mxu0 0.0
  %899 = vmatpush.msra.mxu0 0.0
  %900 = vmatpush.msra.mxu0 0.0
  %901 = vmatpush.msra.mxu0 0.0
  %902 = vmatpush.msra.mxu0 0.0
  %903 = vmatpush.msra.mxu0 0.0
  %904 = vmatpush.msra.mxu0 0.0
  %905 = vmatpush.msra.mxu0 0.0
  %906 = vmatpush.msra.mxu0 0.0
  %907 = vmatpush.msra.mxu0 0.0
  %908 = vmatpush.msra.mxu0 %v887
  %909 = vmatpush.msra.mxu0 %v219
  %910 = vmatpush.msra.mxu0 %v216
  %911 = vmatmul.f32.gmra.mxu0 %v884
  %v912 = vpop.f32.mrf.mxu0
  %v913 = vadd.f32 0.0, %v912
  %914 = vdwg.mxu0
  %915 = vmatpush.msra.mxu0 0.0
  %916 = vmatpush.msra.mxu0 0.0
  %917 = vmatpush.msra.mxu0 0.0
  %918 = vmatpush.msra.mxu0 0.0
  %919 = vmatpush.msra.mxu0 0.0
  %920 = vmatpush.msra.mxu0 0.0
  %921 = vmatpush.msra.mxu0 0.0
  %922 = vmatpush.msra.mxu0 0.0
  %923 = vmatpush.msra.mxu0 0.0
  %924 = vmatpush.msra.mxu0 0.0
  %925 = vmatpush.msra.mxu0 0.0
  %926 = vmatpush.msra.mxu0 0.0
  %927 = vmatpush.msra.mxu0 0.0
  %928 = vmatpush.msra.mxu0 %v890
  %929 = vmatpush.msra.mxu0 %v220
  %930 = vmatpush.msra.mxu0 %v217
  %931 = vmatmul.f32.gmra.mxu0 %v884
  %v932 = vpop.f32.mrf.mxu0
  %v933 = vadd.f32 0.0, %v932
  %934 = vdwg.mxu0
  %935 = vmatpush.msra.mxu0 0.0
  %936 = vmatpush.msra.mxu0 0.0
  %937 = vmatpush.msra.mxu0 0.0
  %938 = vmatpush.msra.mxu0 0.0
  %939 = vmatpush.msra.mxu0 0.0
  %940 = vmatpush.msra.mxu0 0.0
  %941 = vmatpush.msra.mxu0 0.0
  %942 = vmatpush.msra.mxu0 0.0
  %943 = vmatpush.msra.mxu0 0.0
  %944 = vmatpush.msra.mxu0 0.0
  %945 = vmatpush.msra.mxu0 0.0
  %946 = vmatpush.msra.mxu0 0.0
  %947 = vmatpush.msra.mxu0 0.0
  %948 = vmatpush.msra.mxu0 %v893
  %949 = vmatpush.msra.mxu0 %v221
  %950 = vmatpush.msra.mxu0 %v218
  %951 = vmatmul.f32.gmra.mxu0 %v884
  %v952 = vpop.f32.mrf.mxu0
  %v953 = vadd.f32 0.0, %v952
  %954 = vdwg.mxu0
  %v955 = vperm.slane %v913, 0
  %v956 = vperm.slane %v933, 0
  %v957 = vperm.slane %v953, 0
  %v958 = vmul.f32 %v653, %v955
  %v959 = vmul.f32 %v692, %v956
  %v960 = vmul.f32 %v731, %v957
  %v961 = vperm.slane %v913, 1
  %v962 = vperm.slane %v933, 1
  %v963 = vperm.slane %v953, 1
  %v964 = vadd.f32 %v958, %v961
  %v965 = vadd.f32 %v959, %v962
  %v966 = vadd.f32 %v960, %v963
  %v967 = vmax.f32 %v964, 0.0
  %v968 = vmax.f32 %v965, 0.0
  %v969 = vmax.f32 %v966, 0.0
  %v970 = vld [vmem:[%s7] sm:$0xff]
  %v971 = vld [vmem:[%s7 + $0x8] sm:$0xf]
  %v972 = vld [vmem:[%s7 + $0xc] sm:$0xff]
  %v973 = vld [vmem:[%s7 + $0x14] sm:$0xf]
  %v974 = vld [vmem:[%s7 + $0x18] sm:$0xff]
  %v975 = vld [vmem:[%s7 + $0x20] sm:$0xf]
  %v976 = vld [vmem:[%s7 + $0x24] sm:$0xff]
  %v977 = vld [vmem:[%s7 + $0x2c] sm:$0xf]
  %v978 = vld [vmem:[%s7 + $0x30] sm:$0xff]
  %v979 = vld [vmem:[%s7 + $0x38] sm:$0xf]
  %v980 = vld [vmem:[%s7 + $0x3c] sm:$0xff]
  %v981 = vld [vmem:[%s7 + $0x44] sm:$0xf]
  %v982 = vld [vmem:[%s7 + $0x48] sm:$0xff]
  %v983 = vld [vmem:[%s7 + $0x50] sm:$0xf]
  %v984 = vld [vmem:[%s7 + $0x54] sm:$0xff]
  %v985 = vld [vmem:[%s7 + $0x5c] sm:$0xf]
  %v986 = vld [vmem:[%s7 + $0x60] sm:$0xff]
  %v987 = vld [vmem:[%s7 + $0x68] sm:$0xf]
  %v988 = vld [vmem:[%s7 + $0x6c] sm:$0xff]
  %v989 = vld [vmem:[%s7 + $0x74] sm:$0xf]
  %v990 = vld [vmem:[%s7 + $0x78] sm:$0xff]
  %v991 = vld [vmem:[%s7 + $0x80] sm:$0xf]
  %v992 = vld [vmem:[%s7 + $0x84] sm:$0xff]
  %v993 = vld [vmem:[%s7 + $0x8c] sm:$0xf]
  %v994 = vld [vmem:[%s7 + $0x90] sm:$0xff]
  %v995 = vld [vmem:[%s7 + $0x98] sm:$0xf]
  %v996 = vld [vmem:[%s7 + $0x9c] sm:$0xff]
  %v997 = vld [vmem:[%s7 + $0xa4] sm:$0xf]
  %v998 = vld [vmem:[%s7 + $0xa8] sm:$0xff]
  %v999 = vld [vmem:[%s7 + $0xb0] sm:$0xf]
  %v1000 = vld [vmem:[%s7 + $0xb4] sm:$0xff]
  %v1001 = vld [vmem:[%s7 + $0xbc] sm:$0xf]
  %v1002 = vld [vmem:[%s7 + $0xc0] sm:$0xff]
  %v1003 = vld [vmem:[%s7 + $0xc8] sm:$0xf]
  %v1004 = vld [vmem:[%s7 + $0xcc] sm:$0xff]
  %v1005 = vld [vmem:[%s7 + $0xd4] sm:$0xf]
  %v1006 = vld [vmem:[%s7 + $0xd8] sm:$0xff]
  %v1007 = vld [vmem:[%s7 + $0xe0] sm:$0xf]
  %v1008 = vld [vmem:[%s7 + $0xe4] sm:$0xff]
  %v1009 = vld [vmem:[%s7 + $0xec] sm:$0xf]
  %v1010 = vld [vmem:[%s7 + $0xf0] sm:$0xff]
  %v1011 = vld [vmem:[%s7 + $0xf8] sm:$0xf]
  %v1012 = vld [vmem:[%s7 + $0xfc] sm:$0xff]
  %v1013 = vld [vmem:[%s7 + $0x104] sm:$0xf]
  %v1014 = vld [vmem:[%s7 + $0x108] sm:$0xff]
  %v1015 = vld [vmem:[%s7 + $0x110] sm:$0xf]
  %v1016 = vld [vmem:[%s7 + $0x114] sm:$0xff]
  %v1017 = vld [vmem:[%s7 + $0x11c] sm:$0xf]
  %v1018 = vld [vmem:[%s7 + $0x120] sm:$0xff]
  %v1019 = vld [vmem:[%s7 + $0x128] sm:$0xf]
  %v1020 = vld [vmem:[%s7 + $0x12c] sm:$0xff]
  %v1021 = vld [vmem:[%s7 + $0x134] sm:$0xf]
  %v1022 = vld [vmem:[%s7 + $0x138] sm:$0xff]
  %v1023 = vld [vmem:[%s7 + $0x140] sm:$0xf]
  %v1024 = vld [vmem:[%s7 + $0x144] sm:$0xff]
  %v1025 = vld [vmem:[%s7 + $0x14c] sm:$0xf]
  %v1026 = vld [vmem:[%s7 + $0x150] sm:$0xff]
  %v1027 = vld [vmem:[%s7 + $0x158] sm:$0xf]
  %v1028 = vld [vmem:[%s7 + $0x15c] sm:$0xff]
  %v1029 = vld [vmem:[%s7 + $0x164] sm:$0xf]
  %v1030 = vld [vmem:[%s7 + $0x168] sm:$0xff]
  %v1031 = vld [vmem:[%s7 + $0x170] sm:$0xf]
  %v1032 = vld [vmem:[%s7 + $0x174] sm:$0xff]
  %v1033 = vld [vmem:[%s7 + $0x17c] sm:$0xf]
  %v1034 = vld [vmem:[%s7 + $0x180] sm:$0xff]
  %v1035 = vld [vmem:[%s7 + $0x188] sm:$0xf]
  %v1036 = vld [vmem:[%s7 + $0x18c] sm:$0xff]
  %v1037 = vld [vmem:[%s7 + $0x194] sm:$0xf]
  %v1038 = vld [vmem:[%s7 + $0x198] sm:$0xff]
  %v1039 = vld [vmem:[%s7 + $0x1a0] sm:$0xf]
  %v1040 = vld [vmem:[%s7 + $0x1a4] sm:$0xff]
  %v1041 = vld [vmem:[%s7 + $0x1ac] sm:$0xf]
  %v1042 = vld [vmem:[%s7 + $0x1b0] sm:$0xff]
  %v1043 = vld [vmem:[%s7 + $0x1b8] sm:$0xf]
  %v1044 = vld [vmem:[%s7 + $0x1bc] sm:$0xff]
  %v1045 = vld [vmem:[%s7 + $0x1c4] sm:$0xf]
  %v1046 = vld [vmem:[%s7 + $0x1c8] sm:$0xff]
  %v1047 = vld [vmem:[%s7 + $0x1d0] sm:$0xf]
  %v1048 = vld [vmem:[%s7 + $0x1d4] sm:$0xff]
  %v1049 = vld [vmem:[%s7 + $0x1dc] sm:$0xf]
  %v1050 = vld [vmem:[%s7 + $0x1e0] sm:$0xff]
  %v1051 = vld [vmem:[%s7 + $0x1e8] sm:$0xf]
  %v1052 = vld [vmem:[%s7 + $0x1ec] sm:$0xff]
  %v1053 = vld [vmem:[%s7 + $0x1f4] sm:$0xf]
  %v1054 = vld [vmem:[%s7 + $0x1f8] sm:$0xff]
  %v1055 = vld [vmem:[%s7 + $0x200] sm:$0xf]
  %v1056 = vld [vmem:[%s7 + $0x204] sm:$0xff]
  %v1057 = vld [vmem:[%s7 + $0x20c] sm:$0xf]
  %v1058 = vld [vmem:[%s7 + $0x210] sm:$0xff]
  %v1059 = vld [vmem:[%s7 + $0x218] sm:$0xf]
  %v1060 = vld [vmem:[%s7 + $0x21c] sm:$0xff]
  %v1061 = vld [vmem:[%s7 + $0x224] sm:$0xf]
  %v1062 = vld [vmem:[%s7 + $0x228] sm:$0xff]
  %v1063 = vld [vmem:[%s7 + $0x230] sm:$0xf]
  %v1064 = vld [vmem:[%s7 + $0x234] sm:$0x33]
  %v1065 = vld [vmem:[%s7 + $0x23c] sm:$0x3]
  %v1066 = vld [vmem:[%s8] sm:$0x7]
  %v1067 = vld [vmem:[%s9] sm:$0x1]
  %v1068 = vld [vmem:[%s10] sm:$0x1]
  %v1069 = vld [vmem:[%s11] sm:$0xff]
  %v1070 = vld [vmem:[%s11 + $0x8] sm:$0xff]
  %v1071 = vld [vmem:[%s11 + $0x10] sm:$0xff]
  %v1072 = vld [vmem:[%s11 + $0x18] sm:$0xff]
  %v1073 = vld [vmem:[%s11 + $0x20] sm:$0xff]
  %v1074 = vld [vmem:[%s11 + $0x28] sm:$0xff]
  %v1075 = vld [vmem:[%s11 + $0x30] sm:$0xff]
  %v1076 = vld [vmem:[%s11 + $0x38] sm:$0xff]
  %v1077 = vld [vmem:[%s11 + $0x40] sm:$0xff]
  %v1078 = vld [vmem:[%s11 + $0x48] sm:$0xff]
  %v1079 = vld [vmem:[%s11 + $0x50] sm:$0xff]
  %v1080 = vld [vmem:[%s11 + $0x58] sm:$0xff]
  %v1081 = vld [vmem:[%s11 + $0x60] sm:$0xff]
  %v1082 = vld [vmem:[%s11 + $0x68] sm:$0xff]
  %v1083 = vld [vmem:[%s11 + $0x70] sm:$0xff]
  %v1084 = vld [vmem:[%s11 + $0x78] sm:$0xff]
  %v1085 = vld [vmem:[%s11 + $0x80] sm:$0xff]
  %v1086 = vld [vmem:[%s11 + $0x88] sm:$0xff]
  %v1087 = vld [vmem:[%s11 + $0x90] sm:$0xff]
  %v1088 = vld [vmem:[%s11 + $0x98] sm:$0xff]
  %v1089 = vld [vmem:[%s11 + $0xa0] sm:$0xff]
  %v1090 = vld [vmem:[%s11 + $0xa8] sm:$0xff]
  %v1091 = vld [vmem:[%s11 + $0xb0] sm:$0xff]
  %v1092 = vld [vmem:[%s11 + $0xb8] sm:$0xff]
  %v1093 = vld [vmem:[%s11 + $0xc0] sm:$0xff]
  %v1094 = vld [vmem:[%s11 + $0xc8] sm:$0xff]
  %v1095 = vld [vmem:[%s11 + $0xd0] sm:$0xff]
  %v1096 = vld [vmem:[%s11 + $0xd8] sm:$0xff]
  %v1097 = vld [vmem:[%s11 + $0xe0] sm:$0xff]
  %v1098 = vld [vmem:[%s11 + $0xe8] sm:$0xff]
  %v1099 = vld [vmem:[%s11 + $0xf0] sm:$0xff]
  %v1100 = vld [vmem:[%s11 + $0xf8] sm:$0xff]
  %v1101 = vld [vmem:[%s11 + $0x100] sm:$0xff]
  %v1102 = vld [vmem:[%s11 + $0x108] sm:$0xff]
  %v1103 = vld [vmem:[%s11 + $0x110] sm:$0xff]
  %v1104 = vld [vmem:[%s11 + $0x118] sm:$0xff]
  %v1105 = vld [vmem:[%s11 + $0x120] sm:$0xff]
  %v1106 = vld [vmem:[%s11 + $0x128] sm:$0xff]
  %v1107 = vld [vmem:[%s11 + $0x130] sm:$0xff]
  %v1108 = vld [vmem:[%s11 + $0x138] sm:$0xff]
  %v1109 = vld [vmem:[%s12] sm:$0xff]
  %v1110 = vld [vmem:[%s12 + $0x8] sm:$0xff]
  %v1111 = vld [vmem:[%s12 + $0x10] sm:$0xff]
  %v1112 = vld [vmem:[%s12 + $0x18] sm:$0xff]
  %v1113 = vld [vmem:[%s12 + $0x20] sm:$0xff]
  %v1114 = vld [vmem:[%s12 + $0x28] sm:$0xff]
  %v1115 = vld [vmem:[%s12 + $0x30] sm:$0xff]
  %v1116 = vld [vmem:[%s12 + $0x38] sm:$0xff]
  %v1117 = vld [vmem:[%s12 + $0x40] sm:$0xff]
  %v1118 = vld [vmem:[%s12 + $0x48] sm:$0xff]
  %v1119 = vld [vmem:[%s12 + $0x50] sm:$0xff]
  %v1120 = vld [vmem:[%s12 + $0x58] sm:$0xff]
  %v1121 = vld [vmem:[%s12 + $0x60] sm:$0xff]
  %v1122 = vld [vmem:[%s12 + $0x68] sm:$0xff]
  %v1123 = vld [vmem:[%s12 + $0x70] sm:$0xff]
  %v1124 = vpack.c.bf16 %v967, %v967
  %v1125 = vpack.c.bf16 %v968, %v968
  %v1126 = vpack.c.bf16 %v969, %v969
  %v1128 = vperm.slane %v1066, 0
  %v1129 = vperm.slane %v1066, 1
  %v1130 = vperm.slane %v1066, 2
  %v1230 = vunpack.c.l.b16 %v970
  %v1231 = vunpack.c.h.b16 %v970
  %v1232 = vunpack.c.l.b16 %v971
  %v1233 = vunpack.c.l.b16 %v972
  %v1234 = vunpack.c.h.b16 %v972
  %v1235 = vunpack.c.l.b16 %v973
  %v1236 = vunpack.c.l.b16 %v974
  %v1237 = vunpack.c.h.b16 %v974
  %v1238 = vunpack.c.l.b16 %v975
  %v1239 = vunpack.c.l.b16 %v976
  %v1240 = vunpack.c.h.b16 %v976
  %v1241 = vunpack.c.l.b16 %v977
  %v1242 = vunpack.c.l.b16 %v978
  %v1243 = vunpack.c.h.b16 %v978
  %v1244 = vunpack.c.l.b16 %v979
  %v1245 = vunpack.c.l.b16 %v980
  %v1246 = vunpack.c.h.b16 %v980
  %v1247 = vunpack.c.l.b16 %v981
  %v1248 = vunpack.c.l.b16 %v982
  %v1249 = vunpack.c.h.b16 %v982
  %v1250 = vunpack.c.l.b16 %v983
  %v1251 = vunpack.c.l.b16 %v984
  %v1252 = vunpack.c.h.b16 %v984
  %v1253 = vunpack.c.l.b16 %v985
  %v1254 = vunpack.c.l.b16 %v986
  %v1255 = vunpack.c.h.b16 %v986
  %v1256 = vunpack.c.l.b16 %v987
  %v1257 = vunpack.c.l.b16 %v988
  %v1258 = vunpack.c.h.b16 %v988
  %v1259 = vunpack.c.l.b16 %v989
  %v1260 = vunpack.c.l.b16 %v990
  %v1261 = vunpack.c.h.b16 %v990
  %v1262 = vunpack.c.l.b16 %v991
  %v1263 = vunpack.c.l.b16 %v992
  %v1264 = vunpack.c.h.b16 %v992
  %v1265 = vunpack.c.l.b16 %v993
  %v1266 = vunpack.c.l.b16 %v994
  %v1267 = vunpack.c.h.b16 %v994
  %v1268 = vunpack.c.l.b16 %v995
  %v1269 = vunpack.c.l.b16 %v996
  %v1270 = vunpack.c.h.b16 %v996
  %v1271 = vunpack.c.l.b16 %v997
  %v1272 = vunpack.c.l.b16 %v998
  %v1273 = vunpack.c.h.b16 %v998
  %v1274 = vunpack.c.l.b16 %v999
  %v1275 = vunpack.c.l.b16 %v1000
  %v1276 = vunpack.c.h.b16 %v1000
  %v1277 = vunpack.c.l.b16 %v1001
  %v1278 = vunpack.c.l.b16 %v1002
  %v1279 = vunpack.c.h.b16 %v1002
  %v1280 = vunpack.c.l.b16 %v1003
  %v1281 = vunpack.c.l.b16 %v1004
  %v1282 = vunpack.c.h.b16 %v1004
  %v1283 = vunpack.c.l.b16 %v1005
  %v1284 = vunpack.c.l.b16 %v1006
  %v1285 = vunpack.c.h.b16 %v1006
  %v1286 = vunpack.c.l.b16 %v1007
  %v1287 = vunpack.c.l.b16 %v1008
  %v1288 = vunpack.c.h.b16 %v1008
  %v1289 = vunpack.c.l.b16 %v1009
  %v1290 = vunpack.c.l.b16 %v1010
  %v1291 = vunpack.c.h.b16 %v1010
  %v1292 = vunpack.c.l.b16 %v1011
  %v1293 = vunpack.c.l.b16 %v1012
  %v1294 = vunpack.c.h.b16 %v1012
  %v1295 = vunpack.c.l.b16 %v1013
  %v1296 = vunpack.c.l.b16 %v1014
  %v1297 = vunpack.c.h.b16 %v1014
  %v1298 = vunpack.c.l.b16 %v1015
  %v1299 = vunpack.c.l.b16 %v1016
  %v1300 = vunpack.c.h.b16 %v1016
  %v1301 = vunpack.c.l.b16 %v1017
  %v1302 = vunpack.c.l.b16 %v1018
  %v1303 = vunpack.c.h.b16 %v1018
  %v1304 = vunpack.c.l.b16 %v1019
  %v1305 = vunpack.c.l.b16 %v1020
  %v1306 = vunpack.c.h.b16 %v1020
  %v1307 = vunpack.c.l.b16 %v1021
  %v1308 = vunpack.c.l.b16 %v1022
  %v1309 = vunpack.c.h.b16 %v1022
  %v1310 = vunpack.c.l.b16 %v1023
  %v1311 = vunpack.c.l.b16 %v1024
  %v1312 = vunpack.c.h.b16 %v1024
  %v1313 = vunpack.c.l.b16 %v1025
  %v1314 = vunpack.c.l.b16 %v1026
  %v1315 = vunpack.c.h.b16 %v1026
  %v1316 = vunpack.c.l.b16 %v1027
  %v1317 = vunpack.c.l.b16 %v1028
  %v1318 = vunpack.c.h.b16 %v1028
  %v1319 = vunpack.c.l.b16 %v1029
  %v1320 = vunpack.c.l.b16 %v1030
  %v1321 = vunpack.c.h.b16 %v1030
  %v1322 = vunpack.c.l.b16 %v1031
  %v1323 = vunpack.c.l.b16 %v1032
  %v1324 = vunpack.c.h.b16 %v1032
  %v1325 = vunpack.c.l.b16 %v1033
  %v1326 = vunpack.c.l.b16 %v1034
  %v1327 = vunpack.c.h.b16 %v1034
  %v1328 = vunpack.c.l.b16 %v1035
  %v1329 = vunpack.c.l.b16 %v1036
  %v1330 = vunpack.c.h.b16 %v1036
  %v1331 = vunpack.c.l.b16 %v1037
  %v1332 = vunpack.c.l.b16 %v1038
  %v1333 = vunpack.c.h.b16 %v1038
  %v1334 = vunpack.c.l.b16 %v1039
  %v1335 = vunpack.c.l.b16 %v1040
  %v1336 = vunpack.c.h.b16 %v1040
  %v1337 = vunpack.c.l.b16 %v1041
  %v1338 = vunpack.c.l.b16 %v1042
  %v1339 = vunpack.c.h.b16 %v1042
  %v1340 = vunpack.c.l.b16 %v1043
  %v1341 = vunpack.c.l.b16 %v1044
  %v1342 = vunpack.c.h.b16 %v1044
  %v1343 = vunpack.c.l.b16 %v1045
  %v1344 = vunpack.c.l.b16 %v1046
  %v1345 = vunpack.c.h.b16 %v1046
  %v1346 = vunpack.c.l.b16 %v1047
  %v1347 = vunpack.c.l.b16 %v1048
  %v1348 = vunpack.c.h.b16 %v1048
  %v1349 = vunpack.c.l.b16 %v1049
  %v1350 = vunpack.c.l.b16 %v1050
  %v1351 = vunpack.c.h.b16 %v1050
  %v1352 = vunpack.c.l.b16 %v1051
  %v1353 = vunpack.c.l.b16 %v1052
  %v1354 = vunpack.c.h.b16 %v1052
  %v1355 = vunpack.c.l.b16 %v1053
  %v1356 = vunpack.c.l.b16 %v1054
  %v1357 = vunpack.c.h.b16 %v1054
  %v1358 = vunpack.c.l.b16 %v1055
  %v1359 = vunpack.c.l.b16 %v1056
  %v1360 = vunpack.c.h.b16 %v1056
  %v1361 = vunpack.c.l.b16 %v1057
  %v1362 = vunpack.c.l.b16 %v1058
  %v1363 = vunpack.c.h.b16 %v1058
  %v1364 = vunpack.c.l.b16 %v1059
  %v1365 = vunpack.c.l.b16 %v1060
  %v1366 = vunpack.c.h.b16 %v1060
  %v1367 = vunpack.c.l.b16 %v1061
  %v1368 = vunpack.c.l.b16 %v1062
  %v1369 = vunpack.c.h.b16 %v1062
  %v1370 = vunpack.c.l.b16 %v1063
  %v1371 = vunpack.c.l.b16 %v1064
  %v1372 = vunpack.c.h.b16 %v1064
  %v1373 = vunpack.c.l.b16 %v1065
  %v1374 = vpack.c.b16 %v1233, %v1230
  %v1375 = vpack.c.b16 %v1234, %v1231
  %v1376 = vpack.c.b16 %v1235, %v1232
  %v1377 = vpack.c.b16 %v1239, %v1236
  %v1378 = vpack.c.b16 %v1240, %v1237
  %v1379 = vpack.c.b16 %v1241, %v1238
  %v1380 = vpack.c.b16 %v1245, %v1242
  %v1381 = vpack.c.b16 %v1246, %v1243
  %v1382 = vpack.c.b16 %v1247, %v1244
  %v1383 = vpack.c.b16 %v1251, %v1248
  %v1384 = vpack.c.b16 %v1252, %v1249
  %v1385 = vpack.c.b16 %v1253, %v1250
  %v1386 = vpack.c.b16 %v1257, %v1254
  %v1387 = vpack.c.b16 %v1258, %v1255
  %v1388 = vpack.c.b16 %v1259, %v1256
  %v1389 = vpack.c.b16 %v1263, %v1260
  %v1390 = vpack.c.b16 %v1264, %v1261
  %v1391 = vpack.c.b16 %v1265, %v1262
  %v1392 = vpack.c.b16 %v1269, %v1266
  %v1393 = vpack.c.b16 %v1270, %v1267
  %v1394 = vpack.c.b16 %v1271, %v1268
  %v1395 = vpack.c.b16 %v1275, %v1272
  %v1396 = vpack.c.b16 %v1276, %v1273
  %v1397 = vpack.c.b16 %v1277, %v1274
  %v1398 = vpack.c.b16 %v1281, %v1278
  %v1399 = vpack.c.b16 %v1282, %v1279
  %v1400 = vpack.c.b16 %v1283, %v1280
  %v1401 = vpack.c.b16 %v1287, %v1284
  %v1402 = vpack.c.b16 %v1288, %v1285
  %v1403 = vpack.c.b16 %v1289, %v1286
  %v1404 = vpack.c.b16 %v1293, %v1290
  %v1405 = vpack.c.b16 %v1294, %v1291
  %v1406 = vpack.c.b16 %v1295, %v1292
  %v1407 = vpack.c.b16 %v1299, %v1296
  %v1408 = vpack.c.b16 %v1300, %v1297
  %v1409 = vpack.c.b16 %v1301, %v1298
  %v1410 = vpack.c.b16 %v1305, %v1302
  %v1411 = vpack.c.b16 %v1306, %v1303
  %v1412 = vpack.c.b16 %v1307, %v1304
  %v1413 = vpack.c.b16 %v1311, %v1308
  %v1414 = vpack.c.b16 %v1312, %v1309
  %v1415 = vpack.c.b16 %v1313, %v1310
  %v1416 = vpack.c.b16 %v1317, %v1314
  %v1417 = vpack.c.b16 %v1318, %v1315
  %v1418 = vpack.c.b16 %v1319, %v1316
  %v1419 = vpack.c.b16 %v1323, %v1320
  %v1420 = vpack.c.b16 %v1324, %v1321
  %v1421 = vpack.c.b16 %v1325, %v1322
  %v1422 = vpack.c.b16 %v1329, %v1326
  %v1423 = vpack.c.b16 %v1330, %v1327
  %v1424 = vpack.c.b16 %v1331, %v1328
  %v1425 = vpack.c.b16 %v1335, %v1332
  %v1426 = vpack.c.b16 %v1336, %v1333
  %v1427 = vpack.c.b16 %v1337, %v1334
  %v1428 = vpack.c.b16 %v1341, %v1338
  %v1429 = vpack.c.b16 %v1342, %v1339
  %v1430 = vpack.c.b16 %v1343, %v1340
  %v1431 = vpack.c.b16 %v1347, %v1344
  %v1432 = vpack.c.b16 %v1348, %v1345
  %v1433 = vpack.c.b16 %v1349, %v1346
  %v1434 = vpack.c.b16 %v1353, %v1350
  %v1435 = vpack.c.b16 %v1354, %v1351
  %v1436 = vpack.c.b16 %v1355, %v1352
  %v1437 = vpack.c.b16 %v1359, %v1356
  %v1438 = vpack.c.b16 %v1360, %v1357
  %v1439 = vpack.c.b16 %v1361, %v1358
  %v1440 = vpack.c.b16 %v1365, %v1362
  %v1441 = vpack.c.b16 %v1366, %v1363
  %v1442 = vpack.c.b16 %v1367, %v1364
  %v1443 = vpack.c.b16 %v1371, %v1368
  %v1444 = vpack.c.b16 %v1372, %v1369
  %v1445 = vpack.c.b16 %v1373, %v1370
  %v1516 = vsel %vm785, %v1126, 0
  %vm1518 = vcmask 1045504
  %v1520 = vsel %vm1518, %v1443, 0
  %v1523 = vsel %vm1518, %v1444, 0
  %v1526 = vsel %vm1518, %v1445, 0
  %1528 = vmatpush.bf16.msra.mxu0 %v1395
  %1529 = vmatpush.bf16.msra.mxu0 %v1392
  %1530 = vmatpush.bf16.msra.mxu0 %v1389
  %1531 = vmatpush.bf16.msra.mxu0 %v1386
  %1532 = vmatpush.bf16.msra.mxu0 %v1383
  %1533 = vmatpush.bf16.msra.mxu0 %v1380
  %1534 = vmatpush.bf16.msra.mxu0 %v1377
  %1535 = vmatpush.bf16.msra.mxu0 %v1374
  %1536 = vmatmul.bf16.gmra.mxu0 %v1124
  %v1537 = vpop.f32.mrf.mxu0
  %v1538 = vadd.f32 %v1128, %v1537
  %v1539 = vpop.f32.mrf.mxu0
  %1540 = vdwg.mxu0
  %1541 = vmatpush.bf16.msra.mxu0 %v1419
  %1542 = vmatpush.bf16.msra.mxu0 %v1416
  %1543 = vmatpush.bf16.msra.mxu0 %v1413
  %1544 = vmatpush.bf16.msra.mxu0 %v1410
  %1545 = vmatpush.bf16.msra.mxu0 %v1407
  %1546 = vmatpush.bf16.msra.mxu0 %v1404
  %1547 = vmatpush.bf16.msra.mxu0 %v1401
  %1548 = vmatpush.bf16.msra.mxu0 %v1398
  %1549 = vmatmul.bf16.gmra.mxu0 %v1125
  %v1550 = vpop.f32.mrf.mxu0
  %v1551 = vadd.f32 %v1538, %v1550
  %v1552 = vpop.f32.mrf.mxu0
  %1553 = vdwg.mxu0
  %1554 = vmatpush.bf16.msra.mxu0 %v1520
  %1555 = vmatpush.bf16.msra.mxu0 %v1440
  %1556 = vmatpush.bf16.msra.mxu0 %v1437
  %1557 = vmatpush.bf16.msra.mxu0 %v1434
  %1558 = vmatpush.bf16.msra.mxu0 %v1431
  %1559 = vmatpush.bf16.msra.mxu0 %v1428
  %1560 = vmatpush.bf16.msra.mxu0 %v1425
  %1561 = vmatpush.bf16.msra.mxu0 %v1422
  %1562 = vmatmul.bf16.gmra.mxu0 %v1516
  %v1563 = vpop.f32.mrf.mxu0
  %v1564 = vadd.f32 %v1551, %v1563
  %v1565 = vpop.f32.mrf.mxu0
  %1566 = vdwg.mxu0
  %1567 = vmatpush.bf16.msra.mxu0 %v1396
  %1568 = vmatpush.bf16.msra.mxu0 %v1393
  %1569 = vmatpush.bf16.msra.mxu0 %v1390
  %1570 = vmatpush.bf16.msra.mxu0 %v1387
  %1571 = vmatpush.bf16.msra.mxu0 %v1384
  %1572 = vmatpush.bf16.msra.mxu0 %v1381
  %1573 = vmatpush.bf16.msra.mxu0 %v1378
  %1574 = vmatpush.bf16.msra.mxu0 %v1375
  %1575 = vmatmul.bf16.gmra.mxu0 %v1124
  %v1576 = vpop.f32.mrf.mxu0
  %v1577 = vadd.f32 %v1129, %v1576
  %v1578 = vpop.f32.mrf.mxu0
  %1579 = vdwg.mxu0
  %1580 = vmatpush.bf16.msra.mxu0 %v1420
  %1581 = vmatpush.bf16.msra.mxu0 %v1417
  %1582 = vmatpush.bf16.msra.mxu0 %v1414
  %1583 = vmatpush.bf16.msra.mxu0 %v1411
  %1584 = vmatpush.bf16.msra.mxu0 %v1408
  %1585 = vmatpush.bf16.msra.mxu0 %v1405
  %1586 = vmatpush.bf16.msra.mxu0 %v1402
  %1587 = vmatpush.bf16.msra.mxu0 %v1399
  %1588 = vmatmul.bf16.gmra.mxu0 %v1125
  %v1589 = vpop.f32.mrf.mxu0
  %v1590 = vadd.f32 %v1577, %v1589
  %v1591 = vpop.f32.mrf.mxu0
  %1592 = vdwg.mxu0
  %1593 = vmatpush.bf16.msra.mxu0 %v1523
  %1594 = vmatpush.bf16.msra.mxu0 %v1441
  %1595 = vmatpush.bf16.msra.mxu0 %v1438
  %1596 = vmatpush.bf16.msra.mxu0 %v1435
  %1597 = vmatpush.bf16.msra.mxu0 %v1432
  %1598 = vmatpush.bf16.msra.mxu0 %v1429
  %1599 = vmatpush.bf16.msra.mxu0 %v1426
  %1600 = vmatpush.bf16.msra.mxu0 %v1423
  %1601 = vmatmul.bf16.gmra.mxu0 %v1516
  %v1602 = vpop.f32.mrf.mxu0
  %v1603 = vadd.f32 %v1590, %v1602
  %v1604 = vpop.f32.mrf.mxu0
  %1605 = vdwg.mxu0
  %1606 = vmatpush.bf16.msra.mxu0 %v1397
  %1607 = vmatpush.bf16.msra.mxu0 %v1394
  %1608 = vmatpush.bf16.msra.mxu0 %v1391
  %1609 = vmatpush.bf16.msra.mxu0 %v1388
  %1610 = vmatpush.bf16.msra.mxu0 %v1385
  %1611 = vmatpush.bf16.msra.mxu0 %v1382
  %1612 = vmatpush.bf16.msra.mxu0 %v1379
  %1613 = vmatpush.bf16.msra.mxu0 %v1376
  %1614 = vmatmul.bf16.gmra.mxu0 %v1124
  %v1615 = vpop.f32.mrf.mxu0
  %v1616 = vadd.f32 %v1130, %v1615
  %v1617 = vpop.f32.mrf.mxu0
  %1618 = vdwg.mxu0
  %1619 = vmatpush.bf16.msra.mxu0 %v1421
  %1620 = vmatpush.bf16.msra.mxu0 %v1418
  %1621 = vmatpush.bf16.msra.mxu0 %v1415
  %1622 = vmatpush.bf16.msra.mxu0 %v1412
  %1623 = vmatpush.bf16.msra.mxu0 %v1409
  %1624 = vmatpush.bf16.msra.mxu0 %v1406
  %1625 = vmatpush.bf16.msra.mxu0 %v1403
  %1626 = vmatpush.bf16.msra.mxu0 %v1400
  %1627 = vmatmul.bf16.gmra.mxu0 %v1125
  %v1628 = vpop.f32.mrf.mxu0
  %v1629 = vadd.f32 %v1616, %v1628
  %v1630 = vpop.f32.mrf.mxu0
  %1631 = vdwg.mxu0
  %1632 = vmatpush.bf16.msra.mxu0 %v1526
  %1633 = vmatpush.bf16.msra.mxu0 %v1442
  %1634 = vmatpush.bf16.msra.mxu0 %v1439
  %1635 = vmatpush.bf16.msra.mxu0 %v1436
  %1636 = vmatpush.bf16.msra.mxu0 %v1433
  %1637 = vmatpush.bf16.msra.mxu0 %v1430
  %1638 = vmatpush.bf16.msra.mxu0 %v1427
  %1639 = vmatpush.bf16.msra.mxu0 %v1424
  %1640 = vmatmul.bf16.gmra.mxu0 %v1516
  %v1641 = vpop.f32.mrf.mxu0
  %v1642 = vadd.f32 %v1629, %v1641
  %v1643 = vpop.f32.mrf.mxu0
  %1644 = vdwg.mxu0
  %v1645 = vsel %vm734, %v1564, 0.0
  %v1646 = vrot.slane %v1645, 4
  %v1647 = vadd.f32 %v1645, %v1646
  %v1648 = vrot.slane %v1647, 2
  %v1649 = vadd.f32 %v1647, %v1648
  %v1650 = vrot.slane %v1649, 1
  %v1651 = vadd.f32 %v1649, %v1650
  %v1652 = vsel %vm734, %v1603, 0.0
  %v1653 = vrot.slane %v1652, 4
  %v1654 = vadd.f32 %v1652, %v1653
  %v1655 = vrot.slane %v1654, 2
  %v1656 = vadd.f32 %v1654, %v1655
  %v1657 = vrot.slane %v1656, 1
  %v1658 = vadd.f32 %v1656, %v1657
  %vm1659 = vcmask 517120
  %v1660 = vsel %vm1659, %v1642, 0.0
  %v1661 = vrot.slane %v1660, 4
  %v1662 = vadd.f32 %v1660, %v1661
  %v1663 = vrot.slane %v1662, 2
  %v1664 = vadd.f32 %v1662, %v1663
  %v1665 = vrot.slane %v1664, 1
  %v1666 = vadd.f32 %v1664, %v1665
  %v1667 = vmul.f32 %v1564, %v1564
  %v1668 = vmul.f32 %v1603, %v1603
  %v1669 = vmul.f32 %v1642, %v1642
  %v1670 = vsel %vm734, %v1667, 0.0
  %v1671 = vrot.slane %v1670, 4
  %v1672 = vadd.f32 %v1670, %v1671
  %v1673 = vrot.slane %v1672, 2
  %v1674 = vadd.f32 %v1672, %v1673
  %v1675 = vrot.slane %v1674, 1
  %v1676 = vadd.f32 %v1674, %v1675
  %v1677 = vsel %vm734, %v1668, 0.0
  %v1678 = vrot.slane %v1677, 4
  %v1679 = vadd.f32 %v1677, %v1678
  %v1680 = vrot.slane %v1679, 2
  %v1681 = vadd.f32 %v1679, %v1680
  %v1682 = vrot.slane %v1681, 1
  %v1683 = vadd.f32 %v1681, %v1682
  %v1684 = vsel %vm1659, %v1669, 0.0
  %v1685 = vrot.slane %v1684, 4
  %v1686 = vadd.f32 %v1684, %v1685
  %v1687 = vrot.slane %v1686, 2
  %v1688 = vadd.f32 %v1686, %v1687
  %v1689 = vrot.slane %v1688, 1
  %v1690 = vadd.f32 %v1688, %v1689
  %v1691 = vsel %vm781, %v1651, %v1676
  %v1692 = vsel %vm781, %v1658, %v1683
  %v1693 = vsel %vm781, %v1666, %v1690
  %vm1694 = vcmask 523264
  %v1696 = vsel %vm1694, %v1693, 0
  %1698 = vmatpush.msra.mxu0 %v1084
  %1699 = vmatpush.msra.mxu0 %v1083
  %1700 = vmatpush.msra.mxu0 %v1082
  %1701 = vmatpush.msra.mxu0 %v1081
  %1702 = vmatpush.msra.mxu0 %v1080
  %1703 = vmatpush.msra.mxu0 %v1079
  %1704 = vmatpush.msra.mxu0 %v1078
  %1705 = vmatpush.msra.mxu0 %v1077
  %1706 = vmatpush.msra.mxu0 %v1076
  %1707 = vmatpush.msra.mxu0 %v1075
  %1708 = vmatpush.msra.mxu0 %v1074
  %1709 = vmatpush.msra.mxu0 %v1073
  %1710 = vmatpush.msra.mxu0 %v1072
  %1711 = vmatpush.msra.mxu0 %v1071
  %1712 = vmatpush.msra.mxu0 %v1070
  %1713 = vmatpush.msra.mxu0 %v1069
  %1714 = vmatmul.f32.gmra.mxu0 %v1691
  %v1715 = vpop.f32.mrf.mxu0
  %v1716 = vadd.f32 0.0, %v1715
  %1717 = vdwg.mxu0
  %1718 = vmatpush.msra.mxu0 %v1100
  %1719 = vmatpush.msra.mxu0 %v1099
  %1720 = vmatpush.msra.mxu0 %v1098
  %1721 = vmatpush.msra.mxu0 %v1097
  %1722 = vmatpush.msra.mxu0 %v1096
  %1723 = vmatpush.msra.mxu0 %v1095
  %1724 = vmatpush.msra.mxu0 %v1094
  %1725 = vmatpush.msra.mxu0 %v1093
  %1726 = vmatpush.msra.mxu0 %v1092
  %1727 = vmatpush.msra.mxu0 %v1091
  %1728 = vmatpush.msra.mxu0 %v1090
  %1729 = vmatpush.msra.mxu0 %v1089
  %1730 = vmatpush.msra.mxu0 %v1088
  %1731 = vmatpush.msra.mxu0 %v1087
  %1732 = vmatpush.msra.mxu0 %v1086
  %1733 = vmatpush.msra.mxu0 %v1085
  %1734 = vmatmul.f32.gmra.mxu0 %v1692
  %v1735 = vpop.f32.mrf.mxu0
  %v1736 = vadd.f32 %v1716, %v1735
  %1737 = vdwg.mxu0
  %1738 = vmatpush.msra.mxu0 0.0
  %1739 = vmatpush.msra.mxu0 0.0
  %1740 = vmatpush.msra.mxu0 0.0
  %1741 = vmatpush.msra.mxu0 0.0
  %1742 = vmatpush.msra.mxu0 0.0
  %1743 = vmatpush.msra.mxu0 0.0
  %1744 = vmatpush.msra.mxu0 0.0
  %1745 = vmatpush.msra.mxu0 0.0
  %1746 = vmatpush.msra.mxu0 %v1108
  %1747 = vmatpush.msra.mxu0 %v1107
  %1748 = vmatpush.msra.mxu0 %v1106
  %1749 = vmatpush.msra.mxu0 %v1105
  %1750 = vmatpush.msra.mxu0 %v1104
  %1751 = vmatpush.msra.mxu0 %v1103
  %1752 = vmatpush.msra.mxu0 %v1102
  %1753 = vmatpush.msra.mxu0 %v1101
  %1754 = vmatmul.f32.gmra.mxu0 %v1696
  %v1755 = vpop.f32.mrf.mxu0
  %v1756 = vadd.f32 %v1736, %v1755
  %1757 = vdwg.mxu0
  %v1758 = vmul.f32 %v1756, 0.0625
  %v1759 = vmul.f32 %v1758, %v1758
  %v1761 = vrot.slane %v1759, 7
  %v1763 = vsub.f32 %v1758, %v1761
  %v1764 = vmax.f32 %v1763, 0.0
  %v1765 = vadd.f32 %v1764, 1e-05
  %v1766 = vrsqrt.pop %v1765
  %v1767 = vmul.f32 %v1766, %v1765
  %v1768 = vmul.f32 %v1767, %v1766
  %v1769 = vmul.f32 0.5, %v1768
  %v1770 = vsub.f32 1.5, %v1769
  %v1771 = vmul.f32 %v1766, %v1770
  %vm1772 = vweird.f32 %v1765
  %vm1773 = vweird.f32 %v1766
  %vm1774 = vmor %vm1772, %vm1773
  %v1775 = vsel %vm1774, %v1766, %v1771
  %1777 = vst [vmem:[#allocation1] sm:$0xff] %v1775
  %s1778 = scalar_lea.vmem [#allocation1], 1
  %v1779 = vld [vmem:[%s1778] ss:$9 sm:$0xff]
  %v1781 = vmul.f32 %v1067, %v1779
  %v1782 = vmul.f32 %v1758, %v1781
  %v1783 = vsub.f32 %v1068, %v1782
  %v1785 = vperm.slane %v1783, 0
  %v1787 = vsel %vm781, %v1781, %v1785
  %vm1788 = vcmask 326656
  %v1790 = vsel %vm1788, %v1787, 0
  %1792 = vmatpush.msra.mxu0 0.0
  %1793 = vmatpush.msra.mxu0 0.0
  %1794 = vmatpush.msra.mxu0 0.0
  %1795 = vmatpush.msra.mxu0 0.0
  %1796 = vmatpush.msra.mxu0 0.0
  %1797 = vmatpush.msra.mxu0 0.0
  %1798 = vmatpush.msra.mxu0 0.0
  %1799 = vmatpush.msra.mxu0 0.0
  %1800 = vmatpush.msra.mxu0 0.0
  %1801 = vmatpush.msra.mxu0 0.0
  %1802 = vmatpush.msra.mxu0 0.0
  %1803 = vmatpush.msra.mxu0 %v1121
  %1804 = vmatpush.msra.mxu0 %v1118
  %1805 = vmatpush.msra.mxu0 %v1115
  %1806 = vmatpush.msra.mxu0 %v1112
  %1807 = vmatpush.msra.mxu0 %v1109
  %1808 = vmatmul.f32.gmra.mxu0 %v1790
  %v1809 = vpop.f32.mrf.mxu0
  %v1810 = vadd.f32 0.0, %v1809
  %1811 = vdwg.mxu0
  %1812 = vmatpush.msra.mxu0 0.0
  %1813 = vmatpush.msra.mxu0 0.0
  %1814 = vmatpush.msra.mxu0 0.0
  %1815 = vmatpush.msra.mxu0 0.0
  %1816 = vmatpush.msra.mxu0 0.0
  %1817 = vmatpush.msra.mxu0 0.0
  %1818 = vmatpush.msra.mxu0 0.0
  %1819 = vmatpush.msra.mxu0 0.0
  %1820 = vmatpush.msra.mxu0 0.0
  %1821 = vmatpush.msra.mxu0 0.0
  %1822 = vmatpush.msra.mxu0 0.0
  %1823 = vmatpush.msra.mxu0 %v1122
  %1824 = vmatpush.msra.mxu0 %v1119
  %1825 = vmatpush.msra.mxu0 %v1116
  %1826 = vmatpush.msra.mxu0 %v1113
  %1827 = vmatpush.msra.mxu0 %v1110
  %1828 = vmatmul.f32.gmra.mxu0 %v1790
  %v1829 = vpop.f32.mrf.mxu0
  %v1830 = vadd.f32 0.0, %v1829
  %1831 = vdwg.mxu0
  %1832 = vmatpush.msra.mxu0 0.0
  %1833 = vmatpush.msra.mxu0 0.0
  %1834 = vmatpush.msra.mxu0 0.0
  %1835 = vmatpush.msra.mxu0 0.0
  %1836 = vmatpush.msra.mxu0 0.0
  %1837 = vmatpush.msra.mxu0 0.0
  %1838 = vmatpush.msra.mxu0 0.0
  %1839 = vmatpush.msra.mxu0 0.0
  %1840 = vmatpush.msra.mxu0 0.0
  %1841 = vmatpush.msra.mxu0 0.0
  %1842 = vmatpush.msra.mxu0 0.0
  %1843 = vmatpush.msra.mxu0 %v1123
  %1844 = vmatpush.msra.mxu0 %v1120
  %1845 = vmatpush.msra.mxu0 %v1117
  %1846 = vmatpush.msra.mxu0 %v1114
  %1847 = vmatpush.msra.mxu0 %v1111
  %1848 = vmatmul.f32.gmra.mxu0 %v1790
  %v1849 = vpop.f32.mrf.mxu0
  %v1850 = vadd.f32 0.0, %v1849
  %1851 = vdwg.mxu0
  %v1852 = vperm.slane %v1810, 0
  %v1853 = vperm.slane %v1830, 0
  %v1854 = vperm.slane %v1850, 0
  %v1855 = vmul.f32 %v1564, %v1852
  %v1856 = vmul.f32 %v1603, %v1853
  %v1857 = vmul.f32 %v1642, %v1854
  %v1858 = vperm.slane %v1810, 1
  %v1859 = vperm.slane %v1830, 1
  %v1860 = vperm.slane %v1850, 1
  %v1861 = vadd.f32 %v1855, %v1858
  %v1862 = vadd.f32 %v1856, %v1859
  %v1863 = vadd.f32 %v1857, %v1860
  %v1864 = vmax.f32 %v1861, 0.0
  %v1865 = vmax.f32 %v1862, 0.0
  %v1866 = vmax.f32 %v1863, 0.0
  %v1867 = vld [vmem:[%s13] sm:$0xff]
  %v1868 = vld [vmem:[%s13 + $0x8] sm:$0xf]
  %v1869 = vld [vmem:[%s13 + $0xc] sm:$0xff]
  %v1870 = vld [vmem:[%s13 + $0x14] sm:$0xf]
  %v1871 = vld [vmem:[%s13 + $0x18] sm:$0xff]
  %v1872 = vld [vmem:[%s13 + $0x20] sm:$0xf]
  %v1873 = vld [vmem:[%s13 + $0x24] sm:$0xff]
  %v1874 = vld [vmem:[%s13 + $0x2c] sm:$0xf]
  %v1875 = vld [vmem:[%s13 + $0x30] sm:$0xff]
  %v1876 = vld [vmem:[%s13 + $0x38] sm:$0xf]
  %v1877 = vld [vmem:[%s13 + $0x3c] sm:$0xff]
  %v1878 = vld [vmem:[%s13 + $0x44] sm:$0xf]
  %v1879 = vld [vmem:[%s13 + $0x48] sm:$0xff]
  %v1880 = vld [vmem:[%s13 + $0x50] sm:$0xf]
  %v1881 = vld [vmem:[%s13 + $0x54] sm:$0xff]
  %v1882 = vld [vmem:[%s13 + $0x5c] sm:$0xf]
  %v1883 = vld [vmem:[%s13 + $0x60] sm:$0xff]
  %v1884 = vld [vmem:[%s13 + $0x68] sm:$0xf]
  %v1885 = vld [vmem:[%s13 + $0x6c] sm:$0xff]
  %v1886 = vld [vmem:[%s13 + $0x74] sm:$0xf]
  %v1887 = vld [vmem:[%s15] sm:$0xff]
  %v1888 = vld [vmem:[%s15 + $0x8] sm:$0xf]
  %v1889 = vld [vmem:[%s15 + $0xc] sm:$0xff]
  %v1890 = vld [vmem:[%s15 + $0x14] sm:$0xf]
  %v1891 = vld [vmem:[%s15 + $0x18] sm:$0xff]
  %v1892 = vld [vmem:[%s15 + $0x20] sm:$0xf]
  %v1893 = vld [vmem:[%s15 + $0x24] sm:$0xff]
  %v1894 = vld [vmem:[%s15 + $0x2c] sm:$0xf]
  %v1895 = vld [vmem:[%s15 + $0x30] sm:$0xff]
  %v1896 = vld [vmem:[%s15 + $0x38] sm:$0xf]
  %v1897 = vld [vmem:[%s15 + $0x3c] sm:$0xff]
  %v1898 = vld [vmem:[%s15 + $0x44] sm:$0xf]
  %v1899 = vld [vmem:[%s15 + $0x48] sm:$0xff]
  %v1900 = vld [vmem:[%s15 + $0x50] sm:$0xf]
  %v1901 = vld [vmem:[%s15 + $0x54] sm:$0xff]
  %v1902 = vld [vmem:[%s15 + $0x5c] sm:$0xf]
  %v1903 = vld [vmem:[%s15 + $0x60] sm:$0xff]
  %v1904 = vld [vmem:[%s15 + $0x68] sm:$0xf]
  %v1905 = vld [vmem:[%s15 + $0x6c] sm:$0xff]
  %v1906 = vld [vmem:[%s15 + $0x74] sm:$0xf]
  %v1907 = vld [vmem:[%s15 + $0x78] sm:$0xff]
  %v1908 = vld [vmem:[%s15 + $0x80] sm:$0xf]
  %v1909 = vld [vmem:[%s15 + $0x84] sm:$0xff]
  %v1910 = vld [vmem:[%s15 + $0x8c] sm:$0xf]
  %v1911 = vld [vmem:[%s15 + $0x90] sm:$0xff]
  %v1912 = vld [vmem:[%s15 + $0x98] sm:$0xf]
  %v1913 = vld [vmem:[%s15 + $0x9c] sm:$0xff]
  %v1914 = vld [vmem:[%s15 + $0xa4] sm:$0xf]
  %v1915 = vld [vmem:[%s15 + $0xa8] sm:$0xff]
  %v1916 = vld [vmem:[%s15 + $0xb0] sm:$0xf]
  %v1917 = vld [vmem:[%s15 + $0xb4] sm:$0xff]
  %v1918 = vld [vmem:[%s15 + $0xbc] sm:$0xf]
  %v1919 = vld [vmem:[%s14] sm:$0x7]
  %v1920 = vld [vmem:[%s16] sm:$0x1]
  %1922 = vrot.lane.b32.xlu0 %v1866, 16
  %v1923 = vpop.permute.xlu0 %1922
  %v1925 = vsel %vm1788, %v1864, %v1923
  %v1926 = vpack.c.bf16 %v1925, %v1925
  %v1928 = vperm.slane %v1919, 0
  %v1929 = vperm.slane %v1919, 1
  %v1930 = vperm.slane %v1919, 2
  %v1954 = vunpack.c.l.b16 %v1867
  %v1955 = vunpack.c.h.b16 %v1867
  %v1956 = vunpack.c.l.b16 %v1868
  %v1957 = vunpack.c.l.b16 %v1869
  %v1958 = vunpack.c.h.b16 %v1869
  %v1959 = vunpack.c.l.b16 %v1870
  %v1960 = vunpack.c.l.b16 %v1871
  %v1961 = vunpack.c.h.b16 %v1871
  %v1962 = vunpack.c.l.b16 %v1872
  %v1963 = vunpack.c.l.b16 %v1873
  %v1964 = vunpack.c.h.b16 %v1873
  %v1965 = vunpack.c.l.b16 %v1874
  %v1966 = vunpack.c.l.b16 %v1875
  %v1967 = vunpack.c.h.b16 %v1875
  %v1968 = vunpack.c.l.b16 %v1876
  %v1969 = vunpack.c.l.b16 %v1877
  %v1970 = vunpack.c.h.b16 %v1877
  %v1971 = vunpack.c.l.b16 %v1878
  %v1972 = vunpack.c.l.b16 %v1879
  %v1973 = vunpack.c.h.b16 %v1879
  %v1974 = vunpack.c.l.b16 %v1880
  %v1975 = vunpack.c.l.b16 %v1881
  %v1976 = vunpack.c.h.b16 %v1881
  %v1977 = vunpack.c.l.b16 %v1882
  %v1978 = vunpack.c.l.b16 %v1883
  %v1979 = vunpack.c.h.b16 %v1883
  %v1980 = vunpack.c.l.b16 %v1884
  %v1981 = vunpack.c.l.b16 %v1885
  %v1982 = vunpack.c.h.b16 %v1885
  %v1983 = vunpack.c.l.b16 %v1886
  %v1984 = vpack.c.b16 %v1957, %v1954
  %v1985 = vpack.c.b16 %v1958, %v1955
  %v1986 = vpack.c.b16 %v1959, %v1956
  %v1987 = vpack.c.b16 %v1963, %v1960
  %v1988 = vpack.c.b16 %v1964, %v1961
  %v1989 = vpack.c.b16 %v1965, %v1962
  %v1990 = vpack.c.b16 %v1969, %v1966
  %v1991 = vpack.c.b16 %v1970, %v1967
  %v1992 = vpack.c.b16 %v1971, %v1968
  %v1993 = vpack.c.b16 %v1975, %v1972
  %v1994 = vpack.c.b16 %v1976, %v1973
  %v1995 = vpack.c.b16 %v1977, %v1974
  %v1996 = vpack.c.b16 %v1981, %v1978
  %v1997 = vpack.c.b16 %v1982, %v1979
  %v1998 = vpack.c.b16 %v1983, %v1980
  %vm2014 = vcmask 654336
  %v2016 = vsel %vm2014, %v1926, 0
  %2018 = vmatpush.bf16.msra.mxu0 0
  %2019 = vmatpush.bf16.msra.mxu0 0
  %2020 = vmatpush.bf16.msra.mxu0 0
  %2021 = vmatpush.bf16.msra.mxu0 %v1996
  %2022 = vmatpush.bf16.msra.mxu0 %v1993
  %2023 = vmatpush.bf16.msra.mxu0 %v1990
  %2024 = vmatpush.bf16.msra.mxu0 %v1987
  %2025 = vmatpush.bf16.msra.mxu0 %v1984
  %2026 = vmatmul.bf16.gmra.mxu0 %v2016
  %v2027 = vpop.f32.mrf.mxu0
  %v2028 = vadd.f32 %v1928, %v2027
  %v2029 = vpop.f32.mrf.mxu0
  %2030 = vdwg.mxu0
  %2031 = vmatpush.bf16.msra.mxu0 0
  %2032 = vmatpush.bf16.msra.mxu0 0
  %2033 = vmatpush.bf16.msra.mxu0 0
  %2034 = vmatpush.bf16.msra.mxu0 %v1997
  %2035 = vmatpush.bf16.msra.mxu0 %v1994
  %2036 = vmatpush.bf16.msra.mxu0 %v1991
  %2037 = vmatpush.bf16.msra.mxu0 %v1988
  %2038 = vmatpush.bf16.msra.mxu0 %v1985
  %2039 = vmatmul.bf16.gmra.mxu0 %v2016
  %v2040 = vpop.f32.mrf.mxu0
  %v2041 = vadd.f32 %v1929, %v2040
  %v2042 = vpop.f32.mrf.mxu0
  %2043 = vdwg.mxu0
  %2044 = vmatpush.bf16.msra.mxu0 0
  %2045 = vmatpush.bf16.msra.mxu0 0
  %2046 = vmatpush.bf16.msra.mxu0 0
  %2047 = vmatpush.bf16.msra.mxu0 %v1998
  %2048 = vmatpush.bf16.msra.mxu0 %v1995
  %2049 = vmatpush.bf16.msra.mxu0 %v1992
  %2050 = vmatpush.bf16.msra.mxu0 %v1989
  %2051 = vmatpush.bf16.msra.mxu0 %v1986
  %2052 = vmatmul.bf16.gmra.mxu0 %v2016
  %v2053 = vpop.f32.mrf.mxu0
  %v2054 = vadd.f32 %v1930, %v2053
  %v2055 = vpop.f32.mrf.mxu0
  %2056 = vdwg.mxu0
  %v2089 = vunpack.c.l.b16 %v1887
  %v2090 = vunpack.c.h.b16 %v1887
  %v2091 = vunpack.c.l.b16 %v1888
  %v2092 = vunpack.c.l.b16 %v1889
  %v2093 = vunpack.c.h.b16 %v1889
  %v2094 = vunpack.c.l.b16 %v1890
  %v2095 = vunpack.c.l.b16 %v1891
  %v2096 = vunpack.c.h.b16 %v1891
  %v2097 = vunpack.c.l.b16 %v1892
  %v2098 = vunpack.c.l.b16 %v1893
  %v2099 = vunpack.c.h.b16 %v1893
  %v2100 = vunpack.c.l.b16 %v1894
  %v2101 = vunpack.c.l.b16 %v1895
  %v2102 = vunpack.c.h.b16 %v1895
  %v2103 = vunpack.c.l.b16 %v1896
  %v2104 = vunpack.c.l.b16 %v1897
  %v2105 = vunpack.c.h.b16 %v1897
  %v2106 = vunpack.c.l.b16 %v1898
  %v2107 = vunpack.c.l.b16 %v1899
  %v2108 = vunpack.c.h.b16 %v1899
  %v2109 = vunpack.c.l.b16 %v1900
  %v2110 = vunpack.c.l.b16 %v1901
  %v2111 = vunpack.c.h.b16 %v1901
  %v2112 = vunpack.c.l.b16 %v1902
  %v2113 = vunpack.c.l.b16 %v1903
  %v2114 = vunpack.c.h.b16 %v1903
  %v2115 = vunpack.c.l.b16 %v1904
  %v2116 = vunpack.c.l.b16 %v1905
  %v2117 = vunpack.c.h.b16 %v1905
  %v2118 = vunpack.c.l.b16 %v1906
  %v2119 = vunpack.c.l.b16 %v1907
  %v2120 = vunpack.c.h.b16 %v1907
  %v2121 = vunpack.c.l.b16 %v1908
  %v2122 = vunpack.c.l.b16 %v1909
  %v2123 = vunpack.c.h.b16 %v1909
  %v2124 = vunpack.c.l.b16 %v1910
  %v2125 = vunpack.c.l.b16 %v1911
  %v2126 = vunpack.c.h.b16 %v1911
  %v2127 = vunpack.c.l.b16 %v1912
  %v2128 = vunpack.c.l.b16 %v1913
  %v2129 = vunpack.c.h.b16 %v1913
  %v2130 = vunpack.c.l.b16 %v1914
  %v2131 = vunpack.c.l.b16 %v1915
  %v2132 = vunpack.c.h.b16 %v1915
  %v2133 = vunpack.c.l.b16 %v1916
  %v2134 = vunpack.c.l.b16 %v1917
  %v2135 = vunpack.c.h.b16 %v1917
  %v2136 = vunpack.c.l.b16 %v1918
  %v2137 = vpack.c.b16 %v2092, %v2089
  %v2138 = vpack.c.b16 %v2093, %v2090
  %v2139 = vpack.c.b16 %v2094, %v2091
  %v2140 = vpack.c.b16 %v2098, %v2095
  %v2141 = vpack.c.b16 %v2099, %v2096
  %v2142 = vpack.c.b16 %v2100, %v2097
  %v2143 = vpack.c.b16 %v2104, %v2101
  %v2144 = vpack.c.b16 %v2105, %v2102
  %v2145 = vpack.c.b16 %v2106, %v2103
  %v2146 = vpack.c.b16 %v2110, %v2107
  %v2147 = vpack.c.b16 %v2111, %v2108
  %v2148 = vpack.c.b16 %v2112, %v2109
  %v2149 = vpack.c.b16 %v2116, %v2113
  %v2150 = vpack.c.b16 %v2117, %v2114
  %v2151 = vpack.c.b16 %v2118, %v2115
  %v2152 = vpack.c.b16 %v2122, %v2119
  %v2153 = vpack.c.b16 %v2123, %v2120
  %v2154 = vpack.c.b16 %v2124, %v2121
  %v2155 = vpack.c.b16 %v2128, %v2125
  %v2156 = vpack.c.b16 %v2129, %v2126
  %v2157 = vpack.c.b16 %v2130, %v2127
  %v2158 = vpack.c.b16 %v2134, %v2131
  %v2159 = vpack.c.b16 %v2135, %v2132
  %v2160 = vpack.c.b16 %v2136, %v2133
  %2185 = vmatpush.bf16.msra.mxu0 %v2158
  %2186 = vmatpush.bf16.msra.mxu0 %v2155
  %2187 = vmatpush.bf16.msra.mxu0 %v2152
  %2188 = vmatpush.bf16.msra.mxu0 %v2149
  %2189 = vmatpush.bf16.msra.mxu0 %v2146
  %2190 = vmatpush.bf16.msra.mxu0 %v2143
  %2191 = vmatpush.bf16.msra.mxu0 %v2140
  %2192 = vmatpush.bf16.msra.mxu0 %v2137
  %2193 = vmatmul.bf16.gmra.mxu0 0
  %v2194 = vpop.f32.mrf.mxu0
  %v2195 = vadd.f32 0.0, %v2194
  %v2196 = vpop.f32.mrf.mxu0
  %2197 = vdwg.mxu0
  %2198 = vmatpush.bf16.msra.mxu0 %v2159
  %2199 = vmatpush.bf16.msra.mxu0 %v2156
  %2200 = vmatpush.bf16.msra.mxu0 %v2153
  %2201 = vmatpush.bf16.msra.mxu0 %v2150
  %2202 = vmatpush.bf16.msra.mxu0 %v2147
  %2203 = vmatpush.bf16.msra.mxu0 %v2144
  %2204 = vmatpush.bf16.msra.mxu0 %v2141
  %2205 = vmatpush.bf16.msra.mxu0 %v2138
  %2206 = vmatmul.bf16.gmra.mxu0 0
  %v2207 = vpop.f32.mrf.mxu0
  %v2208 = vadd.f32 0.0, %v2207
  %v2209 = vpop.f32.mrf.mxu0
  %2210 = vdwg.mxu0
  %2211 = vmatpush.bf16.msra.mxu0 %v2160
  %2212 = vmatpush.bf16.msra.mxu0 %v2157
  %2213 = vmatpush.bf16.msra.mxu0 %v2154
  %2214 = vmatpush.bf16.msra.mxu0 %v2151
  %2215 = vmatpush.bf16.msra.mxu0 %v2148
  %2216 = vmatpush.bf16.msra.mxu0 %v2145
  %2217 = vmatpush.bf16.msra.mxu0 %v2142
  %2218 = vmatpush.bf16.msra.mxu0 %v2139
  %2219 = vmatmul.bf16.gmra.mxu0 0
  %v2220 = vpop.f32.mrf.mxu0
  %v2221 = vadd.f32 0.0, %v2220
  %v2222 = vpop.f32.mrf.mxu0
  %2223 = vdwg.mxu0
  %v2224 = vadd.f32 %v2028, %v2195
  %v2225 = vxor.u32 %v2224, 2147483648
  %v2226 = vmul.f32 %v2225, 1.442695
  %v2227 = vpow.pop %v2226
  %v2228 = vadd.f32 %v2227, 1.0
  %v2229 = vrcp.pop %v2228
  %v2230 = vmul.f32 %v2228, %v2229
  %v2231 = vsub.f32 1.0, %v2230
  %v2232 = vmul.f32 %v2229, %v2231
  %v2233 = vadd.f32 %v2229, %v2232
  %vm2234 = vweird.f32 %v2228
  %vm2235 = vweird.f32 %v2229
  %vm2236 = vmor %vm2234, %vm2235
  %v2237 = vsel %vm2236, %v2229, %v2233
  %v2238 = vand.u32 2147483647, %v2228
  %vm2239 = vcmp.eq.f32.partialorder %v2238, 8.507059e+37
  %v2240 = vand.u32 %v2228, 2147483648
  %v2241 = vor.u32 1.1754944e-38, %v2240
  %v2242 = vsel %vm2239, %v2241, %v2237
  %v2243 = vmul.f32 1.0, %v2242
  %v2244 = vadd.f32 %v2041, %v2208
  %v2245 = vxor.u32 %v2244, 2147483648
  %v2246 = vmul.f32 %v2245, 1.442695
  %v2247 = vpow.pop %v2246
  %v2248 = vadd.f32 %v2247, 1.0
  %v2249 = vrcp.pop %v2248
  %v2250 = vmul.f32 %v2248, %v2249
  %v2251 = vsub.f32 1.0, %v2250
  %v2252 = vmul.f32 %v2249, %v2251
  %v2253 = vadd.f32 %v2249, %v2252
  %vm2254 = vweird.f32 %v2248
  %vm2255 = vweird.f32 %v2249
  %vm2256 = vmor %vm2254, %vm2255
  %v2257 = vsel %vm2256, %v2249, %v2253
  %v2258 = vand.u32 2147483647, %v2248
  %vm2259 = vcmp.eq.f32.partialorder %v2258, 8.507059e+37
  %v2260 = vand.u32 %v2248, 2147483648
  %v2261 = vor.u32 1.1754944e-38, %v2260
  %v2262 = vsel %vm2259, %v2261, %v2257
  %v2263 = vmul.f32 1.0, %v2262
  %v2265 = vperm.slane %v1920, 0
  %v2267 = vadd.f32 %v2221, %v2265
  %v2268 = vmul.f32 %v2243, %v2267
  %v2269 = vadd.f32 %v2054, %v2268
  %v2270 = vtanh.pop %v2269
  %v2271 = vsub.f32 1.0, %v2263
  %v2272 = vmul.f32 %v2271, %v2270
  %v2273 = vmul.f32 %v2263, 0.0
  %v2274 = vadd.f32 %v2272, %v2273
  %2276 = vrot.lane.b32.xlu0 %v1864, 88
  %v2277 = vpop.permute.xlu0 %2276
  %2280 = vrot.lane.b32.xlu0 %v1865, 56
  %v2281 = vpop.permute.xlu0 %2280
  %2282 = vrot.lane.b32.xlu0 %v1866, 56
  %v2283 = vpop.permute.xlu0 %2282
  %vm2284 = vcmask 457728
  %v2285 = vsel %vm2284, %v2281, %v2283
  %v2287 = vsel %vm1788, %v2277, %v2285
  %v2288 = vpack.c.bf16 %v2287, %v2287
  %v2290 = vsel %vm2014, %v2288, 0
  %2292 = vmatpush.bf16.msra.mxu0 0
  %2293 = vmatpush.bf16.msra.mxu0 0
  %2294 = vmatpush.bf16.msra.mxu0 0
  %2295 = vmatpush.bf16.msra.mxu0 %v1996
  %2296 = vmatpush.bf16.msra.mxu0 %v1993
  %2297 = vmatpush.bf16.msra.mxu0 %v1990
  %2298 = vmatpush.bf16.msra.mxu0 %v1987
  %2299 = vmatpush.bf16.msra.mxu0 %v1984
  %2300 = vmatmul.bf16.gmra.mxu0 %v2290
  %v2301 = vpop.f32.mrf.mxu0
  %v2302 = vadd.f32 %v1928, %v2301
  %v2303 = vpop.f32.mrf.mxu0
  %2304 = vdwg.mxu0
  %2305 = vmatpush.bf16.msra.mxu0 0
  %2306 = vmatpush.bf16.msra.mxu0 0
  %2307 = vmatpush.bf16.msra.mxu0 0
  %2308 = vmatpush.bf16.msra.mxu0 %v1997
  %2309 = vmatpush.bf16.msra.mxu0 %v1994
  %2310 = vmatpush.bf16.msra.mxu0 %v1991
  %2311 = vmatpush.bf16.msra.mxu0 %v1988
  %2312 = vmatpush.bf16.msra.mxu0 %v1985
  %2313 = vmatmul.bf16.gmra.mxu0 %v2290
  %v2314 = vpop.f32.mrf.mxu0
  %v2315 = vadd.f32 %v1929, %v2314
  %v2316 = vpop.f32.mrf.mxu0
  %2317 = vdwg.mxu0
  %2318 = vmatpush.bf16.msra.mxu0 0
  %2319 = vmatpush.bf16.msra.mxu0 0
  %2320 = vmatpush.bf16.msra.mxu0 0
  %2321 = vmatpush.bf16.msra.mxu0 %v1998
  %2322 = vmatpush.bf16.msra.mxu0 %v1995
  %2323 = vmatpush.bf16.msra.mxu0 %v1992
  %2324 = vmatpush.bf16.msra.mxu0 %v1989
  %2325 = vmatpush.bf16.msra.mxu0 %v1986
  %2326 = vmatmul.bf16.gmra.mxu0 %v2290
  %v2327 = vpop.f32.mrf.mxu0
  %v2328 = vadd.f32 %v1930, %v2327
  %v2329 = vpop.f32.mrf.mxu0
  %2330 = vdwg.mxu0
  %v2331 = vpack.c.bf16 %v2274, %v2274
  %2332 = vmatpush.bf16.msra.mxu0 %v2158
  %2333 = vmatpush.bf16.msra.mxu0 %v2155
  %2334 = vmatpush.bf16.msra.mxu0 %v2152
  %2335 = vmatpush.bf16.msra.mxu0 %v2149
  %2336 = vmatpush.bf16.msra.mxu0 %v2146
  %2337 = vmatpush.bf16.msra.mxu0 %v2143
  %2338 = vmatpush.bf16.msra.mxu0 %v2140
  %2339 = vmatpush.bf16.msra.mxu0 %v2137
  %2340 = vmatmul.bf16.gmra.mxu0 %v2331
  %v2341 = vpop.f32.mrf.mxu0
  %v2342 = vadd.f32 0.0, %v2341
  %v2343 = vpop.f32.mrf.mxu0
  %2344 = vdwg.mxu0
  %2345 = vmatpush.bf16.msra.mxu0 %v2159
  %2346 = vmatpush.bf16.msra.mxu0 %v2156
  %2347 = vmatpush.bf16.msra.mxu0 %v2153
  %2348 = vmatpush.bf16.msra.mxu0 %v2150
  %2349 = vmatpush.bf16.msra.mxu0 %v2147
  %2350 = vmatpush.bf16.msra.mxu0 %v2144
  %2351 = vmatpush.bf16.msra.mxu0 %v2141
  %2352 = vmatpush.bf16.msra.mxu0 %v2138
  %2353 = vmatmul.bf16.gmra.mxu0 %v2331
  %v2354 = vpop.f32.mrf.mxu0
  %v2355 = vadd.f32 0.0, %v2354
  %v2356 = vpop.f32.mrf.mxu0
  %2357 = vdwg.mxu0
  %2358 = vmatpush.bf16.msra.mxu0 %v2160
  %2359 = vmatpush.bf16.msra.mxu0 %v2157
  %2360 = vmatpush.bf16.msra.mxu0 %v2154
  %2361 = vmatpush.bf16.msra.mxu0 %v2151
  %2362 = vmatpush.bf16.msra.mxu0 %v2148
  %2363 = vmatpush.bf16.msra.mxu0 %v2145
  %2364 = vmatpush.bf16.msra.mxu0 %v2142
  %2365 = vmatpush.bf16.msra.mxu0 %v2139
  %2366 = vmatmul.bf16.gmra.mxu0 %v2331
  %v2367 = vpop.f32.mrf.mxu0
  %v2368 = vadd.f32 0.0, %v2367
  %v2369 = vpop.f32.mrf.mxu0
  %2370 = vdwg.mxu0
  %v2371 = vadd.f32 %v2302, %v2342
  %v2372 = vxor.u32 %v2371, 2147483648
  %v2373 = vmul.f32 %v2372, 1.442695
  %v2374 = vpow.pop %v2373
  %v2375 = vadd.f32 %v2374, 1.0
  %v2376 = vrcp.pop %v2375
  %v2377 = vmul.f32 %v2375, %v2376
  %v2378 = vsub.f32 1.0, %v2377
  %v2379 = vmul.f32 %v2376, %v2378
  %v2380 = vadd.f32 %v2376, %v2379
  %vm2381 = vweird.f32 %v2375
  %vm2382 = vweird.f32 %v2376
  %vm2383 = vmor %vm2381, %vm2382
  %v2384 = vsel %vm2383, %v2376, %v2380
  %v2385 = vand.u32 2147483647, %v2375
  %vm2386 = vcmp.eq.f32.partialorder %v2385, 8.507059e+37
  %v2387 = vand.u32 %v2375, 2147483648
  %v2388 = vor.u32 1.1754944e-38, %v2387
  %v2389 = vsel %vm2386, %v2388, %v2384
  %v2390 = vmul.f32 1.0, %v2389
  %v2391 = vadd.f32 %v2315, %v2355
  %v2392 = vxor.u32 %v2391, 2147483648
  %v2393 = vmul.f32 %v2392, 1.442695
  %v2394 = vpow.pop %v2393
  %v2395 = vadd.f32 %v2394, 1.0
  %v2396 = vrcp.pop %v2395
  %v2397 = vmul.f32 %v2395, %v2396
  %v2398 = vsub.f32 1.0, %v2397
  %v2399 = vmul.f32 %v2396, %v2398
  %v2400 = vadd.f32 %v2396, %v2399
  %vm2401 = vweird.f32 %v2395
  %vm2402 = vweird.f32 %v2396
  %vm2403 = vmor %vm2401, %vm2402
  %v2404 = vsel %vm2403, %v2396, %v2400
  %v2405 = vand.u32 2147483647, %v2395
  %vm2406 = vcmp.eq.f32.partialorder %v2405, 8.507059e+37
  %v2407 = vand.u32 %v2395, 2147483648
  %v2408 = vor.u32 1.1754944e-38, %v2407
  %v2409 = vsel %vm2406, %v2408, %v2404
  %v2410 = vmul.f32 1.0, %v2409
  %v2411 = vadd.f32 %v2368, %v2265
  %v2412 = vmul.f32 %v2390, %v2411
  %v2413 = vadd.f32 %v2328, %v2412
  %v2414 = vtanh.pop %v2413
  %v2415 = vsub.f32 1.0, %v2410
  %v2416 = vmul.f32 %v2415, %v2414
  %v2417 = vmul.f32 %v2410, %v2274
  %v2418 = vadd.f32 %v2416, %v2417
  %2419 = vrot.lane.b32.xlu0 %v1864, 48
  %v2420 = vpop.permute.xlu0 %2419
  %2422 = vrot.lane.b32.xlu0 %v1865, 96
  %v2423 = vpop.permute.xlu0 %2422
  %v2425 = vsel %vm1788, %v2420, %v2423
  %v2426 = vpack.c.bf16 %v2425, %v2425
  %v2428 = vsel %vm2014, %v2426, 0
  %2430 = vmatpush.bf16.msra.mxu0 0
  %2431 = vmatpush.bf16.msra.mxu0 0
  %2432 = vmatpush.bf16.msra.mxu0 0
  %2433 = vmatpush.bf16.msra.mxu0 %v1996
  %2434 = vmatpush.bf16.msra.mxu0 %v1993
  %2435 = vmatpush.bf16.msra.mxu0 %v1990
  %2436 = vmatpush.bf16.msra.mxu0 %v1987
  %2437 = vmatpush.bf16.msra.mxu0 %v1984
  %2438 = vmatmul.bf16.gmra.mxu0 %v2428
  %v2439 = vpop.f32.mrf.mxu0
  %v2440 = vadd.f32 %v1928, %v2439
  %v2441 = vpop.f32.mrf.mxu0
  %2442 = vdwg.mxu0
  %2443 = vmatpush.bf16.msra.mxu0 0
  %2444 = vmatpush.bf16.msra.mxu0 0
  %2445 = vmatpush.bf16.msra.mxu0 0
  %2446 = vmatpush.bf16.msra.mxu0 %v1997
  %2447 = vmatpush.bf16.msra.mxu0 %v1994
  %2448 = vmatpush.bf16.msra.mxu0 %v1991
  %2449 = vmatpush.bf16.msra.mxu0 %v1988
  %2450 = vmatpush.bf16.msra.mxu0 %v1985
  %2451 = vmatmul.bf16.gmra.mxu0 %v2428
  %v2452 = vpop.f32.mrf.mxu0
  %v2453 = vadd.f32 %v1929, %v2452
  %v2454 = vpop.f32.mrf.mxu0
  %2455 = vdwg.mxu0
  %2456 = vmatpush.bf16.msra.mxu0 0
  %2457 = vmatpush.bf16.msra.mxu0 0
  %2458 = vmatpush.bf16.msra.mxu0 0
  %2459 = vmatpush.bf16.msra.mxu0 %v1998
  %2460 = vmatpush.bf16.msra.mxu0 %v1995
  %2461 = vmatpush.bf16.msra.mxu0 %v1992
  %2462 = vmatpush.bf16.msra.mxu0 %v1989
  %2463 = vmatpush.bf16.msra.mxu0 %v1986
  %2464 = vmatmul.bf16.gmra.mxu0 %v2428
  %v2465 = vpop.f32.mrf.mxu0
  %v2466 = vadd.f32 %v1930, %v2465
  %v2467 = vpop.f32.mrf.mxu0
  %2468 = vdwg.mxu0
  %v2469 = vpack.c.bf16 %v2418, %v2418
  %2470 = vmatpush.bf16.msra.mxu0 %v2158
  %2471 = vmatpush.bf16.msra.mxu0 %v2155
  %2472 = vmatpush.bf16.msra.mxu0 %v2152
  %2473 = vmatpush.bf16.msra.mxu0 %v2149
  %2474 = vmatpush.bf16.msra.mxu0 %v2146
  %2475 = vmatpush.bf16.msra.mxu0 %v2143
  %2476 = vmatpush.bf16.msra.mxu0 %v2140
  %2477 = vmatpush.bf16.msra.mxu0 %v2137
  %2478 = vmatmul.bf16.gmra.mxu0 %v2469
  %v2479 = vpop.f32.mrf.mxu0
  %v2480 = vadd.f32 0.0, %v2479
  %v2481 = vpop.f32.mrf.mxu0
  %2482 = vdwg.mxu0
  %2483 = vmatpush.bf16.msra.mxu0 %v2159
  %2484 = vmatpush.bf16.msra.mxu0 %v2156
  %2485 = vmatpush.bf16.msra.mxu0 %v2153
  %2486 = vmatpush.bf16.msra.mxu0 %v2150
  %2487 = vmatpush.bf16.msra.mxu0 %v2147
  %2488 = vmatpush.bf16.msra.mxu0 %v2144
  %2489 = vmatpush.bf16.msra.mxu0 %v2141
  %2490 = vmatpush.bf16.msra.mxu0 %v2138
  %2491 = vmatmul.bf16.gmra.mxu0 %v2469
  %v2492 = vpop.f32.mrf.mxu0
  %v2493 = vadd.f32 0.0, %v2492
  %v2494 = vpop.f32.mrf.mxu0
  %2495 = vdwg.mxu0
  %2496 = vmatpush.bf16.msra.mxu0 %v2160
  %2497 = vmatpush.bf16.msra.mxu0 %v2157
  %2498 = vmatpush.bf16.msra.mxu0 %v2154
  %2499 = vmatpush.bf16.msra.mxu0 %v2151
  %2500 = vmatpush.bf16.msra.mxu0 %v2148
  %2501 = vmatpush.bf16.msra.mxu0 %v2145
  %2502 = vmatpush.bf16.msra.mxu0 %v2142
  %2503 = vmatpush.bf16.msra.mxu0 %v2139
  %2504 = vmatmul.bf16.gmra.mxu0 %v2469
  %v2505 = vpop.f32.mrf.mxu0
  %v2506 = vadd.f32 0.0, %v2505
  %v2507 = vpop.f32.mrf.mxu0
  %2508 = vdwg.mxu0
  %v2509 = vadd.f32 %v2440, %v2480
  %v2510 = vxor.u32 %v2509, 2147483648
  %v2511 = vmul.f32 %v2510, 1.442695
  %v2512 = vpow.pop %v2511
  %v2513 = vadd.f32 %v2512, 1.0
  %v2514 = vrcp.pop %v2513
  %v2515 = vmul.f32 %v2513, %v2514
  %v2516 = vsub.f32 1.0, %v2515
  %v2517 = vmul.f32 %v2514, %v2516
  %v2518 = vadd.f32 %v2514, %v2517
  %vm2519 = vweird.f32 %v2513
  %vm2520 = vweird.f32 %v2514
  %vm2521 = vmor %vm2519, %vm2520
  %v2522 = vsel %vm2521, %v2514, %v2518
  %v2523 = vand.u32 2147483647, %v2513
  %vm2524 = vcmp.eq.f32.partialorder %v2523, 8.507059e+37
  %v2525 = vand.u32 %v2513, 2147483648
  %v2526 = vor.u32 1.1754944e-38, %v2525
  %v2527 = vsel %vm2524, %v2526, %v2522
  %v2528 = vmul.f32 1.0, %v2527
  %v2529 = vadd.f32 %v2453, %v2493
  %v2530 = vxor.u32 %v2529, 2147483648
  %v2531 = vmul.f32 %v2530, 1.442695
  %v2532 = vpow.pop %v2531
  %v2533 = vadd.f32 %v2532, 1.0
  %v2534 = vrcp.pop %v2533
  %v2535 = vmul.f32 %v2533, %v2534
  %v2536 = vsub.f32 1.0, %v2535
  %v2537 = vmul.f32 %v2534, %v2536
  %v2538 = vadd.f32 %v2534, %v2537
  %vm2539 = vweird.f32 %v2533
  %vm2540 = vweird.f32 %v2534
  %vm2541 = vmor %vm2539, %vm2540
  %v2542 = vsel %vm2541, %v2534, %v2538
  %v2543 = vand.u32 2147483647, %v2533
  %vm2544 = vcmp.eq.f32.partialorder %v2543, 8.507059e+37
  %v2545 = vand.u32 %v2533, 2147483648
  %v2546 = vor.u32 1.1754944e-38, %v2545
  %v2547 = vsel %vm2544, %v2546, %v2542
  %v2548 = vmul.f32 1.0, %v2547
  %v2549 = vadd.f32 %v2506, %v2265
  %v2550 = vmul.f32 %v2528, %v2549
  %v2551 = vadd.f32 %v2466, %v2550
  %v2552 = vtanh.pop %v2551
  %v2553 = vsub.f32 1.0, %v2548
  %v2554 = vmul.f32 %v2553, %v2552
  %v2555 = vmul.f32 %v2548, %v2418
  %v2556 = vadd.f32 %v2554, %v2555
  %2557 = vrot.lane.b32.xlu0 %v1864, 8
  %v2558 = vpop.permute.xlu0 %2557
  %2559 = vrot.lane.b32.xlu0 %v1865, 8
  %v2560 = vpop.permute.xlu0 %2559
  %vm2561 = vcmask 64512
  %v2562 = vsel %vm2561, %v2558, %v2560
  %v2565 = vsel %vm1788, %v2562, %v2560
  %v2566 = vpack.c.bf16 %v2565, %v2565
  %v2568 = vsel %vm2014, %v2566, 0
  %2570 = vmatpush.bf16.msra.mxu0 0
  %2571 = vmatpush.bf16.msra.mxu0 0
  %2572 = vmatpush.bf16.msra.mxu0 0
  %2573 = vmatpush.bf16.msra.mxu0 %v1996
  %2574 = vmatpush.bf16.msra.mxu0 %v1993
  %2575 = vmatpush.bf16.msra.mxu0 %v1990
  %2576 = vmatpush.bf16.msra.mxu0 %v1987
  %2577 = vmatpush.bf16.msra.mxu0 %v1984
  %2578 = vmatmul.bf16.gmra.mxu0 %v2568
  %v2579 = vpop.f32.mrf.mxu0
  %v2580 = vadd.f32 %v1928, %v2579
  %v2581 = vpop.f32.mrf.mxu0
  %2582 = vdwg.mxu0
  %2583 = vmatpush.bf16.msra.mxu0 0
  %2584 = vmatpush.bf16.msra.mxu0 0
  %2585 = vmatpush.bf16.msra.mxu0 0
  %2586 = vmatpush.bf16.msra.mxu0 %v1997
  %2587 = vmatpush.bf16.msra.mxu0 %v1994
  %2588 = vmatpush.bf16.msra.mxu0 %v1991
  %2589 = vmatpush.bf16.msra.mxu0 %v1988
  %2590 = vmatpush.bf16.msra.mxu0 %v1985
  %2591 = vmatmul.bf16.gmra.mxu0 %v2568
  %v2592 = vpop.f32.mrf.mxu0
  %v2593 = vadd.f32 %v1929, %v2592
  %v2594 = vpop.f32.mrf.mxu0
  %2595 = vdwg.mxu0
  %2596 = vmatpush.bf16.msra.mxu0 0
  %2597 = vmatpush.bf16.msra.mxu0 0
  %2598 = vmatpush.bf16.msra.mxu0 0
  %2599 = vmatpush.bf16.msra.mxu0 %v1998
  %2600 = vmatpush.bf16.msra.mxu0 %v1995
  %2601 = vmatpush.bf16.msra.mxu0 %v1992
  %2602 = vmatpush.bf16.msra.mxu0 %v1989
  %2603 = vmatpush.bf16.msra.mxu0 %v1986
  %2604 = vmatmul.bf16.gmra.mxu0 %v2568
  %v2605 = vpop.f32.mrf.mxu0
  %v2606 = vadd.f32 %v1930, %v2605
  %v2607 = vpop.f32.mrf.mxu0
  %2608 = vdwg.mxu0
  %v2609 = vpack.c.bf16 %v2556, %v2556
  %2610 = vmatpush.bf16.msra.mxu0 %v2158
  %2611 = vmatpush.bf16.msra.mxu0 %v2155
  %2612 = vmatpush.bf16.msra.mxu0 %v2152
  %2613 = vmatpush.bf16.msra.mxu0 %v2149
  %2614 = vmatpush.bf16.msra.mxu0 %v2146
  %2615 = vmatpush.bf16.msra.mxu0 %v2143
  %2616 = vmatpush.bf16.msra.mxu0 %v2140
  %2617 = vmatpush.bf16.msra.mxu0 %v2137
  %2618 = vmatmul.bf16.gmra.mxu0 %v2609
  %v2619 = vpop.f32.mrf.mxu0
  %v2620 = vadd.f32 0.0, %v2619
  %v2621 = vpop.f32.mrf.mxu0
  %2622 = vdwg.mxu0
  %2623 = vmatpush.bf16.msra.mxu0 %v2159
  %2624 = vmatpush.bf16.msra.mxu0 %v2156
  %2625 = vmatpush.bf16.msra.mxu0 %v2153
  %2626 = vmatpush.bf16.msra.mxu0 %v2150
  %2627 = vmatpush.bf16.msra.mxu0 %v2147
  %2628 = vmatpush.bf16.msra.mxu0 %v2144
  %2629 = vmatpush.bf16.msra.mxu0 %v2141
  %2630 = vmatpush.bf16.msra.mxu0 %v2138
  %2631 = vmatmul.bf16.gmra.mxu0 %v2609
  %v2632 = vpop.f32.mrf.mxu0
  %v2633 = vadd.f32 0.0, %v2632
  %v2634 = vpop.f32.mrf.mxu0
  %2635 = vdwg.mxu0
  %2636 = vmatpush.bf16.msra.mxu0 %v2160
  %2637 = vmatpush.bf16.msra.mxu0 %v2157
  %2638 = vmatpush.bf16.msra.mxu0 %v2154
  %2639 = vmatpush.bf16.msra.mxu0 %v2151
  %2640 = vmatpush.bf16.msra.mxu0 %v2148
  %2641 = vmatpush.bf16.msra.mxu0 %v2145
  %2642 = vmatpush.bf16.msra.mxu0 %v2142
  %2643 = vmatpush.bf16.msra.mxu0 %v2139
  %2644 = vmatmul.bf16.gmra.mxu0 %v2609
  %v2645 = vpop.f32.mrf.mxu0
  %v2646 = vadd.f32 0.0, %v2645
  %v2647 = vpop.f32.mrf.mxu0
  %2648 = vdwg.mxu0
  %v2649 = vadd.f32 %v2580, %v2620
  %v2650 = vxor.u32 %v2649, 2147483648
  %v2651 = vmul.f32 %v2650, 1.442695
  %v2652 = vpow.pop %v2651
  %v2653 = vadd.f32 %v2652, 1.0
  %v2654 = vrcp.pop %v2653
  %v2655 = vmul.f32 %v2653, %v2654
  %v2656 = vsub.f32 1.0, %v2655
  %v2657 = vmul.f32 %v2654, %v2656
  %v2658 = vadd.f32 %v2654, %v2657
  %vm2659 = vweird.f32 %v2653
  %vm2660 = vweird.f32 %v2654
  %vm2661 = vmor %vm2659, %vm2660
  %v2662 = vsel %vm2661, %v2654, %v2658
  %v2663 = vand.u32 2147483647, %v2653
  %vm2664 = vcmp.eq.f32.partialorder %v2663, 8.507059e+37
  %v2665 = vand.u32 %v2653, 2147483648
  %v2666 = vor.u32 1.1754944e-38, %v2665
  %v2667 = vsel %vm2664, %v2666, %v2662
  %v2668 = vmul.f32 1.0, %v2667
  %v2669 = vadd.f32 %v2593, %v2633
  %v2670 = vxor.u32 %v2669, 2147483648
  %v2671 = vmul.f32 %v2670, 1.442695
  %v2672 = vpow.pop %v2671
  %v2673 = vadd.f32 %v2672, 1.0
  %v2674 = vrcp.pop %v2673
  %v2675 = vmul.f32 %v2673, %v2674
  %v2676 = vsub.f32 1.0, %v2675
  %v2677 = vmul.f32 %v2674, %v2676
  %v2678 = vadd.f32 %v2674, %v2677
  %vm2679 = vweird.f32 %v2673
  %vm2680 = vweird.f32 %v2674
  %vm2681 = vmor %vm2679, %vm2680
  %v2682 = vsel %vm2681, %v2674, %v2678
  %v2683 = vand.u32 2147483647, %v2673
  %vm2684 = vcmp.eq.f32.partialorder %v2683, 8.507059e+37
  %v2685 = vand.u32 %v2673, 2147483648
  %v2686 = vor.u32 1.1754944e-38, %v2685
  %v2687 = vsel %vm2684, %v2686, %v2682
  %v2688 = vmul.f32 1.0, %v2687
  %v2689 = vadd.f32 %v2646, %v2265
  %v2690 = vmul.f32 %v2668, %v2689
  %v2691 = vadd.f32 %v2606, %v2690
  %v2692 = vtanh.pop %v2691
  %v2693 = vsub.f32 1.0, %v2688
  %v2694 = vmul.f32 %v2693, %v2692
  %v2695 = vmul.f32 %v2688, %v2556
  %v2696 = vadd.f32 %v2694, %v2695
  %2697 = vrot.lane.b32.xlu0 %v1865, 48
  %v2698 = vpop.permute.xlu0 %2697
  %vm2699 = vcmask 392192
  %v2700 = vsel %vm2699, %v2420, %v2698
  %v2702 = vsel %vm1788, %v2423, %v2700
  %v2703 = vpack.c.bf16 %v2702, %v2702
  %v2705 = vsel %vm2014, %v2703, 0
  %2707 = vmatpush.bf16.msra.mxu0 0
  %2708 = vmatpush.bf16.msra.mxu0 0
  %2709 = vmatpush.bf16.msra.mxu0 0
  %2710 = vmatpush.bf16.msra.mxu0 %v1996
  %2711 = vmatpush.bf16.msra.mxu0 %v1993
  %2712 = vmatpush.bf16.msra.mxu0 %v1990
  %2713 = vmatpush.bf16.msra.mxu0 %v1987
  %2714 = vmatpush.bf16.msra.mxu0 %v1984
  %2715 = vmatmul.bf16.gmra.mxu0 %v2705
  %v2716 = vpop.f32.mrf.mxu0
  %v2717 = vadd.f32 %v1928, %v2716
  %v2718 = vpop.f32.mrf.mxu0
  %2719 = vdwg.mxu0
  %2720 = vmatpush.bf16.msra.mxu0 0
  %2721 = vmatpush.bf16.msra.mxu0 0
  %2722 = vmatpush.bf16.msra.mxu0 0
  %2723 = vmatpush.bf16.msra.mxu0 %v1997
  %2724 = vmatpush.bf16.msra.mxu0 %v1994
  %2725 = vmatpush.bf16.msra.mxu0 %v1991
  %2726 = vmatpush.bf16.msra.mxu0 %v1988
  %2727 = vmatpush.bf16.msra.mxu0 %v1985
  %2728 = vmatmul.bf16.gmra.mxu0 %v2705
  %v2729 = vpop.f32.mrf.mxu0
  %v2730 = vadd.f32 %v1929, %v2729
  %v2731 = vpop.f32.mrf.mxu0
  %2732 = vdwg.mxu0
  %2733 = vmatpush.bf16.msra.mxu0 0
  %2734 = vmatpush.bf16.msra.mxu0 0
  %2735 = vmatpush.bf16.msra.mxu0 0
  %2736 = vmatpush.bf16.msra.mxu0 %v1998
  %2737 = vmatpush.bf16.msra.mxu0 %v1995
  %2738 = vmatpush.bf16.msra.mxu0 %v1992
  %2739 = vmatpush.bf16.msra.mxu0 %v1989
  %2740 = vmatpush.bf16.msra.mxu0 %v1986
  %2741 = vmatmul.bf16.gmra.mxu0 %v2705
  %v2742 = vpop.f32.mrf.mxu0
  %v2743 = vadd.f32 %v1930, %v2742
  %v2744 = vpop.f32.mrf.mxu0
  %2745 = vdwg.mxu0
  %v2746 = vpack.c.bf16 %v2696, %v2696
  %2747 = vmatpush.bf16.msra.mxu0 %v2158
  %2748 = vmatpush.bf16.msra.mxu0 %v2155
  %2749 = vmatpush.bf16.msra.mxu0 %v2152
  %2750 = vmatpush.bf16.msra.mxu0 %v2149
  %2751 = vmatpush.bf16.msra.mxu0 %v2146
  %2752 = vmatpush.bf16.msra.mxu0 %v2143
  %2753 = vmatpush.bf16.msra.mxu0 %v2140
  %2754 = vmatpush.bf16.msra.mxu0 %v2137
  %2755 = vmatmul.bf16.gmra.mxu0 %v2746
  %v2756 = vpop.f32.mrf.mxu0
  %v2757 = vadd.f32 0.0, %v2756
  %v2758 = vpop.f32.mrf.mxu0
  %2759 = vdwg.mxu0
  %2760 = vmatpush.bf16.msra.mxu0 %v2159
  %2761 = vmatpush.bf16.msra.mxu0 %v2156
  %2762 = vmatpush.bf16.msra.mxu0 %v2153
  %2763 = vmatpush.bf16.msra.mxu0 %v2150
  %2764 = vmatpush.bf16.msra.mxu0 %v2147
  %2765 = vmatpush.bf16.msra.mxu0 %v2144
  %2766 = vmatpush.bf16.msra.mxu0 %v2141
  %2767 = vmatpush.bf16.msra.mxu0 %v2138
  %2768 = vmatmul.bf16.gmra.mxu0 %v2746
  %v2769 = vpop.f32.mrf.mxu0
  %v2770 = vadd.f32 0.0, %v2769
  %v2771 = vpop.f32.mrf.mxu0
  %2772 = vdwg.mxu0
  %2773 = vmatpush.bf16.msra.mxu0 %v2160
  %2774 = vmatpush.bf16.msra.mxu0 %v2157
  %2775 = vmatpush.bf16.msra.mxu0 %v2154
  %2776 = vmatpush.bf16.msra.mxu0 %v2151
  %2777 = vmatpush.bf16.msra.mxu0 %v2148
  %2778 = vmatpush.bf16.msra.mxu0 %v2145
  %2779 = vmatpush.bf16.msra.mxu0 %v2142
  %2780 = vmatpush.bf16.msra.mxu0 %v2139
  %2781 = vmatmul.bf16.gmra.mxu0 %v2746
  %v2782 = vpop.f32.mrf.mxu0
  %v2783 = vadd.f32 0.0, %v2782
  %v2784 = vpop.f32.mrf.mxu0
  %2785 = vdwg.mxu0
  %v2786 = vadd.f32 %v2717, %v2757
  %v2787 = vxor.u32 %v2786, 2147483648
  %v2788 = vmul.f32 %v2787, 1.442695
  %v2789 = vpow.pop %v2788
  %v2790 = vadd.f32 %v2789, 1.0
  %v2791 = vrcp.pop %v2790
  %v2792 = vmul.f32 %v2790, %v2791
  %v2793 = vsub.f32 1.0, %v2792
  %v2794 = vmul.f32 %v2791, %v2793
  %v2795 = vadd.f32 %v2791, %v2794
  %vm2796 = vweird.f32 %v2790
  %vm2797 = vweird.f32 %v2791
  %vm2798 = vmor %vm2796, %vm2797
  %v2799 = vsel %vm2798, %v2791, %v2795
  %v2800 = vand.u32 2147483647, %v2790
  %vm2801 = vcmp.eq.f32.partialorder %v2800, 8.507059e+37
  %v2802 = vand.u32 %v2790, 2147483648
  %v2803 = vor.u32 1.1754944e-38, %v2802
  %v2804 = vsel %vm2801, %v2803, %v2799
  %v2805 = vmul.f32 1.0, %v2804
  %v2806 = vadd.f32 %v2730, %v2770
  %v2807 = vxor.u32 %v2806, 2147483648
  %v2808 = vmul.f32 %v2807, 1.442695
  %v2809 = vpow.pop %v2808
  %v2810 = vadd.f32 %v2809, 1.0
  %v2811 = vrcp.pop %v2810
  %v2812 = vmul.f32 %v2810, %v2811
  %v2813 = vsub.f32 1.0, %v2812
  %v2814 = vmul.f32 %v2811, %v2813
  %v2815 = vadd.f32 %v2811, %v2814
  %vm2816 = vweird.f32 %v2810
  %vm2817 = vweird.f32 %v2811
  %vm2818 = vmor %vm2816, %vm2817
  %v2819 = vsel %vm2818, %v2811, %v2815
  %v2820 = vand.u32 2147483647, %v2810
  %vm2821 = vcmp.eq.f32.partialorder %v2820, 8.507059e+37
  %v2822 = vand.u32 %v2810, 2147483648
  %v2823 = vor.u32 1.1754944e-38, %v2822
  %v2824 = vsel %vm2821, %v2823, %v2819
  %v2825 = vmul.f32 1.0, %v2824
  %v2826 = vadd.f32 %v2783, %v2265
  %v2827 = vmul.f32 %v2805, %v2826
  %v2828 = vadd.f32 %v2743, %v2827
  %v2829 = vtanh.pop %v2828
  %v2830 = vsub.f32 1.0, %v2825
  %v2831 = vmul.f32 %v2830, %v2829
  %v2832 = vmul.f32 %v2825, %v2696
  %v2833 = vadd.f32 %v2831, %v2832
  %v2835 = vsel %vm1788, %v2281, %v2277
  %v2836 = vpack.c.bf16 %v2835, %v2835
  %v2838 = vsel %vm2014, %v2836, 0
  %2840 = vmatpush.bf16.msra.mxu0 0
  %2841 = vmatpush.bf16.msra.mxu0 0
  %2842 = vmatpush.bf16.msra.mxu0 0
  %2843 = vmatpush.bf16.msra.mxu0 %v1996
  %2844 = vmatpush.bf16.msra.mxu0 %v1993
  %2845 = vmatpush.bf16.msra.mxu0 %v1990
  %2846 = vmatpush.bf16.msra.mxu0 %v1987
  %2847 = vmatpush.bf16.msra.mxu0 %v1984
  %2848 = vmatmul.bf16.gmra.mxu0 %v2838
  %v2849 = vpop.f32.mrf.mxu0
  %v2850 = vadd.f32 %v1928, %v2849
  %v2851 = vpop.f32.mrf.mxu0
  %2852 = vdwg.mxu0
  %2853 = vmatpush.bf16.msra.mxu0 0
  %2854 = vmatpush.bf16.msra.mxu0 0
  %2855 = vmatpush.bf16.msra.mxu0 0
  %2856 = vmatpush.bf16.msra.mxu0 %v1997
  %2857 = vmatpush.bf16.msra.mxu0 %v1994
  %2858 = vmatpush.bf16.msra.mxu0 %v1991
  %2859 = vmatpush.bf16.msra.mxu0 %v1988
  %2860 = vmatpush.bf16.msra.mxu0 %v1985
  %2861 = vmatmul.bf16.gmra.mxu0 %v2838
  %v2862 = vpop.f32.mrf.mxu0
  %v2863 = vadd.f32 %v1929, %v2862
  %v2864 = vpop.f32.mrf.mxu0
  %2865 = vdwg.mxu0
  %2866 = vmatpush.bf16.msra.mxu0 0
  %2867 = vmatpush.bf16.msra.mxu0 0
  %2868 = vmatpush.bf16.msra.mxu0 0
  %2869 = vmatpush.bf16.msra.mxu0 %v1998
  %2870 = vmatpush.bf16.msra.mxu0 %v1995
  %2871 = vmatpush.bf16.msra.mxu0 %v1992
  %2872 = vmatpush.bf16.msra.mxu0 %v1989
  %2873 = vmatpush.bf16.msra.mxu0 %v1986
  %2874 = vmatmul.bf16.gmra.mxu0 %v2838
  %v2875 = vpop.f32.mrf.mxu0
  %v2876 = vadd.f32 %v1930, %v2875
  %v2877 = vpop.f32.mrf.mxu0
  %2878 = vdwg.mxu0
  %v2879 = vpack.c.bf16 %v2833, %v2833
  %2880 = vmatpush.bf16.msra.mxu0 %v2158
  %2881 = vmatpush.bf16.msra.mxu0 %v2155
  %2882 = vmatpush.bf16.msra.mxu0 %v2152
  %2883 = vmatpush.bf16.msra.mxu0 %v2149
  %2884 = vmatpush.bf16.msra.mxu0 %v2146
  %2885 = vmatpush.bf16.msra.mxu0 %v2143
  %2886 = vmatpush.bf16.msra.mxu0 %v2140
  %2887 = vmatpush.bf16.msra.mxu0 %v2137
  %2888 = vmatmul.bf16.gmra.mxu0 %v2879
  %v2889 = vpop.f32.mrf.mxu0
  %v2890 = vadd.f32 0.0, %v2889
  %v2891 = vpop.f32.mrf.mxu0
  %2892 = vdwg.mxu0
  %2893 = vmatpush.bf16.msra.mxu0 %v2159
  %2894 = vmatpush.bf16.msra.mxu0 %v2156
  %2895 = vmatpush.bf16.msra.mxu0 %v2153
  %2896 = vmatpush.bf16.msra.mxu0 %v2150
  %2897 = vmatpush.bf16.msra.mxu0 %v2147
  %2898 = vmatpush.bf16.msra.mxu0 %v2144
  %2899 = vmatpush.bf16.msra.mxu0 %v2141
  %2900 = vmatpush.bf16.msra.mxu0 %v2138
  %2901 = vmatmul.bf16.gmra.mxu0 %v2879
  %v2902 = vpop.f32.mrf.mxu0
  %v2903 = vadd.f32 0.0, %v2902
  %v2904 = vpop.f32.mrf.mxu0
  %2905 = vdwg.mxu0
  %2906 = vmatpush.bf16.msra.mxu0 %v2160
  %2907 = vmatpush.bf16.msra.mxu0 %v2157
  %2908 = vmatpush.bf16.msra.mxu0 %v2154
  %2909 = vmatpush.bf16.msra.mxu0 %v2151
  %2910 = vmatpush.bf16.msra.mxu0 %v2148
  %2911 = vmatpush.bf16.msra.mxu0 %v2145
  %2912 = vmatpush.bf16.msra.mxu0 %v2142
  %2913 = vmatpush.bf16.msra.mxu0 %v2139
  %2914 = vmatmul.bf16.gmra.mxu0 %v2879
  %v2915 = vpop.f32.mrf.mxu0
  %v2916 = vadd.f32 0.0, %v2915
  %v2917 = vpop.f32.mrf.mxu0
  %2918 = vdwg.mxu0
  %v2919 = vadd.f32 %v2850, %v2890
  %v2920 = vxor.u32 %v2919, 2147483648
  %v2921 = vmul.f32 %v2920, 1.442695
  %v2922 = vpow.pop %v2921
  %v2923 = vadd.f32 %v2922, 1.0
  %v2924 = vrcp.pop %v2923
  %v2925 = vmul.f32 %v2923, %v2924
  %v2926 = vsub.f32 1.0, %v2925
  %v2927 = vmul.f32 %v2924, %v2926
  %v2928 = vadd.f32 %v2924, %v2927
  %vm2929 = vweird.f32 %v2923
  %vm2930 = vweird.f32 %v2924
  %vm2931 = vmor %vm2929, %vm2930
  %v2932 = vsel %vm2931, %v2924, %v2928
  %v2933 = vand.u32 2147483647, %v2923
  %vm2934 = vcmp.eq.f32.partialorder %v2933, 8.507059e+37
  %v2935 = vand.u32 %v2923, 2147483648
  %v2936 = vor.u32 1.1754944e-38, %v2935
  %v2937 = vsel %vm2934, %v2936, %v2932
  %v2938 = vmul.f32 1.0, %v2937
  %v2939 = vadd.f32 %v2863, %v2903
  %v2940 = vxor.u32 %v2939, 2147483648
  %v2941 = vmul.f32 %v2940, 1.442695
  %v2942 = vpow.pop %v2941
  %v2943 = vadd.f32 %v2942, 1.0
  %v2944 = vrcp.pop %v2943
  %v2945 = vmul.f32 %v2943, %v2944
  %v2946 = vsub.f32 1.0, %v2945
  %v2947 = vmul.f32 %v2944, %v2946
  %v2948 = vadd.f32 %v2944, %v2947
  %vm2949 = vweird.f32 %v2943
  %vm2950 = vweird.f32 %v2944
  %vm2951 = vmor %vm2949, %vm2950
  %v2952 = vsel %vm2951, %v2944, %v2948
  %v2953 = vand.u32 2147483647, %v2943
  %vm2954 = vcmp.eq.f32.partialorder %v2953, 8.507059e+37
  %v2955 = vand.u32 %v2943, 2147483648
  %v2956 = vor.u32 1.1754944e-38, %v2955
  %v2957 = vsel %vm2954, %v2956, %v2952
  %v2958 = vmul.f32 1.0, %v2957
  %v2959 = vadd.f32 %v2916, %v2265
  %v2960 = vmul.f32 %v2938, %v2959
  %v2961 = vadd.f32 %v2876, %v2960
  %v2962 = vtanh.pop %v2961
  %v2963 = vsub.f32 1.0, %v2958
  %v2964 = vmul.f32 %v2963, %v2962
  %v2965 = vmul.f32 %v2958, %v2833
  %v2966 = vadd.f32 %v2964, %v2965
  %2967 = vrot.lane.b32.xlu0 %v1865, 16
  %v2968 = vpop.permute.xlu0 %2967
  %vm2969 = vcmask 130048
  %v2970 = vsel %vm2969, %v2968, %v1923
  %v2972 = vsel %vm1788, %v2970, %v1864
  %v2973 = vpack.c.bf16 %v2972, %v2972
  %v2975 = vsel %vm2014, %v2973, 0
  %2977 = vmatpush.bf16.msra.mxu0 0
  %2978 = vmatpush.bf16.msra.mxu0 0
  %2979 = vmatpush.bf16.msra.mxu0 0
  %2980 = vmatpush.bf16.msra.mxu0 %v1996
  %2981 = vmatpush.bf16.msra.mxu0 %v1993
  %2982 = vmatpush.bf16.msra.mxu0 %v1990
  %2983 = vmatpush.bf16.msra.mxu0 %v1987
  %2984 = vmatpush.bf16.msra.mxu0 %v1984
  %2985 = vmatmul.bf16.gmra.mxu0 %v2975
  %v2986 = vpop.f32.mrf.mxu0
  %v2987 = vadd.f32 %v1928, %v2986
  %v2988 = vpop.f32.mrf.mxu0
  %2989 = vdwg.mxu0
  %2990 = vmatpush.bf16.msra.mxu0 0
  %2991 = vmatpush.bf16.msra.mxu0 0
  %2992 = vmatpush.bf16.msra.mxu0 0
  %2993 = vmatpush.bf16.msra.mxu0 %v1997
  %2994 = vmatpush.bf16.msra.mxu0 %v1994
  %2995 = vmatpush.bf16.msra.mxu0 %v1991
  %2996 = vmatpush.bf16.msra.mxu0 %v1988
  %2997 = vmatpush.bf16.msra.mxu0 %v1985
  %2998 = vmatmul.bf16.gmra.mxu0 %v2975
  %v2999 = vpop.f32.mrf.mxu0
  %v3000 = vadd.f32 %v1929, %v2999
  %v3001 = vpop.f32.mrf.mxu0
  %3002 = vdwg.mxu0
  %3003 = vmatpush.bf16.msra.mxu0 0
  %3004 = vmatpush.bf16.msra.mxu0 0
  %3005 = vmatpush.bf16.msra.mxu0 0
  %3006 = vmatpush.bf16.msra.mxu0 %v1998
  %3007 = vmatpush.bf16.msra.mxu0 %v1995
  %3008 = vmatpush.bf16.msra.mxu0 %v1992
  %3009 = vmatpush.bf16.msra.mxu0 %v1989
  %3010 = vmatpush.bf16.msra.mxu0 %v1986
  %3011 = vmatmul.bf16.gmra.mxu0 %v2975
  %v3012 = vpop.f32.mrf.mxu0
  %v3013 = vadd.f32 %v1930, %v3012
  %v3014 = vpop.f32.mrf.mxu0
  %3015 = vdwg.mxu0
  %v3016 = vpack.c.bf16 %v2966, %v2966
  %3017 = vmatpush.bf16.msra.mxu0 %v2158
  %3018 = vmatpush.bf16.msra.mxu0 %v2155
  %3019 = vmatpush.bf16.msra.mxu0 %v2152
  %3020 = vmatpush.bf16.msra.mxu0 %v2149
  %3021 = vmatpush.bf16.msra.mxu0 %v2146
  %3022 = vmatpush.bf16.msra.mxu0 %v2143
  %3023 = vmatpush.bf16.msra.mxu0 %v2140
  %3024 = vmatpush.bf16.msra.mxu0 %v2137
  %3025 = vmatmul.bf16.gmra.mxu0 %v3016
  %v3026 = vpop.f32.mrf.mxu0
  %v3027 = vadd.f32 0.0, %v3026
  %v3028 = vpop.f32.mrf.mxu0
  %3029 = vdwg.mxu0
  %3030 = vmatpush.bf16.msra.mxu0 %v2159
  %3031 = vmatpush.bf16.msra.mxu0 %v2156
  %3032 = vmatpush.bf16.msra.mxu0 %v2153
  %3033 = vmatpush.bf16.msra.mxu0 %v2150
  %3034 = vmatpush.bf16.msra.mxu0 %v2147
  %3035 = vmatpush.bf16.msra.mxu0 %v2144
  %3036 = vmatpush.bf16.msra.mxu0 %v2141
  %3037 = vmatpush.bf16.msra.mxu0 %v2138
  %3038 = vmatmul.bf16.gmra.mxu0 %v3016
  %v3039 = vpop.f32.mrf.mxu0
  %v3040 = vadd.f32 0.0, %v3039
  %v3041 = vpop.f32.mrf.mxu0
  %3042 = vdwg.mxu0
  %3043 = vmatpush.bf16.msra.mxu0 %v2160
  %3044 = vmatpush.bf16.msra.mxu0 %v2157
  %3045 = vmatpush.bf16.msra.mxu0 %v2154
  %3046 = vmatpush.bf16.msra.mxu0 %v2151
  %3047 = vmatpush.bf16.msra.mxu0 %v2148
  %3048 = vmatpush.bf16.msra.mxu0 %v2145
  %3049 = vmatpush.bf16.msra.mxu0 %v2142
  %3050 = vmatpush.bf16.msra.mxu0 %v2139
  %3051 = vmatmul.bf16.gmra.mxu0 %v3016
  %v3052 = vpop.f32.mrf.mxu0
  %v3053 = vadd.f32 0.0, %v3052
  %v3054 = vpop.f32.mrf.mxu0
  %3055 = vdwg.mxu0
  %v3056 = vadd.f32 %v2987, %v3027
  %v3057 = vxor.u32 %v3056, 2147483648
  %v3058 = vmul.f32 %v3057, 1.442695
  %v3059 = vpow.pop %v3058
  %v3060 = vadd.f32 %v3059, 1.0
  %v3061 = vrcp.pop %v3060
  %v3062 = vmul.f32 %v3060, %v3061
  %v3063 = vsub.f32 1.0, %v3062
  %v3064 = vmul.f32 %v3061, %v3063
  %v3065 = vadd.f32 %v3061, %v3064
  %vm3066 = vweird.f32 %v3060
  %vm3067 = vweird.f32 %v3061
  %vm3068 = vmor %vm3066, %vm3067
  %v3069 = vsel %vm3068, %v3061, %v3065
  %v3070 = vand.u32 2147483647, %v3060
  %vm3071 = vcmp.eq.f32.partialorder %v3070, 8.507059e+37
  %v3072 = vand.u32 %v3060, 2147483648
  %v3073 = vor.u32 1.1754944e-38, %v3072
  %v3074 = vsel %vm3071, %v3073, %v3069
  %v3075 = vmul.f32 1.0, %v3074
  %v3076 = vadd.f32 %v3000, %v3040
  %v3077 = vxor.u32 %v3076, 2147483648
  %v3078 = vmul.f32 %v3077, 1.442695
  %v3079 = vpow.pop %v3078
  %v3080 = vadd.f32 %v3079, 1.0
  %v3081 = vrcp.pop %v3080
  %v3082 = vmul.f32 %v3080, %v3081
  %v3083 = vsub.f32 1.0, %v3082
  %v3084 = vmul.f32 %v3081, %v3083
  %v3085 = vadd.f32 %v3081, %v3084
  %vm3086 = vweird.f32 %v3080
  %vm3087 = vweird.f32 %v3081
  %vm3088 = vmor %vm3086, %vm3087
  %v3089 = vsel %vm3088, %v3081, %v3085
  %v3090 = vand.u32 2147483647, %v3080
  %vm3091 = vcmp.eq.f32.partialorder %v3090, 8.507059e+37
  %v3092 = vand.u32 %v3080, 2147483648
  %v3093 = vor.u32 1.1754944e-38, %v3092
  %v3094 = vsel %vm3091, %v3093, %v3089
  %v3095 = vmul.f32 1.0, %v3094
  %v3096 = vadd.f32 %v3053, %v2265
  %v3097 = vmul.f32 %v3075, %v3096
  %v3098 = vadd.f32 %v3013, %v3097
  %v3099 = vtanh.pop %v3098
  %v3100 = vsub.f32 1.0, %v3095
  %v3101 = vmul.f32 %v3100, %v3099
  %v3102 = vmul.f32 %v3095, %v2966
  %v3103 = vadd.f32 %v3101, %v3102
  %3104 = vrot.lane.b32.xlu0 %v1866, 104
  %v3105 = vpop.permute.xlu0 %3104
  %3107 = vrot.lane.b32.xlu0 %v1864, 40
  %v3108 = vpop.permute.xlu0 %3107
  %v3110 = vsel %vm1788, %v3105, %v3108
  %v3111 = vpack.c.bf16 %v3110, %v3110
  %v3113 = vsel %vm2014, %v3111, 0
  %3115 = vmatpush.bf16.msra.mxu0 0
  %3116 = vmatpush.bf16.msra.mxu0 0
  %3117 = vmatpush.bf16.msra.mxu0 0
  %3118 = vmatpush.bf16.msra.mxu0 %v1996
  %3119 = vmatpush.bf16.msra.mxu0 %v1993
  %3120 = vmatpush.bf16.msra.mxu0 %v1990
  %3121 = vmatpush.bf16.msra.mxu0 %v1987
  %3122 = vmatpush.bf16.msra.mxu0 %v1984
  %3123 = vmatmul.bf16.gmra.mxu0 %v3113
  %v3124 = vpop.f32.mrf.mxu0
  %v3125 = vadd.f32 %v1928, %v3124
  %v3126 = vpop.f32.mrf.mxu0
  %3127 = vdwg.mxu0
  %3128 = vmatpush.bf16.msra.mxu0 0
  %3129 = vmatpush.bf16.msra.mxu0 0
  %3130 = vmatpush.bf16.msra.mxu0 0
  %3131 = vmatpush.bf16.msra.mxu0 %v1997
  %3132 = vmatpush.bf16.msra.mxu0 %v1994
  %3133 = vmatpush.bf16.msra.mxu0 %v1991
  %3134 = vmatpush.bf16.msra.mxu0 %v1988
  %3135 = vmatpush.bf16.msra.mxu0 %v1985
  %3136 = vmatmul.bf16.gmra.mxu0 %v3113
  %v3137 = vpop.f32.mrf.mxu0
  %v3138 = vadd.f32 %v1929, %v3137
  %v3139 = vpop.f32.mrf.mxu0
  %3140 = vdwg.mxu0
  %3141 = vmatpush.bf16.msra.mxu0 0
  %3142 = vmatpush.bf16.msra.mxu0 0
  %3143 = vmatpush.bf16.msra.mxu0 0
  %3144 = vmatpush.bf16.msra.mxu0 %v1998
  %3145 = vmatpush.bf16.msra.mxu0 %v1995
  %3146 = vmatpush.bf16.msra.mxu0 %v1992
  %3147 = vmatpush.bf16.msra.mxu0 %v1989
  %3148 = vmatpush.bf16.msra.mxu0 %v1986
  %3149 = vmatmul.bf16.gmra.mxu0 %v3113
  %v3150 = vpop.f32.mrf.mxu0
  %v3151 = vadd.f32 %v1930, %v3150
  %v3152 = vpop.f32.mrf.mxu0
  %3153 = vdwg.mxu0
  %v3154 = vpack.c.bf16 %v3103, %v3103
  %3155 = vmatpush.bf16.msra.mxu0 %v2158
  %3156 = vmatpush.bf16.msra.mxu0 %v2155
  %3157 = vmatpush.bf16.msra.mxu0 %v2152
  %3158 = vmatpush.bf16.msra.mxu0 %v2149
  %3159 = vmatpush.bf16.msra.mxu0 %v2146
  %3160 = vmatpush.bf16.msra.mxu0 %v2143
  %3161 = vmatpush.bf16.msra.mxu0 %v2140
  %3162 = vmatpush.bf16.msra.mxu0 %v2137
  %3163 = vmatmul.bf16.gmra.mxu0 %v3154
  %v3164 = vpop.f32.mrf.mxu0
  %v3165 = vadd.f32 0.0, %v3164
  %v3166 = vpop.f32.mrf.mxu0
  %3167 = vdwg.mxu0
  %3168 = vmatpush.bf16.msra.mxu0 %v2159
  %3169 = vmatpush.bf16.msra.mxu0 %v2156
  %3170 = vmatpush.bf16.msra.mxu0 %v2153
  %3171 = vmatpush.bf16.msra.mxu0 %v2150
  %3172 = vmatpush.bf16.msra.mxu0 %v2147
  %3173 = vmatpush.bf16.msra.mxu0 %v2144
  %3174 = vmatpush.bf16.msra.mxu0 %v2141
  %3175 = vmatpush.bf16.msra.mxu0 %v2138
  %3176 = vmatmul.bf16.gmra.mxu0 %v3154
  %v3177 = vpop.f32.mrf.mxu0
  %v3178 = vadd.f32 0.0, %v3177
  %v3179 = vpop.f32.mrf.mxu0
  %3180 = vdwg.mxu0
  %3181 = vmatpush.bf16.msra.mxu0 %v2160
  %3182 = vmatpush.bf16.msra.mxu0 %v2157
  %3183 = vmatpush.bf16.msra.mxu0 %v2154
  %3184 = vmatpush.bf16.msra.mxu0 %v2151
  %3185 = vmatpush.bf16.msra.mxu0 %v2148
  %3186 = vmatpush.bf16.msra.mxu0 %v2145
  %3187 = vmatpush.bf16.msra.mxu0 %v2142
  %3188 = vmatpush.bf16.msra.mxu0 %v2139
  %3189 = vmatmul.bf16.gmra.mxu0 %v3154
  %v3190 = vpop.f32.mrf.mxu0
  %v3191 = vadd.f32 0.0, %v3190
  %v3192 = vpop.f32.mrf.mxu0
  %3193 = vdwg.mxu0
  %v3194 = vadd.f32 %v3125, %v3165
  %v3195 = vxor.u32 %v3194, 2147483648
  %v3196 = vmul.f32 %v3195, 1.442695
  %v3197 = vpow.pop %v3196
  %v3198 = vadd.f32 %v3197, 1.0
  %v3199 = vrcp.pop %v3198
  %v3200 = vmul.f32 %v3198, %v3199
  %v3201 = vsub.f32 1.0, %v3200
  %v3202 = vmul.f32 %v3199, %v3201
  %v3203 = vadd.f32 %v3199, %v3202
  %vm3204 = vweird.f32 %v3198
  %vm3205 = vweird.f32 %v3199
  %vm3206 = vmor %vm3204, %vm3205
  %v3207 = vsel %vm3206, %v3199, %v3203
  %v3208 = vand.u32 2147483647, %v3198
  %vm3209 = vcmp.eq.f32.partialorder %v3208, 8.507059e+37
  %v3210 = vand.u32 %v3198, 2147483648
  %v3211 = vor.u32 1.1754944e-38, %v3210
  %v3212 = vsel %vm3209, %v3211, %v3207
  %v3213 = vmul.f32 1.0, %v3212
  %v3214 = vadd.f32 %v3138, %v3178
  %v3215 = vxor.u32 %v3214, 2147483648
  %v3216 = vmul.f32 %v3215, 1.442695
  %v3217 = vpow.pop %v3216
  %v3218 = vadd.f32 %v3217, 1.0
  %v3219 = vrcp.pop %v3218
  %v3220 = vmul.f32 %v3218, %v3219
  %v3221 = vsub.f32 1.0, %v3220
  %v3222 = vmul.f32 %v3219, %v3221
  %v3223 = vadd.f32 %v3219, %v3222
  %vm3224 = vweird.f32 %v3218
  %vm3225 = vweird.f32 %v3219
  %vm3226 = vmor %vm3224, %vm3225
  %v3227 = vsel %vm3226, %v3219, %v3223
  %v3228 = vand.u32 2147483647, %v3218
  %vm3229 = vcmp.eq.f32.partialorder %v3228, 8.507059e+37
  %v3230 = vand.u32 %v3218, 2147483648
  %v3231 = vor.u32 1.1754944e-38, %v3230
  %v3232 = vsel %vm3229, %v3231, %v3227
  %v3233 = vmul.f32 1.0, %v3232
  %v3234 = vadd.f32 %v3191, %v2265
  %v3235 = vmul.f32 %v3213, %v3234
  %v3236 = vadd.f32 %v3151, %v3235
  %v3237 = vtanh.pop %v3236
  %v3238 = vsub.f32 1.0, %v3233
  %v3239 = vmul.f32 %v3238, %v3237
  %v3240 = vmul.f32 %v3233, %v3103
  %v3241 = vadd.f32 %v3239, %v3240
  %v3242 = vld [vmem:[%s17] sm:$0xf]
  %v3243 = vld [vmem:[%s17 + $0x4] sm:$0xf]
  %v3244 = vld [vmem:[%s17 + $0x8] sm:$0xf]
  %v3245 = vld [vmem:[%s17 + $0xc] sm:$0xf]
  %v3246 = vld [vmem:[%s17 + $0x10] sm:$0xf]
  %v3247 = vld [vmem:[%s17 + $0x14] sm:$0xf]
  %v3248 = vld [vmem:[%s17 + $0x18] sm:$0xf]
  %v3249 = vld [vmem:[%s17 + $0x1c] sm:$0xf]
  %v3250 = vld [vmem:[%s17 + $0x20] sm:$0xf]
  %v3251 = vld [vmem:[%s17 + $0x24] sm:$0xf]
  %v3252 = vld [vmem:[%s17 + $0x28] sm:$0xf]
  %v3253 = vld [vmem:[%s17 + $0x2c] sm:$0xf]
  %v3254 = vld [vmem:[%s17 + $0x30] sm:$0xf]
  %v3255 = vld [vmem:[%s17 + $0x34] sm:$0xf]
  %v3256 = vld [vmem:[%s17 + $0x38] sm:$0xf]
  %v3257 = vld [vmem:[%s17 + $0x3c] sm:$0xf]
  %v3258 = vpack.c.bf16 %v3241, %v3241
  %v3259 = vld [vmem:[%s18] sm:$0x1]
  %v3261 = vperm.slane %v3259, 0
  %v3279 = vunpack.c.l.b16 %v3242
  %v3280 = vunpack.c.l.b16 %v3243
  %v3281 = vunpack.c.l.b16 %v3244
  %v3282 = vunpack.c.l.b16 %v3245
  %v3283 = vunpack.c.l.b16 %v3246
  %v3284 = vunpack.c.l.b16 %v3247
  %v3285 = vunpack.c.l.b16 %v3248
  %v3286 = vunpack.c.l.b16 %v3249
  %v3287 = vunpack.c.l.b16 %v3250
  %v3288 = vunpack.c.l.b16 %v3251
  %v3289 = vunpack.c.l.b16 %v3252
  %v3290 = vunpack.c.l.b16 %v3253
  %v3291 = vunpack.c.l.b16 %v3254
  %v3292 = vunpack.c.l.b16 %v3255
  %v3293 = vunpack.c.l.b16 %v3256
  %v3294 = vunpack.c.l.b16 %v3257
  %v3295 = vpack.c.b16 %v3280, %v3279
  %v3296 = vpack.c.b16 %v3282, %v3281
  %v3297 = vpack.c.b16 %v3284, %v3283
  %v3298 = vpack.c.b16 %v3286, %v3285
  %v3299 = vpack.c.b16 %v3288, %v3287
  %v3300 = vpack.c.b16 %v3290, %v3289
  %v3301 = vpack.c.b16 %v3292, %v3291
  %v3302 = vpack.c.b16 %v3294, %v3293
  %3311 = vmatpush.bf16.msra.mxu0 %v3302
  %3312 = vmatpush.bf16.msra.mxu0 %v3301
  %3313 = vmatpush.bf16.msra.mxu0 %v3300
  %3314 = vmatpush.bf16.msra.mxu0 %v3299
  %3315 = vmatpush.bf16.msra.mxu0 %v3298
  %3316 = vmatpush.bf16.msra.mxu0 %v3297
  %3317 = vmatpush.bf16.msra.mxu0 %v3296
  %3318 = vmatpush.bf16.msra.mxu0 %v3295
  %3319 = vmatmul.bf16.gmra.mxu0 %v3258
  %v3320 = vpop.f32.mrf.mxu0
  %v3321 = vadd.f32 %v3261, %v3320
  %v3322 = vpop.f32.mrf.mxu0
  %3323 = vdwg.mxu0
  %v3324 = vmax.f32 %v3321, 0.0
  %v3325 = vld [vmem:[%s19] sm:$0xf]
  %v3326 = vld [vmem:[%s19 + $0x4] sm:$0xf]
  %v3327 = vld [vmem:[%s19 + $0x8] sm:$0xf]
  %v3328 = vld [vmem:[%s19 + $0xc] sm:$0xf]
  %v3329 = vld [vmem:[%s19 + $0x10] sm:$0xf]
  %v3330 = vpack.c.bf16 %v3324, %v3324
  %v3331 = vld [vmem:[#allocation2] sm:$0x1]
  %v3333 = vperm.slane %v3331, 0
  %v3340 = vunpack.c.l.b16 %v3325
  %v3341 = vunpack.c.l.b16 %v3326
  %v3342 = vunpack.c.l.b16 %v3327
  %v3343 = vunpack.c.l.b16 %v3328
  %v3344 = vunpack.c.l.b16 %v3329
  %v3345 = vpack.c.b16 %v3341, %v3340
  %v3346 = vpack.c.b16 %v3343, %v3342
  %v3347 = vpack.c.b16 %v3344, %v3344
  %v3351 = vsel %vm1788, %v3330, 0
  %v3354 = vsel %vm607, %v3347, 0
  %3356 = vmatpush.bf16.msra.mxu0 0
  %3357 = vmatpush.bf16.msra.mxu0 0
  %3358 = vmatpush.bf16.msra.mxu0 0
  %3359 = vmatpush.bf16.msra.mxu0 0
  %3360 = vmatpush.bf16.msra.mxu0 0
  %3361 = vmatpush.bf16.msra.mxu0 %v3354
  %3362 = vmatpush.bf16.msra.mxu0 %v3346
  %3363 = vmatpush.bf16.msra.mxu0 %v3345
  %3364 = vmatmul.bf16.gmra.mxu0 %v3351
  %v3365 = vpop.f32.mrf.mxu0
  %v3366 = vadd.f32 %v3333, %v3365
  %v3367 = vpop.f32.mrf.mxu0
  %3368 = vdwg.mxu0
  %v3369 = vld [vmem:[%s21] sm:$0x3]
  %v3370 = vmul.f32 %v3366, %v3369
  %vm3371 = vcmask 1024
  %3372 = vst.msk [vmem:[%s22] sm:$0x3] %vm3371, %v3370
  // Predicated region
  $region90: #{cnn_rnn_ef2_ps_forward.1} parent=0 // pred_check
    _
  $region91: #{cnn_rnn_ef2_ps_forward.1} parent=0 // pred_check_branch
    %3374 = sbr.rel (0) target = $region93
  $region92: #{cnn_rnn_ef2_ps_forward.1} parent=0 // pred_region
    _
  $region93: #{cnn_rnn_ef2_ps_forward.1} parent=0 // pred_fallthru
    _
  // Predicated region
  $region94: #{cnn_rnn_ef2_ps_forward.1} parent=0 // pred_check
    _
  $region95: #{cnn_rnn_ef2_ps_forward.1} parent=0 // pred_check_branch
    %3376 = sbr.rel (0) target = $region97
  $region96: #{cnn_rnn_ef2_ps_forward.1} parent=0 // pred_region
    _
  $region97: #{cnn_rnn_ef2_ps_forward.1} parent=0 // pred_fallthru
    _

</llo_original>
